<compile_context>
chip_gen: v5e
topology: v5e:2x2
jax: 0.10.0
libtpu: 0.0.40
codegen_flags: <defaults>
</compile_context>

<pallas_src>
import functools

import numpy as np
import jax
import jax.numpy as jnp
from jax.experimental import pallas as pl
from jax.experimental.pallas import tpu as pltpu

_PAD_OFF = 128   # aligned lane offset of the activation inside the padded scratch


# ------------------------------ fused kernel --------------------------------

def _mham_kernel(x1_ref, x2_ref, x3_ref,
                 u3_ref, u2_ref,
                 wm_ref, wg_ref,
                 p3w_ref, p3b_ref,
                 l2w_ref, l2b_ref, p2w_ref, p2b_ref,
                 l1w_ref, l1b_ref, p1w_ref, p1b_ref,
                 g1w1_ref, g1b1_ref, g1w2_ref, g1b2_ref,
                 g2w1_ref, g2b1_ref, g2w2_ref, g2b2_ref,
                 g3w1_ref, g3b1_ref, g3w2_ref, g3b2_ref,
                 fw_ref,
                 o_ref,
                 pad_ref, col_ref,
                 *, dims):
    (h1, w1), (h2, w2), (h3, w3) = dims
    hw1, hw2, hw3 = h1 * w1, h2 * w2, h3 * w3

    x1 = x1_ref[0]          # (C1, HW1)  channel-major
    x2 = x2_ref[0]          # (C2, HW2)
    x3 = x3_ref[0]          # (C3, HW3)

    def conv3x3(x, ww, wc, b):
        """3x3 SAME conv in channel-major form: one (M,9M)x(9M,HW) matmul."""
        c, hw = x.shape
        # zero-padded flat-spatial copy of x in VMEM scratch (aligned store)
        pad_ref[...] = jnp.zeros(pad_ref.shape, jnp.float32)
        pad_ref[:, _PAD_OFF:_PAD_OFF + hw] = x
        lane = jax.lax.broadcasted_iota(jnp.int32, (1, hw), 1)
        if (ww & (ww - 1)) == 0:                   # W is a power of two here
            col = lane & (ww - 1)
        else:
            col = lane % ww
        for k in range(9):
            kh, kw = divmod(k, 3)
            dy, dx = kh - 1, kw - 1
            s = dy * ww + dx
            tap = pad_ref[:, _PAD_OFF + s:_PAD_OFF + s + hw]
            if dx == -1:                           # left neighbour invalid at w==0
                tap = jnp.where(col >= 1, tap, 0.0)
            elif dx == 1:                          # right neighbour invalid at w==W-1
                tap = jnp.where(col <= ww - 2, tap, 0.0)
            col_ref[k * c:(k + 1) * c, :hw] = tap
        cols = col_ref[:, :hw]                                       # (9C, HW)
        y = jnp.dot(wc, cols, preferred_element_type=jnp.float32)    # (M, HW)
        return y + b

    def gate(pooled, w1r, b1r, w2r, b2r):
        # ChannelGate: (already pooled) -> 1x1 -> ReLU -> 1x1 -> sigmoid
        h = jnp.dot(w1r[...], pooled, preferred_element_type=jnp.float32) + b1r[...]
        h = jnp.maximum(h, 0.0)
        y = jnp.dot(w2r[...], h, preferred_element_type=jnp.float32) + b2r[...]
        return jax.nn.sigmoid(y)

    # ---- SimpleFPA (P3_1): 1x1 conv + ReLU  and  GAP -> 1x1 -> ReLU ----
    master = jnp.maximum(
        jnp.dot(wm_ref[...], x3, preferred_element_type=jnp.float32), 0.0)
    pooled3 = jnp.sum(x3, axis=1, keepdims=True) * (1.0 / hw3)        # (C3, 1)
    gpb = jnp.maximum(
        jnp.dot(wg_ref[...], pooled3, preferred_element_type=jnp.float32), 0.0)
    p3 = master + gpb                                                 # (M, HW3)

    # 2x nearest-neighbour upsample as a constant 0/1 matmul (stays in VMEM)
    p3_up = jnp.dot(p3, u3_ref[...], preferred_element_type=jnp.float32)   # (M, HW2)
    p3_out = conv3x3(p3, w3, p3w_ref[...], p3b_ref[...])                   # (M, HW3)

    # ---- level 2: lateral 1x1 + residual, upsample, 3x3 conv ----
    p2 = (jnp.dot(l2w_ref[...], x2, preferred_element_type=jnp.float32)
          + l2b_ref[...] + p3_up)                                          # (M, HW2)
    p2_up = jnp.dot(p2, u2_ref[...], preferred_element_type=jnp.float32)   # (M, HW1)
    p2_out = conv3x3(p2, w2, p2w_ref[...], p2b_ref[...])                   # (M, HW2)

    # ---- level 1 ----
    p1 = (jnp.dot(l1w_ref[...], x1, preferred_element_type=jnp.float32)
          + l1b_ref[...] + p2_up)                                          # (M, HW1)
    p1_out = conv3x3(p1, w1, p1w_ref[...], p1b_ref[...])                   # (M, HW1)

    # ---- channel gates (GAP is a lane reduction of data already in vregs) ----
    a1 = gate(jnp.sum(p1_out, axis=1, keepdims=True) * (1.0 / hw1),
              g1w1_ref, g1b1_ref, g1w2_ref, g1b2_ref)
    a2 = gate(jnp.sum(p2_out, axis=1, keepdims=True) * (1.0 / hw2),
              g2w1_ref, g2b1_ref, g2w2_ref, g2b2_ref)
    a3 = gate(jnp.sum(p3_out, axis=1, keepdims=True) * (1.0 / hw3),
              g3w1_ref, g3b1_ref, g3w2_ref, g3b2_ref)
    a2 = (a2 + a1) * 0.5
    a3 = (a3 + a2) * 0.5                                                   # (M, 1)

    # ---- final: ReLU(Wf @ (P3_out * A3)), written directly in NCHW layout ----
    y = jnp.dot(fw_ref[...], p3_out * a3, preferred_element_type=jnp.float32)
    o_ref[0] = jnp.maximum(y, 0.0).astype(o_ref.dtype)


# --------------------------------- wrapper -----------------------------------

def _zero_map(nd):
    return lambda n: (0,) * nd


def _upsample_matrix(h_lo, w_lo):
    """0/1 matrix U with (x_lo @ U) == 2x nearest-neighbour upsample of x_lo."""
    h_hi, w_hi = 2 * h_lo, 2 * w_lo
    u = np.zeros((h_lo * w_lo, h_hi * w_hi), np.float32)
    for hh in range(h_hi):
        for ww in range(w_hi):
            u[(hh // 2) * w_lo + (ww // 2), hh * w_hi + ww] = 1.0
    return u


def mham_forward(params, x1, x2, x3):
    p = params
    n, c1, h1, w1 = x1.shape
    _, c2, h2, w2 = x2.shape
    _, c3, h3, w3 = x3.shape
    m = p["final_w"].shape[0]
    hw1, hw2, hw3 = h1 * w1, h2 * w2, h3 * w3
    assert h2 == 2 * h3 and w2 == 2 * w3 and h1 == 2 * h2 and w1 == 2 * w2

    dims = ((h1, w1), (h2, w2), (h3, w3))
    hw_max = max(hh * ww for hh, ww in dims)
    w_max = max(ww for _, ww in dims)
    assert _PAD_OFF >= w_max + 1
    pad_l = -(-(_PAD_OFF + hw_max + w_max + 1) // 128) * 128
    col_l = -(-hw_max // 128) * 128

    # NCHW -> (N, C, H*W): a pure reshape, no transpose anywhere.
    x1f = x1.reshape(n, c1, hw1)
    x2f = x2.reshape(n, c2, hw2)
    x3f = x3.reshape(n, c3, hw3)

    u3 = jnp.asarray(_upsample_matrix(h3, w3))     # (HW3, HW2) constant
    u2 = jnp.asarray(_upsample_matrix(h2, w2))     # (HW2, HW1) constant

    weights = [
        u3, u2,
        p["fpa_wm"], p["fpa_wg"],
        p["p3_2_w"], p["p3_2_b"],
        p["p2_1_w"], p["p2_1_b"], p["p2_2_w"], p["p2_2_b"],
        p["p1_1_w"], p["p1_1_b"], p["p1_2_w"], p["p1_2_b"],
        p["a1_w1"], p["a1_b1"], p["a1_w2"], p["a1_b2"],
        p["a2_w1"], p["a2_b1"], p["a2_w2"], p["a2_b2"],
        p["a3_w1"], p["a3_b1"], p["a3_w2"], p["a3_b2"],
        p["final_w"],
    ]

    in_specs = [
        pl.BlockSpec((1, c1, hw1), lambda i: (i, 0, 0)),
        pl.BlockSpec((1, c2, hw2), lambda i: (i, 0, 0)),
        pl.BlockSpec((1, c3, hw3), lambda i: (i, 0, 0)),
    ] + [pl.BlockSpec(wt.shape, _zero_map(wt.ndim)) for wt in weights]

    out = pl.pallas_call(
        functools.partial(_mham_kernel, dims=dims),
        out_shape=jax.ShapeDtypeStruct((n, m, hw3), jnp.float32),
        grid=(n,),
        in_specs=in_specs,
        out_specs=pl.BlockSpec((1, m, hw3), lambda i: (i, 0, 0)),
        scratch_shapes=[pltpu.VMEM((m, pad_l), jnp.float32),
                        pltpu.VMEM((9 * m, col_l), jnp.float32)],
        compiler_params=pltpu.CompilerParams(
            dimension_semantics=("parallel",)),
    )(x1f, x2f, x3f, *weights)

    return out.reshape(n, m, h3, w3)               # already NCHW


# ------------------------------- parameters ----------------------------------

def init_params(key, c1, c2, c3, M):
    keys = iter(jax.random.split(key, 64))

    def w(shape, scale=0.1):
        return scale * jax.random.normal(next(keys), shape, jnp.float32)

    p = {}
    # SimpleFPA (P3_1): two 1x1 convs, bias=False, relu=True   (layout (Cout, Cin))
    p["fpa_wm"] = w((M, c3))
    p["fpa_wg"] = w((M, c3))
    # FPN 3x3 convs: layout (Cout, 9*Cin) with K ordered (kh, kw, cin); bias (Cout, 1)
    for name in ("p3_2", "p2_2", "p1_2"):
        p[name + "_w"] = w((M, 9 * M))
        p[name + "_b"] = w((M, 1), 0.05)
    # FPN lateral 1x1 convs (bias=True, no relu)
    p["p2_1_w"] = w((M, c2)); p["p2_1_b"] = w((M, 1), 0.05)
    p["p1_1_w"] = w((M, c1)); p["p1_1_b"] = w((M, 1), 0.05)
    # Channel gates (bias=True)
    for g in ("a1", "a2", "a3"):
        p[g + "_w1"] = w((M // 4, M)); p[g + "_b1"] = w((M // 4, 1), 0.05)
        p[g + "_w2"] = w((M, M // 4)); p[g + "_b2"] = w((M, 1), 0.05)
    # Final BasicConv 1x1 (bias=False, relu=True)
    p["final_w"] = w((M, M))
    return p


# --------------------------- pure-JAX reference ------------------------------

def mham_reference(params, x1, x2, x3):
    p = params

    def c1x1(x, w, b=None, relu=False):            # x NCHW, w (O, I), b (O, 1)
        y = jnp.einsum("nihw,oi->nohw", x, w)
        if b is not None:
            y = y + b.reshape(1, -1, 1, 1)
        return jnp.maximum(y, 0.0) if relu else y

    def c3x3(x, w, b):                             # w (O, 9*I), K ordered (kh, kw, i)
        o = w.shape[0]
        i = w.shape[1] // 9
        w_hwio = w.reshape(o, 3, 3, i).transpose(1, 2, 3, 0)
        y = jax.lax.conv_general_dilated(
            x, w_hwio, (1, 1), "SAME",
            dimension_numbers=("NCHW", "HWIO", "NCHW"))
        return y + b.reshape(1, -1, 1, 1)

    def gate(x, w1, b1, w2, b2):
        g = jnp.mean(x, axis=(2, 3), keepdims=True)
        h = c1x1(g, w1, b1, relu=True)
        return jax.nn.sigmoid(c1x1(h, w2, b2))

    up = lambda x: jnp.repeat(jnp.repeat(x, 2, 2), 2, 3)

    gap3 = jnp.mean(x3, axis=(2, 3), keepdims=True)
    p3 = c1x1(x3, p["fpa_wm"], relu=True) + c1x1(gap3, p["fpa_wg"], relu=True)
    p3_up = up(p3)
    p3_out = c3x3(p3, p["p3_2_w"], p["p3_2_b"])
    p2 = c1x1(x2, p["p2_1_w"], p["p2_1_b"]) + p3_up
    p2_up = up(p2)
    p2_out = c3x3(p2, p["p2_2_w"], p["p2_2_b"])
    p1 = c1x1(x1, p["p1_1_w"], p["p1_1_b"]) + p2_up
    p1_out = c3x3(p1, p["p1_2_w"], p["p1_2_b"])

    a1 = gate(p1_out, p["a1_w1"], p["a1_b1"], p["a1_w2"], p["a1_b2"])
    a2 = gate(p2_out, p["a2_w1"], p["a2_b1"], p["a2_w2"], p["a2_b2"])
    a3 = gate(p3_out, p["a3_w1"], p["a3_b1"], p["a3_w2"], p["a3_b2"])
    a2 = (a2 + a1) / 2
    a3 = (a3 + a2) / 2
    out = jnp.einsum("nihw,oi->nohw", p3_out * a3, p["final_w"])
    return jnp.maximum(out, 0.0)


# ----------------------------------- main ------------------------------------

if __name__ == "__main__":
    # Shapes consistent with MHAM(fpn_sizes=[_,16,24,32], M=32, use_mha=True)
    N, M = 2, 32
    C1, C2, C3 = 16, 24, 32
    H1 = W1 = 16
    H2 = W2 = 8
    H3 = W3 = 4

    key = jax.random.PRNGKey(0)
    k1, k2, k3, kp = jax.random.split(key, 4)
    x1 = jax.random.normal(k1, (N, C1, H1, W1), jnp.float32)   # NCHW like PyTorch
    x2 = jax.random.normal(k2, (N, C2, H2, W2), jnp.float32)
    x3 = jax.random.normal(k3, (N, C3, H3, W3), jnp.float32)

    params = init_params(kp, C1, C2, C3, M)

    out = jax.jit(mham_forward)(params, x1, x2, x3)
    out = jax.block_until_ready(out)

    ref = mham_reference(params, x1, x2, x3)
    assert out.shape == (N, M, H3, W3), out.shape
    assert jnp.allclose(out, ref, rtol=5e-3, atol=5e-3), \
        float(jnp.max(jnp.abs(out - ref)))

    print("KERNEL_OK")
</pallas_src>

<mosaic_0001>
module attributes {stable_mosaic.version = 11 : i64} {
  func.func @_mham_kernel(%arg0: i32, %arg1: memref<1x16x256xf32, #tpu.memory_space<vmem>>, %arg2: memref<1x24x64xf32, #tpu.memory_space<vmem>>, %arg3: memref<1x32x16xf32, #tpu.memory_space<vmem>>, %arg4: memref<16x64xf32, #tpu.memory_space<vmem>>, %arg5: memref<64x256xf32, #tpu.memory_space<vmem>>, %arg6: memref<32x32xf32, #tpu.memory_space<vmem>>, %arg7: memref<32x32xf32, #tpu.memory_space<vmem>>, %arg8: memref<32x288xf32, #tpu.memory_space<vmem>>, %arg9: memref<32x1xf32, #tpu.memory_space<vmem>>, %arg10: memref<32x24xf32, #tpu.memory_space<vmem>>, %arg11: memref<32x1xf32, #tpu.memory_space<vmem>>, %arg12: memref<32x288xf32, #tpu.memory_space<vmem>>, %arg13: memref<32x1xf32, #tpu.memory_space<vmem>>, %arg14: memref<32x16xf32, #tpu.memory_space<vmem>>, %arg15: memref<32x1xf32, #tpu.memory_space<vmem>>, %arg16: memref<32x288xf32, #tpu.memory_space<vmem>>, %arg17: memref<32x1xf32, #tpu.memory_space<vmem>>, %arg18: memref<8x32xf32, #tpu.memory_space<vmem>>, %arg19: memref<8x1xf32, #tpu.memory_space<vmem>>, %arg20: memref<32x8xf32, #tpu.memory_space<vmem>>, %arg21: memref<32x1xf32, #tpu.memory_space<vmem>>, %arg22: memref<8x32xf32, #tpu.memory_space<vmem>>, %arg23: memref<8x1xf32, #tpu.memory_space<vmem>>, %arg24: memref<32x8xf32, #tpu.memory_space<vmem>>, %arg25: memref<32x1xf32, #tpu.memory_space<vmem>>, %arg26: memref<8x32xf32, #tpu.memory_space<vmem>>, %arg27: memref<8x1xf32, #tpu.memory_space<vmem>>, %arg28: memref<32x8xf32, #tpu.memory_space<vmem>>, %arg29: memref<32x1xf32, #tpu.memory_space<vmem>>, %arg30: memref<32x32xf32, #tpu.memory_space<vmem>>, %arg31: memref<1x32x16xf32, #tpu.memory_space<vmem>>, %arg32: memref<32x512xf32, #tpu.memory_space<vmem>>, %arg33: memref<288x256xf32, #tpu.memory_space<vmem>>) attributes {dimension_semantics = [#tpu.dimension_semantics<parallel>], iteration_bounds = array<i64: 2>, scalar_prefetch = 0 : i64, scratch_operands = 2 : i64, tpu.core_type = #tpu.core_type<tc>, window_params = [{transform_indices = @transform_0, window_bounds = array<i64: 1, 16, 256>}, {transform_indices = @transform_1, window_bounds = array<i64: 1, 24, 64>}, {transform_indices = @transform_2, window_bounds = array<i64: 1, 32, 16>}, {pipeline_mode = #tpu.pipeline_mode<synchronous>, transform_indices = @transform_3, window_bounds = array<i64: 16, 64>}, {pipeline_mode = #tpu.pipeline_mode<synchronous>, transform_indices = @transform_4, window_bounds = array<i64: 64, 256>}, {pipeline_mode = #tpu.pipeline_mode<synchronous>, transform_indices = @transform_5, window_bounds = array<i64: 32, 32>}, {pipeline_mode = #tpu.pipeline_mode<synchronous>, transform_indices = @transform_6, window_bounds = array<i64: 32, 32>}, {pipeline_mode = #tpu.pipeline_mode<synchronous>, transform_indices = @transform_7, window_bounds = array<i64: 32, 288>}, {pipeline_mode = #tpu.pipeline_mode<synchronous>, transform_indices = @transform_8, window_bounds = array<i64: 32, 1>}, {pipeline_mode = #tpu.pipeline_mode<synchronous>, transform_indices = @transform_9, window_bounds = array<i64: 32, 24>}, {pipeline_mode = #tpu.pipeline_mode<synchronous>, transform_indices = @transform_10, window_bounds = array<i64: 32, 1>}, {pipeline_mode = #tpu.pipeline_mode<synchronous>, transform_indices = @transform_11, window_bounds = array<i64: 32, 288>}, {pipeline_mode = #tpu.pipeline_mode<synchronous>, transform_indices = @transform_12, window_bounds = array<i64: 32, 1>}, {pipeline_mode = #tpu.pipeline_mode<synchronous>, transform_indices = @transform_13, window_bounds = array<i64: 32, 16>}, {pipeline_mode = #tpu.pipeline_mode<synchronous>, transform_indices = @transform_14, window_bounds = array<i64: 32, 1>}, {pipeline_mode = #tpu.pipeline_mode<synchronous>, transform_indices = @transform_15, window_bounds = array<i64: 32, 288>}, {pipeline_mode = #tpu.pipeline_mode<synchronous>, transform_indices = @transform_16, window_bounds = array<i64: 32, 1>}, {pipeline_mode = #tpu.pipeline_mode<synchronous>, transform_indices = @transform_17, window_bounds = array<i64: 8, 32>}, {pipeline_mode = #tpu.pipeline_mode<synchronous>, transform_indices = @transform_18, window_bounds = array<i64: 8, 1>}, {pipeline_mode = #tpu.pipeline_mode<synchronous>, transform_indices = @transform_19, window_bounds = array<i64: 32, 8>}, {pipeline_mode = #tpu.pipeline_mode<synchronous>, transform_indices = @transform_20, window_bounds = array<i64: 32, 1>}, {pipeline_mode = #tpu.pipeline_mode<synchronous>, transform_indices = @transform_21, window_bounds = array<i64: 8, 32>}, {pipeline_mode = #tpu.pipeline_mode<synchronous>, transform_indices = @transform_22, window_bounds = array<i64: 8, 1>}, {pipeline_mode = #tpu.pipeline_mode<synchronous>, transform_indices = @transform_23, window_bounds = array<i64: 32, 8>}, {pipeline_mode = #tpu.pipeline_mode<synchronous>, transform_indices = @transform_24, window_bounds = array<i64: 32, 1>}, {pipeline_mode = #tpu.pipeline_mode<synchronous>, transform_indices = @transform_25, window_bounds = array<i64: 8, 32>}, {pipeline_mode = #tpu.pipeline_mode<synchronous>, transform_indices = @transform_26, window_bounds = array<i64: 8, 1>}, {pipeline_mode = #tpu.pipeline_mode<synchronous>, transform_indices = @transform_27, window_bounds = array<i64: 32, 8>}, {pipeline_mode = #tpu.pipeline_mode<synchronous>, transform_indices = @transform_28, window_bounds = array<i64: 32, 1>}, {pipeline_mode = #tpu.pipeline_mode<synchronous>, transform_indices = @transform_29, window_bounds = array<i64: 32, 32>}, {transform_indices = @transform_30, window_bounds = array<i64: 1, 32, 16>}]} {
    %c0 = arith.constant 0 : index
    %c0_0 = arith.constant 0 : index
    %c0_1 = arith.constant 0 : index
    %0 = vector.load %arg1[%c0, %c0_0, %c0_1] : memref<1x16x256xf32, #tpu.memory_space<vmem>>, vector<1x16x256xf32>
    %1 = vector.shape_cast %0 : vector<1x16x256xf32> to vector<16x256xf32>
    %c0_2 = arith.constant 0 : index
    %c0_3 = arith.constant 0 : index
    %c0_4 = arith.constant 0 : index
    %2 = vector.load %arg2[%c0_2, %c0_3, %c0_4] : memref<1x24x64xf32, #tpu.memory_space<vmem>>, vector<1x24x64xf32>
    %3 = vector.shape_cast %2 : vector<1x24x64xf32> to vector<24x64xf32>
    %c0_5 = arith.constant 0 : index
    %c0_6 = arith.constant 0 : index
    %c0_7 = arith.constant 0 : index
    %4 = vector.load %arg3[%c0_5, %c0_6, %c0_7] : memref<1x32x16xf32, #tpu.memory_space<vmem>>, vector<1x32x16xf32>
    %5 = vector.shape_cast %4 : vector<1x32x16xf32> to vector<32x16xf32>
    %c0_8 = arith.constant 0 : index
    %c0_9 = arith.constant 0 : index
    %6 = vector.load %arg6[%c0_8, %c0_9] : memref<32x32xf32, #tpu.memory_space<vmem>>, vector<32x32xf32>
    %cst = arith.constant dense<0.000000e+00> : vector<32x16xf32>
    %7 = tpu.matmul %6, %5, %cst {dimension_numbers = #tpu.dot_dimension_numbers<[1], [0], [0], [1], [0, 0, 1, 1], [], []>} : vector<32x32xf32>, vector<32x16xf32>, vector<32x16xf32> -> vector<32x16xf32>
    %cst_10 = arith.constant 0.000000e+00 : f32
    %8 = vector.broadcast %cst_10 : f32 to vector<32x16xf32>
    %9 = arith.maximumf %7, %8 : vector<32x16xf32>
    %cst_11 = arith.constant dense<0.000000e+00> : vector<32xf32>
    %10 = vector.multi_reduction <add>, %5, %cst_11 [1] : vector<32x16xf32> to vector<32xf32>
    %11 = vector.shape_cast %10 : vector<32xf32> to vector<32x1xf32>
    %cst_12 = arith.constant 6.250000e-02 : f32
    %12 = vector.broadcast %cst_12 : f32 to vector<32x1xf32>
    %13 = arith.mulf %11, %12 : vector<32x1xf32>
    %c0_13 = arith.constant 0 : index
    %c0_14 = arith.constant 0 : index
    %14 = vector.load %arg7[%c0_13, %c0_14] : memref<32x32xf32, #tpu.memory_space<vmem>>, vector<32x32xf32>
    %cst_15 = arith.constant dense<0.000000e+00> : vector<32x1xf32>
    %15 = tpu.matmul %14, %13, %cst_15 {dimension_numbers = #tpu.dot_dimension_numbers<[1], [0], [0], [1], [0, 0, 1, 1], [], []>} : vector<32x32xf32>, vector<32x1xf32>, vector<32x1xf32> -> vector<32x1xf32>
    %cst_16 = arith.constant 0.000000e+00 : f32
    %16 = vector.broadcast %cst_16 : f32 to vector<32x1xf32>
    %17 = arith.maximumf %15, %16 : vector<32x1xf32>
    %18 = vector.broadcast %17 : vector<32x1xf32> to vector<32x16xf32>
    %19 = arith.addf %9, %18 : vector<32x16xf32>
    %c0_17 = arith.constant 0 : index
    %c0_18 = arith.constant 0 : index
    %20 = vector.load %arg4[%c0_17, %c0_18] : memref<16x64xf32, #tpu.memory_space<vmem>>, vector<16x64xf32>
    %cst_19 = arith.constant dense<0.000000e+00> : vector<32x64xf32>
    %21 = tpu.matmul %19, %20, %cst_19 {dimension_numbers = #tpu.dot_dimension_numbers<[1], [0], [0], [1], [0, 0, 1, 1], [], []>} : vector<32x16xf32>, vector<16x64xf32>, vector<32x64xf32> -> vector<32x64xf32>
    %c0_20 = arith.constant 0 : index
    %c0_21 = arith.constant 0 : index
    %22 = vector.load %arg8[%c0_20, %c0_21] : memref<32x288xf32, #tpu.memory_space<vmem>>, vector<32x288xf32>
    %c0_22 = arith.constant 0 : index
    %c0_23 = arith.constant 0 : index
    %23 = vector.load %arg9[%c0_22, %c0_23] : memref<32x1xf32, #tpu.memory_space<vmem>>, vector<32x1xf32>
    %cst_24 = arith.constant 0.000000e+00 : f32
    %24 = vector.broadcast %cst_24 : f32 to vector<32x512xf32>
    %c0_25 = arith.constant 0 : index
    %c0_26 = arith.constant 0 : index
    %25 = vector.load %arg32[%c0_25, %c0_26] : memref<32x512xf32, #tpu.memory_space<vmem>>, vector<32x512xf32>
    tpu.vector_store %arg32[%c0_25, %c0_26], %24 {strides = array<i32>} : memref<32x512xf32, #tpu.memory_space<vmem>>, vector<32x512xf32>,
    %c0_27 = arith.constant 0 : index
    %c128 = arith.constant 128 : index
    %26 = vector.load %arg32[%c0_27, %c128] : memref<32x512xf32, #tpu.memory_space<vmem>>, vector<32x16xf32>
    tpu.vector_store %arg32[%c0_27, %c128], %19 {strides = array<i32>} : memref<32x512xf32, #tpu.memory_space<vmem>>, vector<32x16xf32>,
    %27 = tpu.iota {dimensions = array<i32: 1>} : vector<1x16xi32>
    %c3_i32 = arith.constant 3 : i32
    %28 = vector.broadcast %c3_i32 : i32 to vector<1x16xi32>
    %29 = arith.andi %27, %28 : vector<1x16xi32>
    %c0_28 = arith.constant 0 : index
    %c123 = arith.constant 123 : index
    %30 = vector.load %arg32[%c0_28, %c123] : memref<32x512xf32, #tpu.memory_space<vmem>>, vector<32x16xf32>
    %c1_i32 = arith.constant 1 : i32
    %31 = vector.broadcast %c1_i32 : i32 to vector<1x16xi32>
    %32 = arith.cmpi sge, %29, %31 : vector<1x16xi32>
    %cst_29 = arith.constant 0.000000e+00 : f32
    %33 = vector.shape_cast %32 : vector<1x16xi1> to vector<1x16xi1>
    %34 = vector.broadcast %33 : vector<1x16xi1> to vector<32x16xi1>
    %35 = vector.broadcast %cst_29 : f32 to vector<32x16xf32>
    %36 = arith.select %34, %30, %35 : vector<32x16xi1>, vector<32x16xf32>
    %c0_30 = arith.constant 0 : index
    %c0_31 = arith.constant 0 : index
    %37 = vector.load %arg33[%c0_30, %c0_31] : memref<288x256xf32, #tpu.memory_space<vmem>>, vector<32x16xf32>
    tpu.vector_store %arg33[%c0_30, %c0_31], %36 {strides = array<i32>} : memref<288x256xf32, #tpu.memory_space<vmem>>, vector<32x16xf32>,
    %c0_32 = arith.constant 0 : index
    %c124 = arith.constant 124 : index
    %38 = vector.load %arg32[%c0_32, %c124] : memref<32x512xf32, #tpu.memory_space<vmem>>, vector<32x16xf32>
    %c32 = arith.constant 32 : index
    %c0_33 = arith.constant 0 : index
    %39 = vector.load %arg33[%c32, %c0_33] : memref<288x256xf32, #tpu.memory_space<vmem>>, vector<32x16xf32>
    tpu.vector_store %arg33[%c32, %c0_33], %38 {strides = array<i32>} : memref<288x256xf32, #tpu.memory_space<vmem>>, vector<32x16xf32>,
    %c0_34 = arith.constant 0 : index
    %c125 = arith.constant 125 : index
    %40 = vector.load %arg32[%c0_34, %c125] : memref<32x512xf32, #tpu.memory_space<vmem>>, vector<32x16xf32>
    %c2_i32 = arith.constant 2 : i32
    %41 = vector.broadcast %c2_i32 : i32 to vector<1x16xi32>
    %42 = arith.cmpi sle, %29, %41 : vector<1x16xi32>
    %cst_35 = arith.constant 0.000000e+00 : f32
    %43 = vector.shape_cast %42 : vector<1x16xi1> to vector<1x16xi1>
    %44 = vector.broadcast %43 : vector<1x16xi1> to vector<32x16xi1>
    %45 = vector.broadcast %cst_35 : f32 to vector<32x16xf32>
    %46 = arith.select %44, %40, %45 : vector<32x16xi1>, vector<32x16xf32>
    %c64 = arith.constant 64 : index
    %c0_36 = arith.constant 0 : index
    %47 = vector.load %arg33[%c64, %c0_36] : memref<288x256xf32, #tpu.memory_space<vmem>>, vector<32x16xf32>
    tpu.vector_store %arg33[%c64, %c0_36], %46 {strides = array<i32>} : memref<288x256xf32, #tpu.memory_space<vmem>>, vector<32x16xf32>,
    %c0_37 = arith.constant 0 : index
    %c127 = arith.constant 127 : index
    %48 = vector.load %arg32[%c0_37, %c127] : memref<32x512xf32, #tpu.memory_space<vmem>>, vector<32x16xf32>
    %c1_i32_38 = arith.constant 1 : i32
    %49 = vector.broadcast %c1_i32_38 : i32 to vector<1x16xi32>
    %50 = arith.cmpi sge, %29, %49 : vector<1x16xi32>
    %cst_39 = arith.constant 0.000000e+00 : f32
    %51 = vector.shape_cast %50 : vector<1x16xi1> to vector<1x16xi1>
    %52 = vector.broadcast %51 : vector<1x16xi1> to vector<32x16xi1>
    %53 = vector.broadcast %cst_39 : f32 to vector<32x16xf32>
    %54 = arith.select %52, %48, %53 : vector<32x16xi1>, vector<32x16xf32>
    %c96 = arith.constant 96 : index
    %c0_40 = arith.constant 0 : index
    %55 = vector.load %arg33[%c96, %c0_40] : memref<288x256xf32, #tpu.memory_space<vmem>>, vector<32x16xf32>
    tpu.vector_store %arg33[%c96, %c0_40], %54 {strides = array<i32>} : memref<288x256xf32, #tpu.memory_space<vmem>>, vector<32x16xf32>,
    %c0_41 = arith.constant 0 : index
    %c128_42 = arith.constant 128 : index
    %56 = vector.load %arg32[%c0_41, %c128_42] : memref<32x512xf32, #tpu.memory_space<vmem>>, vector<32x16xf32>
    %c128_43 = arith.constant 128 : index
    %c0_44 = arith.constant 0 : index
    %57 = vector.load %arg33[%c128_43, %c0_44] : memref<288x256xf32, #tpu.memory_space<vmem>>, vector<32x16xf32>
    tpu.vector_store %arg33[%c128_43, %c0_44], %56 {strides = array<i32>} : memref<288x256xf32, #tpu.memory_space<vmem>>, vector<32x16xf32>,
    %c0_45 = arith.constant 0 : index
    %c129 = arith.constant 129 : index
    %58 = vector.load %arg32[%c0_45, %c129] : memref<32x512xf32, #tpu.memory_space<vmem>>, vector<32x16xf32>
    %c2_i32_46 = arith.constant 2 : i32
    %59 = vector.broadcast %c2_i32_46 : i32 to vector<1x16xi32>
    %60 = arith.cmpi sle, %29, %59 : vector<1x16xi32>
    %cst_47 = arith.constant 0.000000e+00 : f32
    %61 = vector.shape_cast %60 : vector<1x16xi1> to vector<1x16xi1>
    %62 = vector.broadcast %61 : vector<1x16xi1> to vector<32x16xi1>
    %63 = vector.broadcast %cst_47 : f32 to vector<32x16xf32>
    %64 = arith.select %62, %58, %63 : vector<32x16xi1>, vector<32x16xf32>
    %c160 = arith.constant 160 : index
    %c0_48 = arith.constant 0 : index
    %65 = vector.load %arg33[%c160, %c0_48] : memref<288x256xf32, #tpu.memory_space<vmem>>, vector<32x16xf32>
    tpu.vector_store %arg33[%c160, %c0_48], %64 {strides = array<i32>} : memref<288x256xf32, #tpu.memory_space<vmem>>, vector<32x16xf32>,
    %c0_49 = arith.constant 0 : index
    %c131 = arith.constant 131 : index
    %66 = vector.load %arg32[%c0_49, %c131] : memref<32x512xf32, #tpu.memory_space<vmem>>, vector<32x16xf32>
    %c1_i32_50 = arith.constant 1 : i32
    %67 = vector.broadcast %c1_i32_50 : i32 to vector<1x16xi32>
    %68 = arith.cmpi sge, %29, %67 : vector<1x16xi32>
    %cst_51 = arith.constant 0.000000e+00 : f32
    %69 = vector.shape_cast %68 : vector<1x16xi1> to vector<1x16xi1>
    %70 = vector.broadcast %69 : vector<1x16xi1> to vector<32x16xi1>
    %71 = vector.broadcast %cst_51 : f32 to vector<32x16xf32>
    %72 = arith.select %70, %66, %71 : vector<32x16xi1>, vector<32x16xf32>
    %c192 = arith.constant 192 : index
    %c0_52 = arith.constant 0 : index
    %73 = vector.load %arg33[%c192, %c0_52] : memref<288x256xf32, #tpu.memory_space<vmem>>, vector<32x16xf32>
    tpu.vector_store %arg33[%c192, %c0_52], %72 {strides = array<i32>} : memref<288x256xf32, #tpu.memory_space<vmem>>, vector<32x16xf32>,
    %c0_53 = arith.constant 0 : index
    %c132 = arith.constant 132 : index
    %74 = vector.load %arg32[%c0_53, %c132] : memref<32x512xf32, #tpu.memory_space<vmem>>, vector<32x16xf32>
    %c224 = arith.constant 224 : index
    %c0_54 = arith.constant 0 : index
    %75 = vector.load %arg33[%c224, %c0_54] : memref<288x256xf32, #tpu.memory_space<vmem>>, vector<32x16xf32>
    tpu.vector_store %arg33[%c224, %c0_54], %74 {strides = array<i32>} : memref<288x256xf32, #tpu.memory_space<vmem>>, vector<32x16xf32>,
    %c0_55 = arith.constant 0 : index
    %c133 = arith.constant 133 : index
    %76 = vector.load %arg32[%c0_55, %c133] : memref<32x512xf32, #tpu.memory_space<vmem>>, vector<32x16xf32>
    %c2_i32_56 = arith.constant 2 : i32
    %77 = vector.broadcast %c2_i32_56 : i32 to vector<1x16xi32>
    %78 = arith.cmpi sle, %29, %77 : vector<1x16xi32>
    %cst_57 = arith.constant 0.000000e+00 : f32
    %79 = vector.shape_cast %78 : vector<1x16xi1> to vector<1x16xi1>
    %80 = vector.broadcast %79 : vector<1x16xi1> to vector<32x16xi1>
    %81 = vector.broadcast %cst_57 : f32 to vector<32x16xf32>
    %82 = arith.select %80, %76, %81 : vector<32x16xi1>, vector<32x16xf32>
    %c256 = arith.constant 256 : index
    %c0_58 = arith.constant 0 : index
    %83 = vector.load %arg33[%c256, %c0_58] : memref<288x256xf32, #tpu.memory_space<vmem>>, vector<32x16xf32>
    tpu.vector_store %arg33[%c256, %c0_58], %82 {strides = array<i32>} : memref<288x256xf32, #tpu.memory_space<vmem>>, vector<32x16xf32>,
    %c0_59 = arith.constant 0 : index
    %c0_60 = arith.constant 0 : index
    %84 = vector.load %arg33[%c0_59, %c0_60] : memref<288x256xf32, #tpu.memory_space<vmem>>, vector<288x16xf32>
    %cst_61 = arith.constant dense<0.000000e+00> : vector<32x16xf32>
    %85 = tpu.matmul %22, %84, %cst_61 {dimension_numbers = #tpu.dot_dimension_numbers<[1], [0], [0], [1], [0, 0, 1, 1], [], []>} : vector<32x288xf32>, vector<288x16xf32>, vector<32x16xf32> -> vector<32x16xf32>
    %86 = vector.broadcast %23 : vector<32x1xf32> to vector<32x16xf32>
    %87 = arith.addf %85, %86 : vector<32x16xf32>
    %c0_62 = arith.constant 0 : index
    %c0_63 = arith.constant 0 : index
    %88 = vector.load %arg10[%c0_62, %c0_63] : memref<32x24xf32, #tpu.memory_space<vmem>>, vector<32x24xf32>
    %cst_64 = arith.constant dense<0.000000e+00> : vector<32x64xf32>
    %89 = tpu.matmul %88, %3, %cst_64 {dimension_numbers = #tpu.dot_dimension_numbers<[1], [0], [0], [1], [0, 0, 1, 1], [], []>} : vector<32x24xf32>, vector<24x64xf32>, vector<32x64xf32> -> vector<32x64xf32>
    %c0_65 = arith.constant 0 : index
    %c0_66 = arith.constant 0 : index
    %90 = vector.load %arg11[%c0_65, %c0_66] : memref<32x1xf32, #tpu.memory_space<vmem>>, vector<32x1xf32>
    %91 = vector.broadcast %90 : vector<32x1xf32> to vector<32x64xf32>
    %92 = arith.addf %89, %91 : vector<32x64xf32>
    %93 = arith.addf %92, %21 : vector<32x64xf32>
    %c0_67 = arith.constant 0 : index
    %c0_68 = arith.constant 0 : index
    %94 = vector.load %arg5[%c0_67, %c0_68] : memref<64x256xf32, #tpu.memory_space<vmem>>, vector<64x256xf32>
    %cst_69 = arith.constant dense<0.000000e+00> : vector<32x256xf32>
    %95 = tpu.matmul %93, %94, %cst_69 {dimension_numbers = #tpu.dot_dimension_numbers<[1], [0], [0], [1], [0, 0, 1, 1], [], []>} : vector<32x64xf32>, vector<64x256xf32>, vector<32x256xf32> -> vector<32x256xf32>
    %c0_70 = arith.constant 0 : index
    %c0_71 = arith.constant 0 : index
    %96 = vector.load %arg12[%c0_70, %c0_71] : memref<32x288xf32, #tpu.memory_space<vmem>>, vector<32x288xf32>
    %c0_72 = arith.constant 0 : index
    %c0_73 = arith.constant 0 : index
    %97 = vector.load %arg13[%c0_72, %c0_73] : memref<32x1xf32, #tpu.memory_space<vmem>>, vector<32x1xf32>
    %cst_74 = arith.constant 0.000000e+00 : f32
    %98 = vector.broadcast %cst_74 : f32 to vector<32x512xf32>
    %c0_75 = arith.constant 0 : index
    %c0_76 = arith.constant 0 : index
    %99 = vector.load %arg32[%c0_75, %c0_76] : memref<32x512xf32, #tpu.memory_space<vmem>>, vector<32x512xf32>
    tpu.vector_store %arg32[%c0_75, %c0_76], %98 {strides = array<i32>} : memref<32x512xf32, #tpu.memory_space<vmem>>, vector<32x512xf32>,
    %c0_77 = arith.constant 0 : index
    %c128_78 = arith.constant 128 : index
    %100 = vector.load %arg32[%c0_77, %c128_78] : memref<32x512xf32, #tpu.memory_space<vmem>>, vector<32x64xf32>
    tpu.vector_store %arg32[%c0_77, %c128_78], %93 {strides = array<i32>} : memref<32x512xf32, #tpu.memory_space<vmem>>, vector<32x64xf32>,
    %101 = tpu.iota {dimensions = array<i32: 1>} : vector<1x64xi32>
    %c7_i32 = arith.constant 7 : i32
    %102 = vector.broadcast %c7_i32 : i32 to vector<1x64xi32>
    %103 = arith.andi %101, %102 : vector<1x64xi32>
    %c0_79 = arith.constant 0 : index
    %c119 = arith.constant 119 : index
    %104 = vector.load %arg32[%c0_79, %c119] : memref<32x512xf32, #tpu.memory_space<vmem>>, vector<32x64xf32>
    %c1_i32_80 = arith.constant 1 : i32
    %105 = vector.broadcast %c1_i32_80 : i32 to vector<1x64xi32>
    %106 = arith.cmpi sge, %103, %105 : vector<1x64xi32>
    %cst_81 = arith.constant 0.000000e+00 : f32
    %107 = vector.shape_cast %106 : vector<1x64xi1> to vector<1x64xi1>
    %108 = vector.broadcast %107 : vector<1x64xi1> to vector<32x64xi1>
    %109 = vector.broadcast %cst_81 : f32 to vector<32x64xf32>
    %110 = arith.select %108, %104, %109 : vector<32x64xi1>, vector<32x64xf32>
    %c0_82 = arith.constant 0 : index
    %c0_83 = arith.constant 0 : index
    %111 = vector.load %arg33[%c0_82, %c0_83] : memref<288x256xf32, #tpu.memory_space<vmem>>, vector<32x64xf32>
    tpu.vector_store %arg33[%c0_82, %c0_83], %110 {strides = array<i32>} : memref<288x256xf32, #tpu.memory_space<vmem>>, vector<32x64xf32>,
    %c0_84 = arith.constant 0 : index
    %c120 = arith.constant 120 : index
    %112 = vector.load %arg32[%c0_84, %c120] : memref<32x512xf32, #tpu.memory_space<vmem>>, vector<32x64xf32>
    %c32_85 = arith.constant 32 : index
    %c0_86 = arith.constant 0 : index
    %113 = vector.load %arg33[%c32_85, %c0_86] : memref<288x256xf32, #tpu.memory_space<vmem>>, vector<32x64xf32>
    tpu.vector_store %arg33[%c32_85, %c0_86], %112 {strides = array<i32>} : memref<288x256xf32, #tpu.memory_space<vmem>>, vector<32x64xf32>,
    %c0_87 = arith.constant 0 : index
    %c121 = arith.constant 121 : index
    %114 = vector.load %arg32[%c0_87, %c121] : memref<32x512xf32, #tpu.memory_space<vmem>>, vector<32x64xf32>
    %c6_i32 = arith.constant 6 : i32
    %115 = vector.broadcast %c6_i32 : i32 to vector<1x64xi32>
    %116 = arith.cmpi sle, %103, %115 : vector<1x64xi32>
    %cst_88 = arith.constant 0.000000e+00 : f32
    %117 = vector.shape_cast %116 : vector<1x64xi1> to vector<1x64xi1>
    %118 = vector.broadcast %117 : vector<1x64xi1> to vector<32x64xi1>
    %119 = vector.broadcast %cst_88 : f32 to vector<32x64xf32>
    %120 = arith.select %118, %114, %119 : vector<32x64xi1>, vector<32x64xf32>
    %c64_89 = arith.constant 64 : index
    %c0_90 = arith.constant 0 : index
    %121 = vector.load %arg33[%c64_89, %c0_90] : memref<288x256xf32, #tpu.memory_space<vmem>>, vector<32x64xf32>
    tpu.vector_store %arg33[%c64_89, %c0_90], %120 {strides = array<i32>} : memref<288x256xf32, #tpu.memory_space<vmem>>, vector<32x64xf32>,
    %c0_91 = arith.constant 0 : index
    %c127_92 = arith.constant 127 : index
    %122 = vector.load %arg32[%c0_91, %c127_92] : memref<32x512xf32, #tpu.memory_space<vmem>>, vector<32x64xf32>
    %c1_i32_93 = arith.constant 1 : i32
    %123 = vector.broadcast %c1_i32_93 : i32 to vector<1x64xi32>
    %124 = arith.cmpi sge, %103, %123 : vector<1x64xi32>
    %cst_94 = arith.constant 0.000000e+00 : f32
    %125 = vector.shape_cast %124 : vector<1x64xi1> to vector<1x64xi1>
    %126 = vector.broadcast %125 : vector<1x64xi1> to vector<32x64xi1>
    %127 = vector.broadcast %cst_94 : f32 to vector<32x64xf32>
    %128 = arith.select %126, %122, %127 : vector<32x64xi1>, vector<32x64xf32>
    %c96_95 = arith.constant 96 : index
    %c0_96 = arith.constant 0 : index
    %129 = vector.load %arg33[%c96_95, %c0_96] : memref<288x256xf32, #tpu.memory_space<vmem>>, vector<32x64xf32>
    tpu.vector_store %arg33[%c96_95, %c0_96], %128 {strides = array<i32>} : memref<288x256xf32, #tpu.memory_space<vmem>>, vector<32x64xf32>,
    %c0_97 = arith.constant 0 : index
    %c128_98 = arith.constant 128 : index
    %130 = vector.load %arg32[%c0_97, %c128_98] : memref<32x512xf32, #tpu.memory_space<vmem>>, vector<32x64xf32>
    %c128_99 = arith.constant 128 : index
    %c0_100 = arith.constant 0 : index
    %131 = vector.load %arg33[%c128_99, %c0_100] : memref<288x256xf32, #tpu.memory_space<vmem>>, vector<32x64xf32>
    tpu.vector_store %arg33[%c128_99, %c0_100], %130 {strides = array<i32>} : memref<288x256xf32, #tpu.memory_space<vmem>>, vector<32x64xf32>,
    %c0_101 = arith.constant 0 : index
    %c129_102 = arith.constant 129 : index
    %132 = vector.load %arg32[%c0_101, %c129_102] : memref<32x512xf32, #tpu.memory_space<vmem>>, vector<32x64xf32>
    %c6_i32_103 = arith.constant 6 : i32
    %133 = vector.broadcast %c6_i32_103 : i32 to vector<1x64xi32>
    %134 = arith.cmpi sle, %103, %133 : vector<1x64xi32>
    %cst_104 = arith.constant 0.000000e+00 : f32
    %135 = vector.shape_cast %134 : vector<1x64xi1> to vector<1x64xi1>
    %136 = vector.broadcast %135 : vector<1x64xi1> to vector<32x64xi1>
    %137 = vector.broadcast %cst_104 : f32 to vector<32x64xf32>
    %138 = arith.select %136, %132, %137 : vector<32x64xi1>, vector<32x64xf32>
    %c160_105 = arith.constant 160 : index
    %c0_106 = arith.constant 0 : index
    %139 = vector.load %arg33[%c160_105, %c0_106] : memref<288x256xf32, #tpu.memory_space<vmem>>, vector<32x64xf32>
    tpu.vector_store %arg33[%c160_105, %c0_106], %138 {strides = array<i32>} : memref<288x256xf32, #tpu.memory_space<vmem>>, vector<32x64xf32>,
    %c0_107 = arith.constant 0 : index
    %c135 = arith.constant 135 : index
    %140 = vector.load %arg32[%c0_107, %c135] : memref<32x512xf32, #tpu.memory_space<vmem>>, vector<32x64xf32>
    %c1_i32_108 = arith.constant 1 : i32
    %141 = vector.broadcast %c1_i32_108 : i32 to vector<1x64xi32>
    %142 = arith.cmpi sge, %103, %141 : vector<1x64xi32>
    %cst_109 = arith.constant 0.000000e+00 : f32
    %143 = vector.shape_cast %142 : vector<1x64xi1> to vector<1x64xi1>
    %144 = vector.broadcast %143 : vector<1x64xi1> to vector<32x64xi1>
    %145 = vector.broadcast %cst_109 : f32 to vector<32x64xf32>
    %146 = arith.select %144, %140, %145 : vector<32x64xi1>, vector<32x64xf32>
    %c192_110 = arith.constant 192 : index
    %c0_111 = arith.constant 0 : index
    %147 = vector.load %arg33[%c192_110, %c0_111] : memref<288x256xf32, #tpu.memory_space<vmem>>, vector<32x64xf32>
    tpu.vector_store %arg33[%c192_110, %c0_111], %146 {strides = array<i32>} : memref<288x256xf32, #tpu.memory_space<vmem>>, vector<32x64xf32>,
    %c0_112 = arith.constant 0 : index
    %c136 = arith.constant 136 : index
    %148 = vector.load %arg32[%c0_112, %c136] : memref<32x512xf32, #tpu.memory_space<vmem>>, vector<32x64xf32>
    %c224_113 = arith.constant 224 : index
    %c0_114 = arith.constant 0 : index
    %149 = vector.load %arg33[%c224_113, %c0_114] : memref<288x256xf32, #tpu.memory_space<vmem>>, vector<32x64xf32>
    tpu.vector_store %arg33[%c224_113, %c0_114], %148 {strides = array<i32>} : memref<288x256xf32, #tpu.memory_space<vmem>>, vector<32x64xf32>,
    %c0_115 = arith.constant 0 : index
    %c137 = arith.constant 137 : index
    %150 = vector.load %arg32[%c0_115, %c137] : memref<32x512xf32, #tpu.memory_space<vmem>>, vector<32x64xf32>
    %c6_i32_116 = arith.constant 6 : i32
    %151 = vector.broadcast %c6_i32_116 : i32 to vector<1x64xi32>
    %152 = arith.cmpi sle, %103, %151 : vector<1x64xi32>
    %cst_117 = arith.constant 0.000000e+00 : f32
    %153 = vector.shape_cast %152 : vector<1x64xi1> to vector<1x64xi1>
    %154 = vector.broadcast %153 : vector<1x64xi1> to vector<32x64xi1>
    %155 = vector.broadcast %cst_117 : f32 to vector<32x64xf32>
    %156 = arith.select %154, %150, %155 : vector<32x64xi1>, vector<32x64xf32>
    %c256_118 = arith.constant 256 : index
    %c0_119 = arith.constant 0 : index
    %157 = vector.load %arg33[%c256_118, %c0_119] : memref<288x256xf32, #tpu.memory_space<vmem>>, vector<32x64xf32>
    tpu.vector_store %arg33[%c256_118, %c0_119], %156 {strides = array<i32>} : memref<288x256xf32, #tpu.memory_space<vmem>>, vector<32x64xf32>,
    %c0_120 = arith.constant 0 : index
    %c0_121 = arith.constant 0 : index
    %158 = vector.load %arg33[%c0_120, %c0_121] : memref<288x256xf32, #tpu.memory_space<vmem>>, vector<288x64xf32>
    %cst_122 = arith.constant dense<0.000000e+00> : vector<32x64xf32>
    %159 = tpu.matmul %96, %158, %cst_122 {dimension_numbers = #tpu.dot_dimension_numbers<[1], [0], [0], [1], [0, 0, 1, 1], [], []>} : vector<32x288xf32>, vector<288x64xf32>, vector<32x64xf32> -> vector<32x64xf32>
    %160 = vector.broadcast %97 : vector<32x1xf32> to vector<32x64xf32>
    %161 = arith.addf %159, %160 : vector<32x64xf32>
    %c0_123 = arith.constant 0 : index
    %c0_124 = arith.constant 0 : index
    %162 = vector.load %arg14[%c0_123, %c0_124] : memref<32x16xf32, #tpu.memory_space<vmem>>, vector<32x16xf32>
    %cst_125 = arith.constant dense<0.000000e+00> : vector<32x256xf32>
    %163 = tpu.matmul %162, %1, %cst_125 {dimension_numbers = #tpu.dot_dimension_numbers<[1], [0], [0], [1], [0, 0, 1, 1], [], []>} : vector<32x16xf32>, vector<16x256xf32>, vector<32x256xf32> -> vector<32x256xf32>
    %c0_126 = arith.constant 0 : index
    %c0_127 = arith.constant 0 : index
    %164 = vector.load %arg15[%c0_126, %c0_127] : memref<32x1xf32, #tpu.memory_space<vmem>>, vector<32x1xf32>
    %165 = vector.broadcast %164 : vector<32x1xf32> to vector<32x256xf32>
    %166 = arith.addf %163, %165 : vector<32x256xf32>
    %167 = arith.addf %166, %95 : vector<32x256xf32>
    %c0_128 = arith.constant 0 : index
    %c0_129 = arith.constant 0 : index
    %168 = vector.load %arg16[%c0_128, %c0_129] : memref<32x288xf32, #tpu.memory_space<vmem>>, vector<32x288xf32>
    %c0_130 = arith.constant 0 : index
    %c0_131 = arith.constant 0 : index
    %169 = vector.load %arg17[%c0_130, %c0_131] : memref<32x1xf32, #tpu.memory_space<vmem>>, vector<32x1xf32>
    %cst_132 = arith.constant 0.000000e+00 : f32
    %170 = vector.broadcast %cst_132 : f32 to vector<32x512xf32>
    %c0_133 = arith.constant 0 : index
    %c0_134 = arith.constant 0 : index
    %171 = vector.load %arg32[%c0_133, %c0_134] : memref<32x512xf32, #tpu.memory_space<vmem>>, vector<32x512xf32>
    tpu.vector_store %arg32[%c0_133, %c0_134], %170 {strides = array<i32>} : memref<32x512xf32, #tpu.memory_space<vmem>>, vector<32x512xf32>,
    %c0_135 = arith.constant 0 : index
    %c128_136 = arith.constant 128 : index
    %172 = vector.load %arg32[%c0_135, %c128_136] : memref<32x512xf32, #tpu.memory_space<vmem>>, vector<32x256xf32>
    tpu.vector_store %arg32[%c0_135, %c128_136], %167 {strides = array<i32>} : memref<32x512xf32, #tpu.memory_space<vmem>>, vector<32x256xf32>,
    %173 = tpu.iota {dimensions = array<i32: 1>} : vector<1x256xi32>
    %c15_i32 = arith.constant 15 : i32
    %174 = vector.broadcast %c15_i32 : i32 to vector<1x256xi32>
    %175 = arith.andi %173, %174 : vector<1x256xi32>
    %c0_137 = arith.constant 0 : index
    %c111 = arith.constant 111 : index
    %176 = vector.load %arg32[%c0_137, %c111] : memref<32x512xf32, #tpu.memory_space<vmem>>, vector<32x256xf32>
    %c1_i32_138 = arith.constant 1 : i32
    %177 = vector.broadcast %c1_i32_138 : i32 to vector<1x256xi32>
    %178 = arith.cmpi sge, %175, %177 : vector<1x256xi32>
    %cst_139 = arith.constant 0.000000e+00 : f32
    %179 = vector.shape_cast %178 : vector<1x256xi1> to vector<1x256xi1>
    %180 = vector.broadcast %179 : vector<1x256xi1> to vector<32x256xi1>
    %181 = vector.broadcast %cst_139 : f32 to vector<32x256xf32>
    %182 = arith.select %180, %176, %181 : vector<32x256xi1>, vector<32x256xf32>
    %c0_140 = arith.constant 0 : index
    %c0_141 = arith.constant 0 : index
    %183 = vector.load %arg33[%c0_140, %c0_141] : memref<288x256xf32, #tpu.memory_space<vmem>>, vector<32x256xf32>
    tpu.vector_store %arg33[%c0_140, %c0_141], %182 {strides = array<i32>} : memref<288x256xf32, #tpu.memory_space<vmem>>, vector<32x256xf32>,
    %c0_142 = arith.constant 0 : index
    %c112 = arith.constant 112 : index
    %184 = vector.load %arg32[%c0_142, %c112] : memref<32x512xf32, #tpu.memory_space<vmem>>, vector<32x256xf32>
    %c32_143 = arith.constant 32 : index
    %c0_144 = arith.constant 0 : index
    %185 = vector.load %arg33[%c32_143, %c0_144] : memref<288x256xf32, #tpu.memory_space<vmem>>, vector<32x256xf32>
    tpu.vector_store %arg33[%c32_143, %c0_144], %184 {strides = array<i32>} : memref<288x256xf32, #tpu.memory_space<vmem>>, vector<32x256xf32>,
    %c0_145 = arith.constant 0 : index
    %c113 = arith.constant 113 : index
    %186 = vector.load %arg32[%c0_145, %c113] : memref<32x512xf32, #tpu.memory_space<vmem>>, vector<32x256xf32>
    %c14_i32 = arith.constant 14 : i32
    %187 = vector.broadcast %c14_i32 : i32 to vector<1x256xi32>
    %188 = arith.cmpi sle, %175, %187 : vector<1x256xi32>
    %cst_146 = arith.constant 0.000000e+00 : f32
    %189 = vector.shape_cast %188 : vector<1x256xi1> to vector<1x256xi1>
    %190 = vector.broadcast %189 : vector<1x256xi1> to vector<32x256xi1>
    %191 = vector.broadcast %cst_146 : f32 to vector<32x256xf32>
    %192 = arith.select %190, %186, %191 : vector<32x256xi1>, vector<32x256xf32>
    %c64_147 = arith.constant 64 : index
    %c0_148 = arith.constant 0 : index
    %193 = vector.load %arg33[%c64_147, %c0_148] : memref<288x256xf32, #tpu.memory_space<vmem>>, vector<32x256xf32>
    tpu.vector_store %arg33[%c64_147, %c0_148], %192 {strides = array<i32>} : memref<288x256xf32, #tpu.memory_space<vmem>>, vector<32x256xf32>,
    %c0_149 = arith.constant 0 : index
    %c127_150 = arith.constant 127 : index
    %194 = vector.load %arg32[%c0_149, %c127_150] : memref<32x512xf32, #tpu.memory_space<vmem>>, vector<32x256xf32>
    %c1_i32_151 = arith.constant 1 : i32
    %195 = vector.broadcast %c1_i32_151 : i32 to vector<1x256xi32>
    %196 = arith.cmpi sge, %175, %195 : vector<1x256xi32>
    %cst_152 = arith.constant 0.000000e+00 : f32
    %197 = vector.shape_cast %196 : vector<1x256xi1> to vector<1x256xi1>
    %198 = vector.broadcast %197 : vector<1x256xi1> to vector<32x256xi1>
    %199 = vector.broadcast %cst_152 : f32 to vector<32x256xf32>
    %200 = arith.select %198, %194, %199 : vector<32x256xi1>, vector<32x256xf32>
    %c96_153 = arith.constant 96 : index
    %c0_154 = arith.constant 0 : index
    %201 = vector.load %arg33[%c96_153, %c0_154] : memref<288x256xf32, #tpu.memory_space<vmem>>, vector<32x256xf32>
    tpu.vector_store %arg33[%c96_153, %c0_154], %200 {strides = array<i32>} : memref<288x256xf32, #tpu.memory_space<vmem>>, vector<32x256xf32>,
    %c0_155 = arith.constant 0 : index
    %c128_156 = arith.constant 128 : index
    %202 = vector.load %arg32[%c0_155, %c128_156] : memref<32x512xf32, #tpu.memory_space<vmem>>, vector<32x256xf32>
    %c128_157 = arith.constant 128 : index
    %c0_158 = arith.constant 0 : index
    %203 = vector.load %arg33[%c128_157, %c0_158] : memref<288x256xf32, #tpu.memory_space<vmem>>, vector<32x256xf32>
    tpu.vector_store %arg33[%c128_157, %c0_158], %202 {strides = array<i32>} : memref<288x256xf32, #tpu.memory_space<vmem>>, vector<32x256xf32>,
    %c0_159 = arith.constant 0 : index
    %c129_160 = arith.constant 129 : index
    %204 = vector.load %arg32[%c0_159, %c129_160] : memref<32x512xf32, #tpu.memory_space<vmem>>, vector<32x256xf32>
    %c14_i32_161 = arith.constant 14 : i32
    %205 = vector.broadcast %c14_i32_161 : i32 to vector<1x256xi32>
    %206 = arith.cmpi sle, %175, %205 : vector<1x256xi32>
    %cst_162 = arith.constant 0.000000e+00 : f32
    %207 = vector.shape_cast %206 : vector<1x256xi1> to vector<1x256xi1>
    %208 = vector.broadcast %207 : vector<1x256xi1> to vector<32x256xi1>
    %209 = vector.broadcast %cst_162 : f32 to vector<32x256xf32>
    %210 = arith.select %208, %204, %209 : vector<32x256xi1>, vector<32x256xf32>
    %c160_163 = arith.constant 160 : index
    %c0_164 = arith.constant 0 : index
    %211 = vector.load %arg33[%c160_163, %c0_164] : memref<288x256xf32, #tpu.memory_space<vmem>>, vector<32x256xf32>
    tpu.vector_store %arg33[%c160_163, %c0_164], %210 {strides = array<i32>} : memref<288x256xf32, #tpu.memory_space<vmem>>, vector<32x256xf32>,
    %c0_165 = arith.constant 0 : index
    %c143 = arith.constant 143 : index
    %212 = vector.load %arg32[%c0_165, %c143] : memref<32x512xf32, #tpu.memory_space<vmem>>, vector<32x256xf32>
    %c1_i32_166 = arith.constant 1 : i32
    %213 = vector.broadcast %c1_i32_166 : i32 to vector<1x256xi32>
    %214 = arith.cmpi sge, %175, %213 : vector<1x256xi32>
    %cst_167 = arith.constant 0.000000e+00 : f32
    %215 = vector.shape_cast %214 : vector<1x256xi1> to vector<1x256xi1>
    %216 = vector.broadcast %215 : vector<1x256xi1> to vector<32x256xi1>
    %217 = vector.broadcast %cst_167 : f32 to vector<32x256xf32>
    %218 = arith.select %216, %212, %217 : vector<32x256xi1>, vector<32x256xf32>
    %c192_168 = arith.constant 192 : index
    %c0_169 = arith.constant 0 : index
    %219 = vector.load %arg33[%c192_168, %c0_169] : memref<288x256xf32, #tpu.memory_space<vmem>>, vector<32x256xf32>
    tpu.vector_store %arg33[%c192_168, %c0_169], %218 {strides = array<i32>} : memref<288x256xf32, #tpu.memory_space<vmem>>, vector<32x256xf32>,
    %c0_170 = arith.constant 0 : index
    %c144 = arith.constant 144 : index
    %220 = vector.load %arg32[%c0_170, %c144] : memref<32x512xf32, #tpu.memory_space<vmem>>, vector<32x256xf32>
    %c224_171 = arith.constant 224 : index
    %c0_172 = arith.constant 0 : index
    %221 = vector.load %arg33[%c224_171, %c0_172] : memref<288x256xf32, #tpu.memory_space<vmem>>, vector<32x256xf32>
    tpu.vector_store %arg33[%c224_171, %c0_172], %220 {strides = array<i32>} : memref<288x256xf32, #tpu.memory_space<vmem>>, vector<32x256xf32>,
    %c0_173 = arith.constant 0 : index
    %c145 = arith.constant 145 : index
    %222 = vector.load %arg32[%c0_173, %c145] : memref<32x512xf32, #tpu.memory_space<vmem>>, vector<32x256xf32>
    %c14_i32_174 = arith.constant 14 : i32
    %223 = vector.broadcast %c14_i32_174 : i32 to vector<1x256xi32>
    %224 = arith.cmpi sle, %175, %223 : vector<1x256xi32>
    %cst_175 = arith.constant 0.000000e+00 : f32
    %225 = vector.shape_cast %224 : vector<1x256xi1> to vector<1x256xi1>
    %226 = vector.broadcast %225 : vector<1x256xi1> to vector<32x256xi1>
    %227 = vector.broadcast %cst_175 : f32 to vector<32x256xf32>
    %228 = arith.select %226, %222, %227 : vector<32x256xi1>, vector<32x256xf32>
    %c256_176 = arith.constant 256 : index
    %c0_177 = arith.constant 0 : index
    %229 = vector.load %arg33[%c256_176, %c0_177] : memref<288x256xf32, #tpu.memory_space<vmem>>, vector<32x256xf32>
    tpu.vector_store %arg33[%c256_176, %c0_177], %228 {strides = array<i32>} : memref<288x256xf32, #tpu.memory_space<vmem>>, vector<32x256xf32>,
    %c0_178 = arith.constant 0 : index
    %c0_179 = arith.constant 0 : index
    %230 = vector.load %arg33[%c0_178, %c0_179] : memref<288x256xf32, #tpu.memory_space<vmem>>, vector<288x256xf32>
    %cst_180 = arith.constant dense<0.000000e+00> : vector<32x256xf32>
    %231 = tpu.matmul %168, %230, %cst_180 {dimension_numbers = #tpu.dot_dimension_numbers<[1], [0], [0], [1], [0, 0, 1, 1], [], []>} : vector<32x288xf32>, vector<288x256xf32>, vector<32x256xf32> -> vector<32x256xf32>
    %232 = vector.broadcast %169 : vector<32x1xf32> to vector<32x256xf32>
    %233 = arith.addf %231, %232 : vector<32x256xf32>
    %cst_181 = arith.constant dense<0.000000e+00> : vector<32xf32>
    %234 = vector.multi_reduction <add>, %233, %cst_181 [1] : vector<32x256xf32> to vector<32xf32>
    %235 = vector.shape_cast %234 : vector<32xf32> to vector<32x1xf32>
    %cst_182 = arith.constant 3.906250e-03 : f32
    %236 = vector.broadcast %cst_182 : f32 to vector<32x1xf32>
    %237 = arith.mulf %235, %236 : vector<32x1xf32>
    %c0_183 = arith.constant 0 : index
    %c0_184 = arith.constant 0 : index
    %238 = vector.load %arg18[%c0_183, %c0_184] : memref<8x32xf32, #tpu.memory_space<vmem>>, vector<8x32xf32>
    %cst_185 = arith.constant dense<0.000000e+00> : vector<8x1xf32>
    %239 = tpu.matmul %238, %237, %cst_185 {dimension_numbers = #tpu.dot_dimension_numbers<[1], [0], [0], [1], [0, 0, 1, 1], [], []>} : vector<8x32xf32>, vector<32x1xf32>, vector<8x1xf32> -> vector<8x1xf32>
    %c0_186 = arith.constant 0 : index
    %c0_187 = arith.constant 0 : index
    %240 = vector.load %arg19[%c0_186, %c0_187] : memref<8x1xf32, #tpu.memory_space<vmem>>, vector<8x1xf32>
    %241 = arith.addf %239, %240 : vector<8x1xf32>
    %cst_188 = arith.constant 0.000000e+00 : f32
    %242 = vector.broadcast %cst_188 : f32 to vector<8x1xf32>
    %243 = arith.maximumf %241, %242 : vector<8x1xf32>
    %c0_189 = arith.constant 0 : index
    %c0_190 = arith.constant 0 : index
    %244 = vector.load %arg20[%c0_189, %c0_190] : memref<32x8xf32, #tpu.memory_space<vmem>>, vector<32x8xf32>
    %cst_191 = arith.constant dense<0.000000e+00> : vector<32x1xf32>
    %245 = tpu.matmul %244, %243, %cst_191 {dimension_numbers = #tpu.dot_dimension_numbers<[1], [0], [0], [1], [0, 0, 1, 1], [], []>} : vector<32x8xf32>, vector<8x1xf32>, vector<32x1xf32> -> vector<32x1xf32>
    %c0_192 = arith.constant 0 : index
    %c0_193 = arith.constant 0 : index
    %246 = vector.load %arg21[%c0_192, %c0_193] : memref<32x1xf32, #tpu.memory_space<vmem>>, vector<32x1xf32>
    %247 = arith.addf %245, %246 : vector<32x1xf32>
    %248 = arith.negf %247 : vector<32x1xf32>
    %249 = math.exp %248 : vector<32x1xf32>
    %cst_194 = arith.constant 1.000000e+00 : f32
    %250 = vector.broadcast %cst_194 : f32 to vector<32x1xf32>
    %251 = arith.addf %250, %249 : vector<32x1xf32>
    %252 = arith.divf %250, %251 : vector<32x1xf32>
    %cst_195 = arith.constant dense<0.000000e+00> : vector<32xf32>
    %253 = vector.multi_reduction <add>, %161, %cst_195 [1] : vector<32x64xf32> to vector<32xf32>
    %254 = vector.shape_cast %253 : vector<32xf32> to vector<32x1xf32>
    %cst_196 = arith.constant 1.562500e-02 : f32
    %255 = vector.broadcast %cst_196 : f32 to vector<32x1xf32>
    %256 = arith.mulf %254, %255 : vector<32x1xf32>
    %c0_197 = arith.constant 0 : index
    %c0_198 = arith.constant 0 : index
    %257 = vector.load %arg22[%c0_197, %c0_198] : memref<8x32xf32, #tpu.memory_space<vmem>>, vector<8x32xf32>
    %cst_199 = arith.constant dense<0.000000e+00> : vector<8x1xf32>
    %258 = tpu.matmul %257, %256, %cst_199 {dimension_numbers = #tpu.dot_dimension_numbers<[1], [0], [0], [1], [0, 0, 1, 1], [], []>} : vector<8x32xf32>, vector<32x1xf32>, vector<8x1xf32> -> vector<8x1xf32>
    %c0_200 = arith.constant 0 : index
    %c0_201 = arith.constant 0 : index
    %259 = vector.load %arg23[%c0_200, %c0_201] : memref<8x1xf32, #tpu.memory_space<vmem>>, vector<8x1xf32>
    %260 = arith.addf %258, %259 : vector<8x1xf32>
    %cst_202 = arith.constant 0.000000e+00 : f32
    %261 = vector.broadcast %cst_202 : f32 to vector<8x1xf32>
    %262 = arith.maximumf %260, %261 : vector<8x1xf32>
    %c0_203 = arith.constant 0 : index
    %c0_204 = arith.constant 0 : index
    %263 = vector.load %arg24[%c0_203, %c0_204] : memref<32x8xf32, #tpu.memory_space<vmem>>, vector<32x8xf32>
    %cst_205 = arith.constant dense<0.000000e+00> : vector<32x1xf32>
    %264 = tpu.matmul %263, %262, %cst_205 {dimension_numbers = #tpu.dot_dimension_numbers<[1], [0], [0], [1], [0, 0, 1, 1], [], []>} : vector<32x8xf32>, vector<8x1xf32>, vector<32x1xf32> -> vector<32x1xf32>
    %c0_206 = arith.constant 0 : index
    %c0_207 = arith.constant 0 : index
    %265 = vector.load %arg25[%c0_206, %c0_207] : memref<32x1xf32, #tpu.memory_space<vmem>>, vector<32x1xf32>
    %266 = arith.addf %264, %265 : vector<32x1xf32>
    %267 = arith.negf %266 : vector<32x1xf32>
    %268 = math.exp %267 : vector<32x1xf32>
    %cst_208 = arith.constant 1.000000e+00 : f32
    %269 = vector.broadcast %cst_208 : f32 to vector<32x1xf32>
    %270 = arith.addf %269, %268 : vector<32x1xf32>
    %271 = arith.divf %269, %270 : vector<32x1xf32>
    %cst_209 = arith.constant dense<0.000000e+00> : vector<32xf32>
    %272 = vector.multi_reduction <add>, %87, %cst_209 [1] : vector<32x16xf32> to vector<32xf32>
    %273 = vector.shape_cast %272 : vector<32xf32> to vector<32x1xf32>
    %cst_210 = arith.constant 6.250000e-02 : f32
    %274 = vector.broadcast %cst_210 : f32 to vector<32x1xf32>
    %275 = arith.mulf %273, %274 : vector<32x1xf32>
    %c0_211 = arith.constant 0 : index
    %c0_212 = arith.constant 0 : index
    %276 = vector.load %arg26[%c0_211, %c0_212] : memref<8x32xf32, #tpu.memory_space<vmem>>, vector<8x32xf32>
    %cst_213 = arith.constant dense<0.000000e+00> : vector<8x1xf32>
    %277 = tpu.matmul %276, %275, %cst_213 {dimension_numbers = #tpu.dot_dimension_numbers<[1], [0], [0], [1], [0, 0, 1, 1], [], []>} : vector<8x32xf32>, vector<32x1xf32>, vector<8x1xf32> -> vector<8x1xf32>
    %c0_214 = arith.constant 0 : index
    %c0_215 = arith.constant 0 : index
    %278 = vector.load %arg27[%c0_214, %c0_215] : memref<8x1xf32, #tpu.memory_space<vmem>>, vector<8x1xf32>
    %279 = arith.addf %277, %278 : vector<8x1xf32>
    %cst_216 = arith.constant 0.000000e+00 : f32
    %280 = vector.broadcast %cst_216 : f32 to vector<8x1xf32>
    %281 = arith.maximumf %279, %280 : vector<8x1xf32>
    %c0_217 = arith.constant 0 : index
    %c0_218 = arith.constant 0 : index
    %282 = vector.load %arg28[%c0_217, %c0_218] : memref<32x8xf32, #tpu.memory_space<vmem>>, vector<32x8xf32>
    %cst_219 = arith.constant dense<0.000000e+00> : vector<32x1xf32>
    %283 = tpu.matmul %282, %281, %cst_219 {dimension_numbers = #tpu.dot_dimension_numbers<[1], [0], [0], [1], [0, 0, 1, 1], [], []>} : vector<32x8xf32>, vector<8x1xf32>, vector<32x1xf32> -> vector<32x1xf32>
    %c0_220 = arith.constant 0 : index
    %c0_221 = arith.constant 0 : index
    %284 = vector.load %arg29[%c0_220, %c0_221] : memref<32x1xf32, #tpu.memory_space<vmem>>, vector<32x1xf32>
    %285 = arith.addf %283, %284 : vector<32x1xf32>
    %286 = arith.negf %285 : vector<32x1xf32>
    %287 = math.exp %286 : vector<32x1xf32>
    %cst_222 = arith.constant 1.000000e+00 : f32
    %288 = vector.broadcast %cst_222 : f32 to vector<32x1xf32>
    %289 = arith.addf %288, %287 : vector<32x1xf32>
    %290 = arith.divf %288, %289 : vector<32x1xf32>
    %291 = arith.addf %271, %252 : vector<32x1xf32>
    %cst_223 = arith.constant 5.000000e-01 : f32
    %292 = vector.broadcast %cst_223 : f32 to vector<32x1xf32>
    %293 = arith.mulf %291, %292 : vector<32x1xf32>
    %294 = arith.addf %290, %293 : vector<32x1xf32>
    %cst_224 = arith.constant 5.000000e-01 : f32
    %295 = vector.broadcast %cst_224 : f32 to vector<32x1xf32>
    %296 = arith.mulf %294, %295 : vector<32x1xf32>
    %c0_225 = arith.constant 0 : index
    %c0_226 = arith.constant 0 : index
    %297 = vector.load %arg30[%c0_225, %c0_226] : memref<32x32xf32, #tpu.memory_space<vmem>>, vector<32x32xf32>
    %298 = vector.broadcast %296 : vector<32x1xf32> to vector<32x16xf32>
    %299 = arith.mulf %87, %298 : vector<32x16xf32>
    %cst_227 = arith.constant dense<0.000000e+00> : vector<32x16xf32>
    %300 = tpu.matmul %297, %299, %cst_227 {dimension_numbers = #tpu.dot_dimension_numbers<[1], [0], [0], [1], [0, 0, 1, 1], [], []>} : vector<32x32xf32>, vector<32x16xf32>, vector<32x16xf32> -> vector<32x16xf32>
    %cst_228 = arith.constant 0.000000e+00 : f32
    %301 = vector.broadcast %cst_228 : f32 to vector<32x16xf32>
    %302 = arith.maximumf %300, %301 : vector<32x16xf32>
    %c0_229 = arith.constant 0 : index
    %c0_230 = arith.constant 0 : index
    %c0_231 = arith.constant 0 : index
    %303 = vector.load %arg31[%c0_229, %c0_230, %c0_231] : memref<1x32x16xf32, #tpu.memory_space<vmem>>, vector<1x32x16xf32>
    %304 = vector.shape_cast %303 : vector<1x32x16xf32> to vector<32x16xf32>
    %305 = vector.shape_cast %302 : vector<32x16xf32> to vector<1x32x16xf32>
    tpu.vector_store %arg31[%c0_229, %c0_230, %c0_231], %305 {strides = array<i32>} : memref<1x32x16xf32, #tpu.memory_space<vmem>>, vector<1x32x16xf32>,
    return
  }
  func.func @transform_0(%arg0: i32) -> (i32, i32, i32) {
    %c0_i32 = arith.constant 0 : i32
    %c0_i32_0 = arith.constant 0 : i32
    %c0_i32_1 = arith.constant 0 : i32
    return %arg0, %c0_i32, %c0_i32_0 : i32, i32, i32
  }
  func.func @transform_1(%arg0: i32) -> (i32, i32, i32) {
    %c0_i32 = arith.constant 0 : i32
    %c0_i32_0 = arith.constant 0 : i32
    %c0_i32_1 = arith.constant 0 : i32
    return %arg0, %c0_i32, %c0_i32_0 : i32, i32, i32
  }
  func.func @transform_2(%arg0: i32) -> (i32, i32, i32) {
    %c0_i32 = arith.constant 0 : i32
    %c0_i32_0 = arith.constant 0 : i32
    %c0_i32_1 = arith.constant 0 : i32
    return %arg0, %c0_i32, %c0_i32_0 : i32, i32, i32
  }
  func.func @transform_3(%arg0: i32) -> (i32, i32) {
    %c0_i32 = arith.constant 0 : i32
    %c0_i32_0 = arith.constant 0 : i32
    %c0_i32_1 = arith.constant 0 : i32
    return %c0_i32, %c0_i32_0 : i32, i32
  }
  func.func @transform_4(%arg0: i32) -> (i32, i32) {
    %c0_i32 = arith.constant 0 : i32
    %c0_i32_0 = arith.constant 0 : i32
    %c0_i32_1 = arith.constant 0 : i32
    return %c0_i32, %c0_i32_0 : i32, i32
  }
  func.func @transform_5(%arg0: i32) -> (i32, i32) {
    %c0_i32 = arith.constant 0 : i32
    %c0_i32_0 = arith.constant 0 : i32
    %c0_i32_1 = arith.constant 0 : i32
    return %c0_i32, %c0_i32_0 : i32, i32
  }
  func.func @transform_6(%arg0: i32) -> (i32, i32) {
    %c0_i32 = arith.constant 0 : i32
    %c0_i32_0 = arith.constant 0 : i32
    %c0_i32_1 = arith.constant 0 : i32
    return %c0_i32, %c0_i32_0 : i32, i32
  }
  func.func @transform_7(%arg0: i32) -> (i32, i32) {
    %c0_i32 = arith.constant 0 : i32
    %c0_i32_0 = arith.constant 0 : i32
    %c0_i32_1 = arith.constant 0 : i32
    return %c0_i32, %c0_i32_0 : i32, i32
  }
  func.func @transform_8(%arg0: i32) -> (i32, i32) {
    %c0_i32 = arith.constant 0 : i32
    %c0_i32_0 = arith.constant 0 : i32
    %c0_i32_1 = arith.constant 0 : i32
    return %c0_i32, %c0_i32_0 : i32, i32
  }
  func.func @transform_9(%arg0: i32) -> (i32, i32) {
    %c0_i32 = arith.constant 0 : i32
    %c0_i32_0 = arith.constant 0 : i32
    %c0_i32_1 = arith.constant 0 : i32
    return %c0_i32, %c0_i32_0 : i32, i32
  }
  func.func @transform_10(%arg0: i32) -> (i32, i32) {
    %c0_i32 = arith.constant 0 : i32
    %c0_i32_0 = arith.constant 0 : i32
    %c0_i32_1 = arith.constant 0 : i32
    return %c0_i32, %c0_i32_0 : i32, i32
  }
  func.func @transform_11(%arg0: i32) -> (i32, i32) {
    %c0_i32 = arith.constant 0 : i32
    %c0_i32_0 = arith.constant 0 : i32
    %c0_i32_1 = arith.constant 0 : i32
    return %c0_i32, %c0_i32_0 : i32, i32
  }
  func.func @transform_12(%arg0: i32) -> (i32, i32) {
    %c0_i32 = arith.constant 0 : i32
    %c0_i32_0 = arith.constant 0 : i32
    %c0_i32_1 = arith.constant 0 : i32
    return %c0_i32, %c0_i32_0 : i32, i32
  }
  func.func @transform_13(%arg0: i32) -> (i32, i32) {
    %c0_i32 = arith.constant 0 : i32
    %c0_i32_0 = arith.constant 0 : i32
    %c0_i32_1 = arith.constant 0 : i32
    return %c0_i32, %c0_i32_0 : i32, i32
  }
  func.func @transform_14(%arg0: i32) -> (i32, i32) {
    %c0_i32 = arith.constant 0 : i32
    %c0_i32_0 = arith.constant 0 : i32
    %c0_i32_1 = arith.constant 0 : i32
    return %c0_i32, %c0_i32_0 : i32, i32
  }
  func.func @transform_15(%arg0: i32) -> (i32, i32) {
    %c0_i32 = arith.constant 0 : i32
    %c0_i32_0 = arith.constant 0 : i32
    %c0_i32_1 = arith.constant 0 : i32
    return %c0_i32, %c0_i32_0 : i32, i32
  }
  func.func @transform_16(%arg0: i32) -> (i32, i32) {
    %c0_i32 = arith.constant 0 : i32
    %c0_i32_0 = arith.constant 0 : i32
    %c0_i32_1 = arith.constant 0 : i32
    return %c0_i32, %c0_i32_0 : i32, i32
  }
  func.func @transform_17(%arg0: i32) -> (i32, i32) {
    %c0_i32 = arith.constant 0 : i32
    %c0_i32_0 = arith.constant 0 : i32
    %c0_i32_1 = arith.constant 0 : i32
    return %c0_i32, %c0_i32_0 : i32, i32
  }
  func.func @transform_18(%arg0: i32) -> (i32, i32) {
    %c0_i32 = arith.constant 0 : i32
    %c0_i32_0 = arith.constant 0 : i32
    %c0_i32_1 = arith.constant 0 : i32
    return %c0_i32, %c0_i32_0 : i32, i32
  }
  func.func @transform_19(%arg0: i32) -> (i32, i32) {
    %c0_i32 = arith.constant 0 : i32
    %c0_i32_0 = arith.constant 0 : i32
    %c0_i32_1 = arith.constant 0 : i32
    return %c0_i32, %c0_i32_0 : i32, i32
  }
  func.func @transform_20(%arg0: i32) -> (i32, i32) {
    %c0_i32 = arith.constant 0 : i32
    %c0_i32_0 = arith.constant 0 : i32
    %c0_i32_1 = arith.constant 0 : i32
    return %c0_i32, %c0_i32_0 : i32, i32
  }
  func.func @transform_21(%arg0: i32) -> (i32, i32) {
    %c0_i32 = arith.constant 0 : i32
    %c0_i32_0 = arith.constant 0 : i32
    %c0_i32_1 = arith.constant 0 : i32
    return %c0_i32, %c0_i32_0 : i32, i32
  }
  func.func @transform_22(%arg0: i32) -> (i32, i32) {
    %c0_i32 = arith.constant 0 : i32
    %c0_i32_0 = arith.constant 0 : i32
    %c0_i32_1 = arith.constant 0 : i32
    return %c0_i32, %c0_i32_0 : i32, i32
  }
  func.func @transform_23(%arg0: i32) -> (i32, i32) {
    %c0_i32 = arith.constant 0 : i32
    %c0_i32_0 = arith.constant 0 : i32
    %c0_i32_1 = arith.constant 0 : i32
    return %c0_i32, %c0_i32_0 : i32, i32
  }
  func.func @transform_24(%arg0: i32) -> (i32, i32) {
    %c0_i32 = arith.constant 0 : i32
    %c0_i32_0 = arith.constant 0 : i32
    %c0_i32_1 = arith.constant 0 : i32
    return %c0_i32, %c0_i32_0 : i32, i32
  }
  func.func @transform_25(%arg0: i32) -> (i32, i32) {
    %c0_i32 = arith.constant 0 : i32
    %c0_i32_0 = arith.constant 0 : i32
    %c0_i32_1 = arith.constant 0 : i32
    return %c0_i32, %c0_i32_0 : i32, i32
  }
  func.func @transform_26(%arg0: i32) -> (i32, i32) {
    %c0_i32 = arith.constant 0 : i32
    %c0_i32_0 = arith.constant 0 : i32
    %c0_i32_1 = arith.constant 0 : i32
    return %c0_i32, %c0_i32_0 : i32, i32
  }
  func.func @transform_27(%arg0: i32) -> (i32, i32) {
    %c0_i32 = arith.constant 0 : i32
    %c0_i32_0 = arith.constant 0 : i32
    %c0_i32_1 = arith.constant 0 : i32
    return %c0_i32, %c0_i32_0 : i32, i32
  }
  func.func @transform_28(%arg0: i32) -> (i32, i32) {
    %c0_i32 = arith.constant 0 : i32
    %c0_i32_0 = arith.constant 0 : i32
    %c0_i32_1 = arith.constant 0 : i32
    return %c0_i32, %c0_i32_0 : i32, i32
  }
  func.func @transform_29(%arg0: i32) -> (i32, i32) {
    %c0_i32 = arith.constant 0 : i32
    %c0_i32_0 = arith.constant 0 : i32
    %c0_i32_1 = arith.constant 0 : i32
    return %c0_i32, %c0_i32_0 : i32, i32
  }
  func.func @transform_30(%arg0: i32) -> (i32, i32, i32) {
    %c0_i32 = arith.constant 0 : i32
    %c0_i32_0 = arith.constant 0 : i32
    %c0_i32_1 = arith.constant 0 : i32
    return %arg0, %c0_i32, %c0_i32_0 : i32, i32, i32
  }
}

</mosaic_0001>

<llo_original>
// kernel: mham_forward.1
$region0: #{mham_forward.1}
  #allocation0 [shape = 'u32[]', space=smem, size = 0x4, offset = 0x4, fixed_abs, tag = 'smem constant byte address 0x4 - core index']
  #allocation1 [shape = 'u32[72,128]{1,0:T(1,128)}', space=vmem, size = 0x9000, scoped, tag = 'internal scratch']
  #allocation2 [shape = 'f32[32,512]{1,0:T(8,128)}', space=vmem, size = 0x10000, scoped, tag = 'scratch operand']
  #allocation3 [shape = 'f32[288,256]{1,0:T(8,128)}', space=vmem, size = 0x48000, scoped, tag = 'scratch operand']
  %s0 = inlined_call_operand.smem [shape: u32[31], index: -1, kind: input, shape index: {}]
  %s1 = sld [smem:[%s0]]
  %s2 = scalar_lea.smem %s0, 1
  %s3 = sld [smem:[%s2]]
  %s4 = scalar_lea.smem %s0, 2
  %s5 = sld [smem:[%s4]]
  %s6 = scalar_lea.smem %s0, 3
  %s7 = sld [smem:[%s6]]
  %s8 = scalar_lea.smem %s0, 4
  %s9 = sld [smem:[%s8]]
  %s10 = scalar_lea.smem %s0, 5
  %s11 = sld [smem:[%s10]]
  %s12 = scalar_lea.smem %s0, 6
  %s13 = sld [smem:[%s12]]
  %s14 = scalar_lea.smem %s0, 7
  %s15 = sld [smem:[%s14]]
  %s16 = scalar_lea.smem %s0, 8
  %s17 = sld [smem:[%s16]]
  %s18 = scalar_lea.smem %s0, 9
  %s19 = sld [smem:[%s18]]
  %s20 = scalar_lea.smem %s0, 10
  %s21 = sld [smem:[%s20]]
  %s22 = scalar_lea.smem %s0, 11
  %s23 = sld [smem:[%s22]]
  %s24 = scalar_lea.smem %s0, 12
  %s25 = sld [smem:[%s24]]
  %s26 = scalar_lea.smem %s0, 13
  %s27 = sld [smem:[%s26]]
  %s28 = scalar_lea.smem %s0, 14
  %s29 = sld [smem:[%s28]]
  %s30 = scalar_lea.smem %s0, 15
  %s31 = sld [smem:[%s30]]
  %s32 = scalar_lea.smem %s0, 16
  %s33 = sld [smem:[%s32]]
  %s34 = scalar_lea.smem %s0, 17
  %s35 = sld [smem:[%s34]]
  %s36 = scalar_lea.smem %s0, 18
  %s37 = sld [smem:[%s36]]
  %s38 = scalar_lea.smem %s0, 19
  %s39 = sld [smem:[%s38]]
  %s40 = scalar_lea.smem %s0, 20
  %s41 = sld [smem:[%s40]]
  %s42 = scalar_lea.smem %s0, 21
  %s43 = sld [smem:[%s42]]
  %s44 = scalar_lea.smem %s0, 22
  %s45 = sld [smem:[%s44]]
  %s46 = scalar_lea.smem %s0, 23
  %s47 = sld [smem:[%s46]]
  %s48 = scalar_lea.smem %s0, 24
  %s49 = sld [smem:[%s48]]
  %s50 = scalar_lea.smem %s0, 25
  %s51 = sld [smem:[%s50]]
  %s52 = scalar_lea.smem %s0, 26
  %s53 = sld [smem:[%s52]]
  %s54 = scalar_lea.smem %s0, 27
  %s55 = sld [smem:[%s54]]
  %s56 = scalar_lea.smem %s0, 28
  %s57 = sld [smem:[%s56]]
  %s58 = scalar_lea.smem %s0, 29
  %s59 = sld [smem:[%s58]]
  %s60 = scalar_lea.smem %s0, 30
  %s61 = sld [smem:[%s60]]
  %s62 = sld [smem:[#allocation0]]
  $region153: #{mham_forward.1} parent=0
    _
  %s64 = ssub.s32 1, %s62
  %s65 = scalar_select 0, %s64, %s62
  loop: start=0, step=1, limit=4
  $region2: #{mham_forward.1} parent=0 // loop_pre_header
    _
  $region3: #{mham_forward.1} parent=0 // loop_header
    %s67 = sphi 0, %s71
    %p68 = scmp.ge.s32.totalorder %s67, 4
    %s77 = sphi 0, %s79
    %s80 = sphi 0, %s77
    %s81 = sphi 0, %s80
    %s97 = sphi 0, %s81
    %s103 = sphi 0, %s105
    %s106 = sphi 0, %s103
    %s107 = sphi 0, %s106
    %s123 = sphi 0, %s107
    %s129 = sphi 0, %s131
    %s132 = sphi 0, %s129
    %s133 = sphi 0, %s132
    %s149 = sphi 0, %s133
    %s153 = sphi 0, %s153
    %s155 = sphi 0, %s153
    %s156 = sphi 0, %s155
    %s170 = sphi 0, %s156
    %s174 = sphi 0, %s174
    %s176 = sphi 0, %s174
    %s177 = sphi 0, %s176
    %s191 = sphi 0, %s177
    %s195 = sphi 0, %s195
    %s197 = sphi 0, %s195
    %s198 = sphi 0, %s197
    %s212 = sphi 0, %s198
    %s216 = sphi 0, %s216
    %s218 = sphi 0, %s216
    %s219 = sphi 0, %s218
    %s233 = sphi 0, %s219
    %s237 = sphi 0, %s237
    %s239 = sphi 0, %s237
    %s240 = sphi 0, %s239
    %s254 = sphi 0, %s240
    %s258 = sphi 0, %s258
    %s260 = sphi 0, %s258
    %s261 = sphi 0, %s260
    %s275 = sphi 0, %s261
    %s279 = sphi 0, %s279
    %s281 = sphi 0, %s279
    %s282 = sphi 0, %s281
    %s296 = sphi 0, %s282
    %s300 = sphi 0, %s300
    %s302 = sphi 0, %s300
    %s303 = sphi 0, %s302
    %s317 = sphi 0, %s303
    %s321 = sphi 0, %s321
    %s323 = sphi 0, %s321
    %s324 = sphi 0, %s323
    %s338 = sphi 0, %s324
    %s342 = sphi 0, %s342
    %s344 = sphi 0, %s342
    %s345 = sphi 0, %s344
    %s359 = sphi 0, %s345
    %s363 = sphi 0, %s363
    %s365 = sphi 0, %s363
    %s366 = sphi 0, %s365
    %s380 = sphi 0, %s366
    %s384 = sphi 0, %s384
    %s386 = sphi 0, %s384
    %s387 = sphi 0, %s386
    %s401 = sphi 0, %s387
    %s405 = sphi 0, %s405
    %s407 = sphi 0, %s405
    %s408 = sphi 0, %s407
    %s422 = sphi 0, %s408
    %s426 = sphi 0, %s426
    %s428 = sphi 0, %s426
    %s429 = sphi 0, %s428
    %s443 = sphi 0, %s429
    %s447 = sphi 0, %s447
    %s449 = sphi 0, %s447
    %s450 = sphi 0, %s449
    %s464 = sphi 0, %s450
    %s468 = sphi 0, %s468
    %s470 = sphi 0, %s468
    %s471 = sphi 0, %s470
    %s485 = sphi 0, %s471
    %s489 = sphi 0, %s489
    %s491 = sphi 0, %s489
    %s492 = sphi 0, %s491
    %s506 = sphi 0, %s492
    %s510 = sphi 0, %s510
    %s512 = sphi 0, %s510
    %s513 = sphi 0, %s512
    %s527 = sphi 0, %s513
    %s531 = sphi 0, %s531
    %s533 = sphi 0, %s531
    %s534 = sphi 0, %s533
    %s548 = sphi 0, %s534
    %s552 = sphi 0, %s552
    %s554 = sphi 0, %s552
    %s555 = sphi 0, %s554
    %s569 = sphi 0, %s555
    %s573 = sphi 0, %s573
    %s575 = sphi 0, %s573
    %s576 = sphi 0, %s575
    %s590 = sphi 0, %s576
    %s594 = sphi 0, %s594
    %s596 = sphi 0, %s594
    %s597 = sphi 0, %s596
    %s611 = sphi 0, %s597
    %s615 = sphi 0, %s615
    %s617 = sphi 0, %s615
    %s618 = sphi 0, %s617
    %s632 = sphi 0, %s618
    %s636 = sphi 0, %s636
    %s638 = sphi 0, %s636
    %s639 = sphi 0, %s638
    %s653 = sphi 0, %s639
    %s657 = sphi 0, %s657
    %s659 = sphi 0, %s657
    %s660 = sphi 0, %s659
    %s674 = sphi 0, %s660
    %s678 = sphi 0, %s678
    %s680 = sphi 0, %s678
    %s681 = sphi 0, %s680
    %s695 = sphi 0, %s681
    %s699 = sphi 0, %s699
    %s701 = sphi 0, %s699
    %s702 = sphi 0, %s701
    %s716 = sphi 0, %s702
    %s722 = sphi 0, %s724
    %s725 = sphi 0, %s722
    %s726 = sphi 0, %s725
    %s742 = sphi 0, %s726
  $region4: #{mham_forward.1} parent=0 // loop_header_branch
    %70 = sbr.rel (%p68) target = $region8
  $region5: #{mham_forward.1} parent=0 // loop_body
    %s72 = ssub.s32 %s67, 1
    %s73 = ssub.s32 %s67, 2
    %s74 = sadd.s32 %s67, 1
    %s75 = ssub.s32 %s67, %s74
    %p76 = scmp.eq.s32.totalorder %s75, 0
    %s78 = sadd.s32 %s77, 1
    %s79 = scalar_select %p76, %s77, %s78
    %p82 = pneg %p76
    %p83 = scmp.eq.s32.totalorder %s67, 1
    %p84 = por %p82, %p83
    %p85 = scmp.ne.s32.totalorder %s77, %s80
    %p86 = scmp.eq.s32.totalorder %s67, 0
    %p87 = por %p85, %p86
    %p88 = scmp.ne.s32.totalorder %s77, %s80
    %p89 = scmp.eq.s32.totalorder %s72, 1
    %p90 = por %p88, %p89
    %p91 = scmp.ne.s32.totalorder %s80, %s81
    %p92 = scmp.eq.s32.totalorder %s72, 0
    %p93 = por %p91, %p92
    %p94 = scmp.ne.s32.totalorder %s80, %s81
    %p95 = scmp.eq.s32.totalorder %s73, 1
    %p96 = por %p94, %p95
    %p98 = scmp.ne.s32.totalorder %s81, %s97
    %p99 = scmp.eq.s32.totalorder %s73, 0
    %p100 = por %p98, %p99
    %s101 = ssub.s32 %s67, %s74
    %p102 = scmp.eq.s32.totalorder %s101, 0
    %s104 = sadd.s32 %s103, 1
    %s105 = scalar_select %p102, %s103, %s104
    %p108 = pneg %p102
    %p109 = scmp.eq.s32.totalorder %s67, 1
    %p110 = por %p108, %p109
    %p111 = scmp.ne.s32.totalorder %s103, %s106
    %p112 = scmp.eq.s32.totalorder %s67, 0
    %p113 = por %p111, %p112
    %p114 = scmp.ne.s32.totalorder %s103, %s106
    %p115 = scmp.eq.s32.totalorder %s72, 1
    %p116 = por %p114, %p115
    %p117 = scmp.ne.s32.totalorder %s106, %s107
    %p118 = scmp.eq.s32.totalorder %s72, 0
    %p119 = por %p117, %p118
    %p120 = scmp.ne.s32.totalorder %s106, %s107
    %p121 = scmp.eq.s32.totalorder %s73, 1
    %p122 = por %p120, %p121
    %p124 = scmp.ne.s32.totalorder %s107, %s123
    %p125 = scmp.eq.s32.totalorder %s73, 0
    %p126 = por %p124, %p125
    %s127 = ssub.s32 %s67, %s74
    %p128 = scmp.eq.s32.totalorder %s127, 0
    %s130 = sadd.s32 %s129, 1
    %s131 = scalar_select %p128, %s129, %s130
    %p134 = pneg %p128
    %p135 = scmp.eq.s32.totalorder %s67, 1
    %p136 = por %p134, %p135
    %p137 = scmp.ne.s32.totalorder %s129, %s132
    %p138 = scmp.eq.s32.totalorder %s67, 0
    %p139 = por %p137, %p138
    %p140 = scmp.ne.s32.totalorder %s129, %s132
    %p141 = scmp.eq.s32.totalorder %s72, 1
    %p142 = por %p140, %p141
    %p143 = scmp.ne.s32.totalorder %s132, %s133
    %p144 = scmp.eq.s32.totalorder %s72, 0
    %p145 = por %p143, %p144
    %p146 = scmp.ne.s32.totalorder %s132, %s133
    %p147 = scmp.eq.s32.totalorder %s73, 1
    %p148 = por %p146, %p147
    %p150 = scmp.ne.s32.totalorder %s133, %s149
    %p151 = scmp.eq.s32.totalorder %s73, 0
    %p152 = por %p150, %p151
    %s154 = sadd.s32 %s153, 1
    %p157 = scmp.eq.s32.totalorder %s67, 1
    %p158 = scmp.ne.s32.totalorder %s153, %s155
    %p159 = scmp.eq.s32.totalorder %s67, 0
    %p160 = por %p158, %p159
    %p161 = scmp.ne.s32.totalorder %s153, %s155
    %p162 = scmp.eq.s32.totalorder %s72, 1
    %p163 = por %p161, %p162
    %p164 = scmp.ne.s32.totalorder %s155, %s156
    %p165 = scmp.eq.s32.totalorder %s72, 0
    %p166 = por %p164, %p165
    %p167 = scmp.ne.s32.totalorder %s155, %s156
    %p168 = scmp.eq.s32.totalorder %s73, 1
    %p169 = por %p167, %p168
    %p171 = scmp.ne.s32.totalorder %s156, %s170
    %p172 = scmp.eq.s32.totalorder %s73, 0
    %p173 = por %p171, %p172
    %s175 = sadd.s32 %s174, 1
    %p178 = scmp.eq.s32.totalorder %s67, 1
    %p179 = scmp.ne.s32.totalorder %s174, %s176
    %p180 = scmp.eq.s32.totalorder %s67, 0
    %p181 = por %p179, %p180
    %p182 = scmp.ne.s32.totalorder %s174, %s176
    %p183 = scmp.eq.s32.totalorder %s72, 1
    %p184 = por %p182, %p183
    %p185 = scmp.ne.s32.totalorder %s176, %s177
    %p186 = scmp.eq.s32.totalorder %s72, 0
    %p187 = por %p185, %p186
    %p188 = scmp.ne.s32.totalorder %s176, %s177
    %p189 = scmp.eq.s32.totalorder %s73, 1
    %p190 = por %p188, %p189
    %p192 = scmp.ne.s32.totalorder %s177, %s191
    %p193 = scmp.eq.s32.totalorder %s73, 0
    %p194 = por %p192, %p193
    %s196 = sadd.s32 %s195, 1
    %p199 = scmp.eq.s32.totalorder %s67, 1
    %p200 = scmp.ne.s32.totalorder %s195, %s197
    %p201 = scmp.eq.s32.totalorder %s67, 0
    %p202 = por %p200, %p201
    %p203 = scmp.ne.s32.totalorder %s195, %s197
    %p204 = scmp.eq.s32.totalorder %s72, 1
    %p205 = por %p203, %p204
    %p206 = scmp.ne.s32.totalorder %s197, %s198
    %p207 = scmp.eq.s32.totalorder %s72, 0
    %p208 = por %p206, %p207
    %p209 = scmp.ne.s32.totalorder %s197, %s198
    %p210 = scmp.eq.s32.totalorder %s73, 1
    %p211 = por %p209, %p210
    %p213 = scmp.ne.s32.totalorder %s198, %s212
    %p214 = scmp.eq.s32.totalorder %s73, 0
    %p215 = por %p213, %p214
    %s217 = sadd.s32 %s216, 1
    %p220 = scmp.eq.s32.totalorder %s67, 1
    %p221 = scmp.ne.s32.totalorder %s216, %s218
    %p222 = scmp.eq.s32.totalorder %s67, 0
    %p223 = por %p221, %p222
    %p224 = scmp.ne.s32.totalorder %s216, %s218
    %p225 = scmp.eq.s32.totalorder %s72, 1
    %p226 = por %p224, %p225
    %p227 = scmp.ne.s32.totalorder %s218, %s219
    %p228 = scmp.eq.s32.totalorder %s72, 0
    %p229 = por %p227, %p228
    %p230 = scmp.ne.s32.totalorder %s218, %s219
    %p231 = scmp.eq.s32.totalorder %s73, 1
    %p232 = por %p230, %p231
    %p234 = scmp.ne.s32.totalorder %s219, %s233
    %p235 = scmp.eq.s32.totalorder %s73, 0
    %p236 = por %p234, %p235
    %s238 = sadd.s32 %s237, 1
    %p241 = scmp.eq.s32.totalorder %s67, 1
    %p242 = scmp.ne.s32.totalorder %s237, %s239
    %p243 = scmp.eq.s32.totalorder %s67, 0
    %p244 = por %p242, %p243
    %p245 = scmp.ne.s32.totalorder %s237, %s239
    %p246 = scmp.eq.s32.totalorder %s72, 1
    %p247 = por %p245, %p246
    %p248 = scmp.ne.s32.totalorder %s239, %s240
    %p249 = scmp.eq.s32.totalorder %s72, 0
    %p250 = por %p248, %p249
    %p251 = scmp.ne.s32.totalorder %s239, %s240
    %p252 = scmp.eq.s32.totalorder %s73, 1
    %p253 = por %p251, %p252
    %p255 = scmp.ne.s32.totalorder %s240, %s254
    %p256 = scmp.eq.s32.totalorder %s73, 0
    %p257 = por %p255, %p256
    %s259 = sadd.s32 %s258, 1
    %p262 = scmp.eq.s32.totalorder %s67, 1
    %p263 = scmp.ne.s32.totalorder %s258, %s260
    %p264 = scmp.eq.s32.totalorder %s67, 0
    %p265 = por %p263, %p264
    %p266 = scmp.ne.s32.totalorder %s258, %s260
    %p267 = scmp.eq.s32.totalorder %s72, 1
    %p268 = por %p266, %p267
    %p269 = scmp.ne.s32.totalorder %s260, %s261
    %p270 = scmp.eq.s32.totalorder %s72, 0
    %p271 = por %p269, %p270
    %p272 = scmp.ne.s32.totalorder %s260, %s261
    %p273 = scmp.eq.s32.totalorder %s73, 1
    %p274 = por %p272, %p273
    %p276 = scmp.ne.s32.totalorder %s261, %s275
    %p277 = scmp.eq.s32.totalorder %s73, 0
    %p278 = por %p276, %p277
    %s280 = sadd.s32 %s279, 1
    %p283 = scmp.eq.s32.totalorder %s67, 1
    %p284 = scmp.ne.s32.totalorder %s279, %s281
    %p285 = scmp.eq.s32.totalorder %s67, 0
    %p286 = por %p284, %p285
    %p287 = scmp.ne.s32.totalorder %s279, %s281
    %p288 = scmp.eq.s32.totalorder %s72, 1
    %p289 = por %p287, %p288
    %p290 = scmp.ne.s32.totalorder %s281, %s282
    %p291 = scmp.eq.s32.totalorder %s72, 0
    %p292 = por %p290, %p291
    %p293 = scmp.ne.s32.totalorder %s281, %s282
    %p294 = scmp.eq.s32.totalorder %s73, 1
    %p295 = por %p293, %p294
    %p297 = scmp.ne.s32.totalorder %s282, %s296
    %p298 = scmp.eq.s32.totalorder %s73, 0
    %p299 = por %p297, %p298
    %s301 = sadd.s32 %s300, 1
    %p304 = scmp.eq.s32.totalorder %s67, 1
    %p305 = scmp.ne.s32.totalorder %s300, %s302
    %p306 = scmp.eq.s32.totalorder %s67, 0
    %p307 = por %p305, %p306
    %p308 = scmp.ne.s32.totalorder %s300, %s302
    %p309 = scmp.eq.s32.totalorder %s72, 1
    %p310 = por %p308, %p309
    %p311 = scmp.ne.s32.totalorder %s302, %s303
    %p312 = scmp.eq.s32.totalorder %s72, 0
    %p313 = por %p311, %p312
    %p314 = scmp.ne.s32.totalorder %s302, %s303
    %p315 = scmp.eq.s32.totalorder %s73, 1
    %p316 = por %p314, %p315
    %p318 = scmp.ne.s32.totalorder %s303, %s317
    %p319 = scmp.eq.s32.totalorder %s73, 0
    %p320 = por %p318, %p319
    %s322 = sadd.s32 %s321, 1
    %p325 = scmp.eq.s32.totalorder %s67, 1
    %p326 = scmp.ne.s32.totalorder %s321, %s323
    %p327 = scmp.eq.s32.totalorder %s67, 0
    %p328 = por %p326, %p327
    %p329 = scmp.ne.s32.totalorder %s321, %s323
    %p330 = scmp.eq.s32.totalorder %s72, 1
    %p331 = por %p329, %p330
    %p332 = scmp.ne.s32.totalorder %s323, %s324
    %p333 = scmp.eq.s32.totalorder %s72, 0
    %p334 = por %p332, %p333
    %p335 = scmp.ne.s32.totalorder %s323, %s324
    %p336 = scmp.eq.s32.totalorder %s73, 1
    %p337 = por %p335, %p336
    %p339 = scmp.ne.s32.totalorder %s324, %s338
    %p340 = scmp.eq.s32.totalorder %s73, 0
    %p341 = por %p339, %p340
    %s343 = sadd.s32 %s342, 1
    %p346 = scmp.eq.s32.totalorder %s67, 1
    %p347 = scmp.ne.s32.totalorder %s342, %s344
    %p348 = scmp.eq.s32.totalorder %s67, 0
    %p349 = por %p347, %p348
    %p350 = scmp.ne.s32.totalorder %s342, %s344
    %p351 = scmp.eq.s32.totalorder %s72, 1
    %p352 = por %p350, %p351
    %p353 = scmp.ne.s32.totalorder %s344, %s345
    %p354 = scmp.eq.s32.totalorder %s72, 0
    %p355 = por %p353, %p354
    %p356 = scmp.ne.s32.totalorder %s344, %s345
    %p357 = scmp.eq.s32.totalorder %s73, 1
    %p358 = por %p356, %p357
    %p360 = scmp.ne.s32.totalorder %s345, %s359
    %p361 = scmp.eq.s32.totalorder %s73, 0
    %p362 = por %p360, %p361
    %s364 = sadd.s32 %s363, 1
    %p367 = scmp.eq.s32.totalorder %s67, 1
    %p368 = scmp.ne.s32.totalorder %s363, %s365
    %p369 = scmp.eq.s32.totalorder %s67, 0
    %p370 = por %p368, %p369
    %p371 = scmp.ne.s32.totalorder %s363, %s365
    %p372 = scmp.eq.s32.totalorder %s72, 1
    %p373 = por %p371, %p372
    %p374 = scmp.ne.s32.totalorder %s365, %s366
    %p375 = scmp.eq.s32.totalorder %s72, 0
    %p376 = por %p374, %p375
    %p377 = scmp.ne.s32.totalorder %s365, %s366
    %p378 = scmp.eq.s32.totalorder %s73, 1
    %p379 = por %p377, %p378
    %p381 = scmp.ne.s32.totalorder %s366, %s380
    %p382 = scmp.eq.s32.totalorder %s73, 0
    %p383 = por %p381, %p382
    %s385 = sadd.s32 %s384, 1
    %p388 = scmp.eq.s32.totalorder %s67, 1
    %p389 = scmp.ne.s32.totalorder %s384, %s386
    %p390 = scmp.eq.s32.totalorder %s67, 0
    %p391 = por %p389, %p390
    %p392 = scmp.ne.s32.totalorder %s384, %s386
    %p393 = scmp.eq.s32.totalorder %s72, 1
    %p394 = por %p392, %p393
    %p395 = scmp.ne.s32.totalorder %s386, %s387
    %p396 = scmp.eq.s32.totalorder %s72, 0
    %p397 = por %p395, %p396
    %p398 = scmp.ne.s32.totalorder %s386, %s387
    %p399 = scmp.eq.s32.totalorder %s73, 1
    %p400 = por %p398, %p399
    %p402 = scmp.ne.s32.totalorder %s387, %s401
    %p403 = scmp.eq.s32.totalorder %s73, 0
    %p404 = por %p402, %p403
    %s406 = sadd.s32 %s405, 1
    %p409 = scmp.eq.s32.totalorder %s67, 1
    %p410 = scmp.ne.s32.totalorder %s405, %s407
    %p411 = scmp.eq.s32.totalorder %s67, 0
    %p412 = por %p410, %p411
    %p413 = scmp.ne.s32.totalorder %s405, %s407
    %p414 = scmp.eq.s32.totalorder %s72, 1
    %p415 = por %p413, %p414
    %p416 = scmp.ne.s32.totalorder %s407, %s408
    %p417 = scmp.eq.s32.totalorder %s72, 0
    %p418 = por %p416, %p417
    %p419 = scmp.ne.s32.totalorder %s407, %s408
    %p420 = scmp.eq.s32.totalorder %s73, 1
    %p421 = por %p419, %p420
    %p423 = scmp.ne.s32.totalorder %s408, %s422
    %p424 = scmp.eq.s32.totalorder %s73, 0
    %p425 = por %p423, %p424
    %s427 = sadd.s32 %s426, 1
    %p430 = scmp.eq.s32.totalorder %s67, 1
    %p431 = scmp.ne.s32.totalorder %s426, %s428
    %p432 = scmp.eq.s32.totalorder %s67, 0
    %p433 = por %p431, %p432
    %p434 = scmp.ne.s32.totalorder %s426, %s428
    %p435 = scmp.eq.s32.totalorder %s72, 1
    %p436 = por %p434, %p435
    %p437 = scmp.ne.s32.totalorder %s428, %s429
    %p438 = scmp.eq.s32.totalorder %s72, 0
    %p439 = por %p437, %p438
    %p440 = scmp.ne.s32.totalorder %s428, %s429
    %p441 = scmp.eq.s32.totalorder %s73, 1
    %p442 = por %p440, %p441
    %p444 = scmp.ne.s32.totalorder %s429, %s443
    %p445 = scmp.eq.s32.totalorder %s73, 0
    %p446 = por %p444, %p445
    %s448 = sadd.s32 %s447, 1
    %p451 = scmp.eq.s32.totalorder %s67, 1
    %p452 = scmp.ne.s32.totalorder %s447, %s449
    %p453 = scmp.eq.s32.totalorder %s67, 0
    %p454 = por %p452, %p453
    %p455 = scmp.ne.s32.totalorder %s447, %s449
    %p456 = scmp.eq.s32.totalorder %s72, 1
    %p457 = por %p455, %p456
    %p458 = scmp.ne.s32.totalorder %s449, %s450
    %p459 = scmp.eq.s32.totalorder %s72, 0
    %p460 = por %p458, %p459
    %p461 = scmp.ne.s32.totalorder %s449, %s450
    %p462 = scmp.eq.s32.totalorder %s73, 1
    %p463 = por %p461, %p462
    %p465 = scmp.ne.s32.totalorder %s450, %s464
    %p466 = scmp.eq.s32.totalorder %s73, 0
    %p467 = por %p465, %p466
    %s469 = sadd.s32 %s468, 1
    %p472 = scmp.eq.s32.totalorder %s67, 1
    %p473 = scmp.ne.s32.totalorder %s468, %s470
    %p474 = scmp.eq.s32.totalorder %s67, 0
    %p475 = por %p473, %p474
    %p476 = scmp.ne.s32.totalorder %s468, %s470
    %p477 = scmp.eq.s32.totalorder %s72, 1
    %p478 = por %p476, %p477
    %p479 = scmp.ne.s32.totalorder %s470, %s471
    %p480 = scmp.eq.s32.totalorder %s72, 0
    %p481 = por %p479, %p480
    %p482 = scmp.ne.s32.totalorder %s470, %s471
    %p483 = scmp.eq.s32.totalorder %s73, 1
    %p484 = por %p482, %p483
    %p486 = scmp.ne.s32.totalorder %s471, %s485
    %p487 = scmp.eq.s32.totalorder %s73, 0
    %p488 = por %p486, %p487
    %s490 = sadd.s32 %s489, 1
    %p493 = scmp.eq.s32.totalorder %s67, 1
    %p494 = scmp.ne.s32.totalorder %s489, %s491
    %p495 = scmp.eq.s32.totalorder %s67, 0
    %p496 = por %p494, %p495
    %p497 = scmp.ne.s32.totalorder %s489, %s491
    %p498 = scmp.eq.s32.totalorder %s72, 1
    %p499 = por %p497, %p498
    %p500 = scmp.ne.s32.totalorder %s491, %s492
    %p501 = scmp.eq.s32.totalorder %s72, 0
    %p502 = por %p500, %p501
    %p503 = scmp.ne.s32.totalorder %s491, %s492
    %p504 = scmp.eq.s32.totalorder %s73, 1
    %p505 = por %p503, %p504
    %p507 = scmp.ne.s32.totalorder %s492, %s506
    %p508 = scmp.eq.s32.totalorder %s73, 0
    %p509 = por %p507, %p508
    %s511 = sadd.s32 %s510, 1
    %p514 = scmp.eq.s32.totalorder %s67, 1
    %p515 = scmp.ne.s32.totalorder %s510, %s512
    %p516 = scmp.eq.s32.totalorder %s67, 0
    %p517 = por %p515, %p516
    %p518 = scmp.ne.s32.totalorder %s510, %s512
    %p519 = scmp.eq.s32.totalorder %s72, 1
    %p520 = por %p518, %p519
    %p521 = scmp.ne.s32.totalorder %s512, %s513
    %p522 = scmp.eq.s32.totalorder %s72, 0
    %p523 = por %p521, %p522
    %p524 = scmp.ne.s32.totalorder %s512, %s513
    %p525 = scmp.eq.s32.totalorder %s73, 1
    %p526 = por %p524, %p525
    %p528 = scmp.ne.s32.totalorder %s513, %s527
    %p529 = scmp.eq.s32.totalorder %s73, 0
    %p530 = por %p528, %p529
    %s532 = sadd.s32 %s531, 1
    %p535 = scmp.eq.s32.totalorder %s67, 1
    %p536 = scmp.ne.s32.totalorder %s531, %s533
    %p537 = scmp.eq.s32.totalorder %s67, 0
    %p538 = por %p536, %p537
    %p539 = scmp.ne.s32.totalorder %s531, %s533
    %p540 = scmp.eq.s32.totalorder %s72, 1
    %p541 = por %p539, %p540
    %p542 = scmp.ne.s32.totalorder %s533, %s534
    %p543 = scmp.eq.s32.totalorder %s72, 0
    %p544 = por %p542, %p543
    %p545 = scmp.ne.s32.totalorder %s533, %s534
    %p546 = scmp.eq.s32.totalorder %s73, 1
    %p547 = por %p545, %p546
    %p549 = scmp.ne.s32.totalorder %s534, %s548
    %p550 = scmp.eq.s32.totalorder %s73, 0
    %p551 = por %p549, %p550
    %s553 = sadd.s32 %s552, 1
    %p556 = scmp.eq.s32.totalorder %s67, 1
    %p557 = scmp.ne.s32.totalorder %s552, %s554
    %p558 = scmp.eq.s32.totalorder %s67, 0
    %p559 = por %p557, %p558
    %p560 = scmp.ne.s32.totalorder %s552, %s554
    %p561 = scmp.eq.s32.totalorder %s72, 1
    %p562 = por %p560, %p561
    %p563 = scmp.ne.s32.totalorder %s554, %s555
    %p564 = scmp.eq.s32.totalorder %s72, 0
    %p565 = por %p563, %p564
    %p566 = scmp.ne.s32.totalorder %s554, %s555
    %p567 = scmp.eq.s32.totalorder %s73, 1
    %p568 = por %p566, %p567
    %p570 = scmp.ne.s32.totalorder %s555, %s569
    %p571 = scmp.eq.s32.totalorder %s73, 0
    %p572 = por %p570, %p571
    %s574 = sadd.s32 %s573, 1
    %p577 = scmp.eq.s32.totalorder %s67, 1
    %p578 = scmp.ne.s32.totalorder %s573, %s575
    %p579 = scmp.eq.s32.totalorder %s67, 0
    %p580 = por %p578, %p579
    %p581 = scmp.ne.s32.totalorder %s573, %s575
    %p582 = scmp.eq.s32.totalorder %s72, 1
    %p583 = por %p581, %p582
    %p584 = scmp.ne.s32.totalorder %s575, %s576
    %p585 = scmp.eq.s32.totalorder %s72, 0
    %p586 = por %p584, %p585
    %p587 = scmp.ne.s32.totalorder %s575, %s576
    %p588 = scmp.eq.s32.totalorder %s73, 1
    %p589 = por %p587, %p588
    %p591 = scmp.ne.s32.totalorder %s576, %s590
    %p592 = scmp.eq.s32.totalorder %s73, 0
    %p593 = por %p591, %p592
    %s595 = sadd.s32 %s594, 1
    %p598 = scmp.eq.s32.totalorder %s67, 1
    %p599 = scmp.ne.s32.totalorder %s594, %s596
    %p600 = scmp.eq.s32.totalorder %s67, 0
    %p601 = por %p599, %p600
    %p602 = scmp.ne.s32.totalorder %s594, %s596
    %p603 = scmp.eq.s32.totalorder %s72, 1
    %p604 = por %p602, %p603
    %p605 = scmp.ne.s32.totalorder %s596, %s597
    %p606 = scmp.eq.s32.totalorder %s72, 0
    %p607 = por %p605, %p606
    %p608 = scmp.ne.s32.totalorder %s596, %s597
    %p609 = scmp.eq.s32.totalorder %s73, 1
    %p610 = por %p608, %p609
    %p612 = scmp.ne.s32.totalorder %s597, %s611
    %p613 = scmp.eq.s32.totalorder %s73, 0
    %p614 = por %p612, %p613
    %s616 = sadd.s32 %s615, 1
    %p619 = scmp.eq.s32.totalorder %s67, 1
    %p620 = scmp.ne.s32.totalorder %s615, %s617
    %p621 = scmp.eq.s32.totalorder %s67, 0
    %p622 = por %p620, %p621
    %p623 = scmp.ne.s32.totalorder %s615, %s617
    %p624 = scmp.eq.s32.totalorder %s72, 1
    %p625 = por %p623, %p624
    %p626 = scmp.ne.s32.totalorder %s617, %s618
    %p627 = scmp.eq.s32.totalorder %s72, 0
    %p628 = por %p626, %p627
    %p629 = scmp.ne.s32.totalorder %s617, %s618
    %p630 = scmp.eq.s32.totalorder %s73, 1
    %p631 = por %p629, %p630
    %p633 = scmp.ne.s32.totalorder %s618, %s632
    %p634 = scmp.eq.s32.totalorder %s73, 0
    %p635 = por %p633, %p634
    %s637 = sadd.s32 %s636, 1
    %p640 = scmp.eq.s32.totalorder %s67, 1
    %p641 = scmp.ne.s32.totalorder %s636, %s638
    %p642 = scmp.eq.s32.totalorder %s67, 0
    %p643 = por %p641, %p642
    %p644 = scmp.ne.s32.totalorder %s636, %s638
    %p645 = scmp.eq.s32.totalorder %s72, 1
    %p646 = por %p644, %p645
    %p647 = scmp.ne.s32.totalorder %s638, %s639
    %p648 = scmp.eq.s32.totalorder %s72, 0
    %p649 = por %p647, %p648
    %p650 = scmp.ne.s32.totalorder %s638, %s639
    %p651 = scmp.eq.s32.totalorder %s73, 1
    %p652 = por %p650, %p651
    %p654 = scmp.ne.s32.totalorder %s639, %s653
    %p655 = scmp.eq.s32.totalorder %s73, 0
    %p656 = por %p654, %p655
    %s658 = sadd.s32 %s657, 1
    %p661 = scmp.eq.s32.totalorder %s67, 1
    %p662 = scmp.ne.s32.totalorder %s657, %s659
    %p663 = scmp.eq.s32.totalorder %s67, 0
    %p664 = por %p662, %p663
    %p665 = scmp.ne.s32.totalorder %s657, %s659
    %p666 = scmp.eq.s32.totalorder %s72, 1
    %p667 = por %p665, %p666
    %p668 = scmp.ne.s32.totalorder %s659, %s660
    %p669 = scmp.eq.s32.totalorder %s72, 0
    %p670 = por %p668, %p669
    %p671 = scmp.ne.s32.totalorder %s659, %s660
    %p672 = scmp.eq.s32.totalorder %s73, 1
    %p673 = por %p671, %p672
    %p675 = scmp.ne.s32.totalorder %s660, %s674
    %p676 = scmp.eq.s32.totalorder %s73, 0
    %p677 = por %p675, %p676
    %s679 = sadd.s32 %s678, 1
    %p682 = scmp.eq.s32.totalorder %s67, 1
    %p683 = scmp.ne.s32.totalorder %s678, %s680
    %p684 = scmp.eq.s32.totalorder %s67, 0
    %p685 = por %p683, %p684
    %p686 = scmp.ne.s32.totalorder %s678, %s680
    %p687 = scmp.eq.s32.totalorder %s72, 1
    %p688 = por %p686, %p687
    %p689 = scmp.ne.s32.totalorder %s680, %s681
    %p690 = scmp.eq.s32.totalorder %s72, 0
    %p691 = por %p689, %p690
    %p692 = scmp.ne.s32.totalorder %s680, %s681
    %p693 = scmp.eq.s32.totalorder %s73, 1
    %p694 = por %p692, %p693
    %p696 = scmp.ne.s32.totalorder %s681, %s695
    %p697 = scmp.eq.s32.totalorder %s73, 0
    %p698 = por %p696, %p697
    %s700 = sadd.s32 %s699, 1
    %p703 = scmp.eq.s32.totalorder %s67, 1
    %p704 = scmp.ne.s32.totalorder %s699, %s701
    %p705 = scmp.eq.s32.totalorder %s67, 0
    %p706 = por %p704, %p705
    %p707 = scmp.ne.s32.totalorder %s699, %s701
    %p708 = scmp.eq.s32.totalorder %s72, 1
    %p709 = por %p707, %p708
    %p710 = scmp.ne.s32.totalorder %s701, %s702
    %p711 = scmp.eq.s32.totalorder %s72, 0
    %p712 = por %p710, %p711
    %p713 = scmp.ne.s32.totalorder %s701, %s702
    %p714 = scmp.eq.s32.totalorder %s73, 1
    %p715 = por %p713, %p714
    %p717 = scmp.ne.s32.totalorder %s702, %s716
    %p718 = scmp.eq.s32.totalorder %s73, 0
    %p719 = por %p717, %p718
    %s720 = ssub.s32 %s67, %s74
    %p721 = scmp.eq.s32.totalorder %s720, 0
    %s723 = sadd.s32 %s722, 1
    %s724 = scalar_select %p721, %s722, %s723
    %p727 = pneg %p721
    %p728 = scmp.eq.s32.totalorder %s67, 1
    %p729 = por %p727, %p728
    %p730 = scmp.ne.s32.totalorder %s722, %s725
    %p731 = scmp.eq.s32.totalorder %s67, 0
    %p732 = por %p730, %p731
    %p733 = scmp.ne.s32.totalorder %s722, %s725
    %p734 = scmp.eq.s32.totalorder %s72, 1
    %p735 = por %p733, %p734
    %p736 = scmp.ne.s32.totalorder %s725, %s726
    %p737 = scmp.eq.s32.totalorder %s72, 0
    %p738 = por %p736, %p737
    %p739 = scmp.ne.s32.totalorder %s725, %s726
    %p740 = scmp.eq.s32.totalorder %s73, 1
    %p741 = por %p739, %p740
    %p743 = scmp.ne.s32.totalorder %s726, %s742
    %p744 = scmp.eq.s32.totalorder %s73, 0
    %p745 = por %p743, %p744
    %p746 = scmp.le.s32.totalorder 1, %s67
    %p747 = scmp.lt.s32.totalorder %s67, 3
    %p748 = pnand %p746, %p747
    %p749 = pneg %p748
    // Predicated region
    $region9: #{mham_forward.1} parent=5 // pred_check
      _
    $region10: #{mham_forward.1} parent=5 // pred_check_branch
      %751 = sbr.rel (%p748) target = $region12
    $region11: #{mham_forward.1} parent=5 // pred_region
      %s752 = ssub.s32 %s67, 1
      // Predicated region
      $region13: #{mham_forward.1} parent=11 // pred_check
        %p753 = pneg %p166
      $region14: #{mham_forward.1} parent=11 // pred_check_branch
        %755 = sbr.rel (%p753) target = $region16
      $region15: #{mham_forward.1} parent=11 // pred_region
        _
      $region16: #{mham_forward.1} parent=11 // pred_fallthru
        _
      // Predicated region
      $region17: #{mham_forward.1} parent=11 // pred_check
        %p756 = pneg %p187
      $region18: #{mham_forward.1} parent=11 // pred_check_branch
        %758 = sbr.rel (%p756) target = $region20
      $region19: #{mham_forward.1} parent=11 // pred_region
        _
      $region20: #{mham_forward.1} parent=11 // pred_fallthru
        _
      // Predicated region
      $region21: #{mham_forward.1} parent=11 // pred_check
        %p759 = pneg %p208
      $region22: #{mham_forward.1} parent=11 // pred_check_branch
        %761 = sbr.rel (%p759) target = $region24
      $region23: #{mham_forward.1} parent=11 // pred_region
        _
      $region24: #{mham_forward.1} parent=11 // pred_fallthru
        _
      // Predicated region
      $region25: #{mham_forward.1} parent=11 // pred_check
        %p762 = pneg %p229
      $region26: #{mham_forward.1} parent=11 // pred_check_branch
        %764 = sbr.rel (%p762) target = $region28
      $region27: #{mham_forward.1} parent=11 // pred_region
        _
      $region28: #{mham_forward.1} parent=11 // pred_fallthru
        _
      // Predicated region
      $region29: #{mham_forward.1} parent=11 // pred_check
        %p765 = pneg %p250
      $region30: #{mham_forward.1} parent=11 // pred_check_branch
        %767 = sbr.rel (%p765) target = $region32
      $region31: #{mham_forward.1} parent=11 // pred_region
        _
      $region32: #{mham_forward.1} parent=11 // pred_fallthru
        _
      // Predicated region
      $region33: #{mham_forward.1} parent=11 // pred_check
        %p768 = pneg %p271
      $region34: #{mham_forward.1} parent=11 // pred_check_branch
        %770 = sbr.rel (%p768) target = $region36
      $region35: #{mham_forward.1} parent=11 // pred_region
        _
      $region36: #{mham_forward.1} parent=11 // pred_fallthru
        _
      // Predicated region
      $region37: #{mham_forward.1} parent=11 // pred_check
        %p771 = pneg %p292
      $region38: #{mham_forward.1} parent=11 // pred_check_branch
        %773 = sbr.rel (%p771) target = $region40
      $region39: #{mham_forward.1} parent=11 // pred_region
        _
      $region40: #{mham_forward.1} parent=11 // pred_fallthru
        _
      // Predicated region
      $region41: #{mham_forward.1} parent=11 // pred_check
        %p774 = pneg %p313
      $region42: #{mham_forward.1} parent=11 // pred_check_branch
        %776 = sbr.rel (%p774) target = $region44
      $region43: #{mham_forward.1} parent=11 // pred_region
        _
      $region44: #{mham_forward.1} parent=11 // pred_fallthru
        _
      // Predicated region
      $region45: #{mham_forward.1} parent=11 // pred_check
        %p777 = pneg %p334
      $region46: #{mham_forward.1} parent=11 // pred_check_branch
        %779 = sbr.rel (%p777) target = $region48
      $region47: #{mham_forward.1} parent=11 // pred_region
        _
      $region48: #{mham_forward.1} parent=11 // pred_fallthru
        _
      // Predicated region
      $region49: #{mham_forward.1} parent=11 // pred_check
        %p780 = pneg %p355
      $region50: #{mham_forward.1} parent=11 // pred_check_branch
        %782 = sbr.rel (%p780) target = $region52
      $region51: #{mham_forward.1} parent=11 // pred_region
        _
      $region52: #{mham_forward.1} parent=11 // pred_fallthru
        _
      // Predicated region
      $region53: #{mham_forward.1} parent=11 // pred_check
        %p783 = pneg %p376
      $region54: #{mham_forward.1} parent=11 // pred_check_branch
        %785 = sbr.rel (%p783) target = $region56
      $region55: #{mham_forward.1} parent=11 // pred_region
        _
      $region56: #{mham_forward.1} parent=11 // pred_fallthru
        _
      // Predicated region
      $region57: #{mham_forward.1} parent=11 // pred_check
        %p786 = pneg %p397
      $region58: #{mham_forward.1} parent=11 // pred_check_branch
        %788 = sbr.rel (%p786) target = $region60
      $region59: #{mham_forward.1} parent=11 // pred_region
        _
      $region60: #{mham_forward.1} parent=11 // pred_fallthru
        _
      // Predicated region
      $region61: #{mham_forward.1} parent=11 // pred_check
        %p789 = pneg %p418
      $region62: #{mham_forward.1} parent=11 // pred_check_branch
        %791 = sbr.rel (%p789) target = $region64
      $region63: #{mham_forward.1} parent=11 // pred_region
        _
      $region64: #{mham_forward.1} parent=11 // pred_fallthru
        _
      // Predicated region
      $region65: #{mham_forward.1} parent=11 // pred_check
        %p792 = pneg %p439
      $region66: #{mham_forward.1} parent=11 // pred_check_branch
        %794 = sbr.rel (%p792) target = $region68
      $region67: #{mham_forward.1} parent=11 // pred_region
        _
      $region68: #{mham_forward.1} parent=11 // pred_fallthru
        _
      // Predicated region
      $region69: #{mham_forward.1} parent=11 // pred_check
        %p795 = pneg %p460
      $region70: #{mham_forward.1} parent=11 // pred_check_branch
        %797 = sbr.rel (%p795) target = $region72
      $region71: #{mham_forward.1} parent=11 // pred_region
        _
      $region72: #{mham_forward.1} parent=11 // pred_fallthru
        _
      // Predicated region
      $region73: #{mham_forward.1} parent=11 // pred_check
        %p798 = pneg %p481
      $region74: #{mham_forward.1} parent=11 // pred_check_branch
        %800 = sbr.rel (%p798) target = $region76
      $region75: #{mham_forward.1} parent=11 // pred_region
        _
      $region76: #{mham_forward.1} parent=11 // pred_fallthru
        _
      // Predicated region
      $region77: #{mham_forward.1} parent=11 // pred_check
        %p801 = pneg %p502
      $region78: #{mham_forward.1} parent=11 // pred_check_branch
        %803 = sbr.rel (%p801) target = $region80
      $region79: #{mham_forward.1} parent=11 // pred_region
        _
      $region80: #{mham_forward.1} parent=11 // pred_fallthru
        _
      // Predicated region
      $region81: #{mham_forward.1} parent=11 // pred_check
        %p804 = pneg %p523
      $region82: #{mham_forward.1} parent=11 // pred_check_branch
        %806 = sbr.rel (%p804) target = $region84
      $region83: #{mham_forward.1} parent=11 // pred_region
        _
      $region84: #{mham_forward.1} parent=11 // pred_fallthru
        _
      // Predicated region
      $region85: #{mham_forward.1} parent=11 // pred_check
        %p807 = pneg %p544
      $region86: #{mham_forward.1} parent=11 // pred_check_branch
        %809 = sbr.rel (%p807) target = $region88
      $region87: #{mham_forward.1} parent=11 // pred_region
        _
      $region88: #{mham_forward.1} parent=11 // pred_fallthru
        _
      // Predicated region
      $region89: #{mham_forward.1} parent=11 // pred_check
        %p810 = pneg %p565
      $region90: #{mham_forward.1} parent=11 // pred_check_branch
        %812 = sbr.rel (%p810) target = $region92
      $region91: #{mham_forward.1} parent=11 // pred_region
        _
      $region92: #{mham_forward.1} parent=11 // pred_fallthru
        _
      // Predicated region
      $region93: #{mham_forward.1} parent=11 // pred_check
        %p813 = pneg %p586
      $region94: #{mham_forward.1} parent=11 // pred_check_branch
        %815 = sbr.rel (%p813) target = $region96
      $region95: #{mham_forward.1} parent=11 // pred_region
        _
      $region96: #{mham_forward.1} parent=11 // pred_fallthru
        _
      // Predicated region
      $region97: #{mham_forward.1} parent=11 // pred_check
        %p816 = pneg %p607
      $region98: #{mham_forward.1} parent=11 // pred_check_branch
        %818 = sbr.rel (%p816) target = $region100
      $region99: #{mham_forward.1} parent=11 // pred_region
        _
      $region100: #{mham_forward.1} parent=11 // pred_fallthru
        _
      // Predicated region
      $region101: #{mham_forward.1} parent=11 // pred_check
        %p819 = pneg %p628
      $region102: #{mham_forward.1} parent=11 // pred_check_branch
        %821 = sbr.rel (%p819) target = $region104
      $region103: #{mham_forward.1} parent=11 // pred_region
        _
      $region104: #{mham_forward.1} parent=11 // pred_fallthru
        _
      // Predicated region
      $region105: #{mham_forward.1} parent=11 // pred_check
        %p822 = pneg %p649
      $region106: #{mham_forward.1} parent=11 // pred_check_branch
        %824 = sbr.rel (%p822) target = $region108
      $region107: #{mham_forward.1} parent=11 // pred_region
        _
      $region108: #{mham_forward.1} parent=11 // pred_fallthru
        _
      // Predicated region
      $region109: #{mham_forward.1} parent=11 // pred_check
        %p825 = pneg %p670
      $region110: #{mham_forward.1} parent=11 // pred_check_branch
        %827 = sbr.rel (%p825) target = $region112
      $region111: #{mham_forward.1} parent=11 // pred_region
        _
      $region112: #{mham_forward.1} parent=11 // pred_fallthru
        _
      // Predicated region
      $region113: #{mham_forward.1} parent=11 // pred_check
        %p828 = pneg %p691
      $region114: #{mham_forward.1} parent=11 // pred_check_branch
        %830 = sbr.rel (%p828) target = $region116
      $region115: #{mham_forward.1} parent=11 // pred_region
        _
      $region116: #{mham_forward.1} parent=11 // pred_fallthru
        _
      // Predicated region
      $region117: #{mham_forward.1} parent=11 // pred_check
        %p831 = pneg %p712
      $region118: #{mham_forward.1} parent=11 // pred_check_branch
        %833 = sbr.rel (%p831) target = $region120
      $region119: #{mham_forward.1} parent=11 // pred_region
        _
      $region120: #{mham_forward.1} parent=11 // pred_fallthru
        _
    $region12: #{mham_forward.1} parent=5 // pred_fallthru
      _
    %p834 = scmp.lt.s32.totalorder %s67, 2
    // Predicated region
    $region121: #{mham_forward.1} parent=5 // pred_check
      %p835 = pneg %p834
    $region122: #{mham_forward.1} parent=5 // pred_check_branch
      %837 = sbr.rel (%p835) target = $region124
    $region123: #{mham_forward.1} parent=5 // pred_region
      // Predicated region
      $region125: #{mham_forward.1} parent=123 // pred_check
        %p838 = pneg %p87
      $region126: #{mham_forward.1} parent=123 // pred_check_branch
        %840 = sbr.rel (%p838) target = $region128
      $region127: #{mham_forward.1} parent=123 // pred_region
        %p841 = scmp.lt.s32.totalorder %s67, 1
        %s842 = scalar_select %p841, %s67, 1
        %s843 = smul.addr %s842, 4
        %s844 = smul.addr %s843, 8
        %s845 = scalar_lea.vmem %s1, %s844
      $region128: #{mham_forward.1} parent=123 // pred_fallthru
        _
      // Predicated region
      $region129: #{mham_forward.1} parent=123 // pred_check
        %p846 = pneg %p113
      $region130: #{mham_forward.1} parent=123 // pred_check_branch
        %848 = sbr.rel (%p846) target = $region132
      $region131: #{mham_forward.1} parent=123 // pred_region
        %p849 = scmp.lt.s32.totalorder %s67, 1
        %s850 = scalar_select %p849, %s67, 1
        %s851 = smul.addr %s850, 3
        %s852 = smul.addr %s851, 8
        %s853 = scalar_lea.vmem %s3, %s852
      $region132: #{mham_forward.1} parent=123 // pred_fallthru
        _
      // Predicated region
      $region133: #{mham_forward.1} parent=123 // pred_check
        %p854 = pneg %p139
      $region134: #{mham_forward.1} parent=123 // pred_check_branch
        %856 = sbr.rel (%p854) target = $region136
      $region135: #{mham_forward.1} parent=123 // pred_region
        %p857 = scmp.lt.s32.totalorder %s67, 1
        %s858 = scalar_select %p857, %s67, 1
        %s859 = smul.addr %s858, 4
        %s860 = smul.addr %s859, 8
        %s861 = scalar_lea.vmem %s5, %s860
      $region136: #{mham_forward.1} parent=123 // pred_fallthru
        _
    $region124: #{mham_forward.1} parent=5 // pred_fallthru
      _
    %p862 = scmp.le.s32.totalorder 1, %s67
    %p863 = scmp.lt.s32.totalorder %s67, 3
    %p864 = pnand %p862, %p863
    %p865 = pneg %p864
    // Predicated region
    $region137: #{mham_forward.1} parent=5 // pred_check
      _
    $region138: #{mham_forward.1} parent=5 // pred_check_branch
      %867 = sbr.rel (%p864) target = $region140
    $region139: #{mham_forward.1} parent=5 // pred_region
      %s868 = ssub.s32 %s67, 1
      %p869 = scmp.lt.s32.totalorder %s72, 1
      %s870 = scalar_select %p869, %s72, 1
      %s871 = smul.addr %s870, 4
      %s872 = smul.addr %s871, 8
      %s873 = scalar_lea.vmem %s1, %s872
      %p874 = pneg %p93
      %p875 = pneg %p90
      %p876 = scmp.lt.s32.totalorder %s72, 1
      %s877 = scalar_select %p876, %s72, 1
      %s878 = smul.addr %s877, 3
      %s879 = smul.addr %s878, 8
      %s880 = scalar_lea.vmem %s3, %s879
      %p881 = pneg %p119
      %p882 = pneg %p116
      %p883 = scmp.lt.s32.totalorder %s72, 1
      %s884 = scalar_select %p883, %s72, 1
      %s885 = smul.addr %s884, 4
      %s886 = smul.addr %s885, 8
      %s887 = scalar_lea.vmem %s5, %s886
      %p888 = pneg %p145
      %p889 = pneg %p142
      %p890 = pneg %p166
      %p891 = pneg %p163
      %p892 = pneg %p187
      %p893 = pneg %p184
      %p894 = pneg %p208
      %p895 = pneg %p205
      %p896 = pneg %p229
      %p897 = pneg %p226
      %p898 = pneg %p250
      %p899 = pneg %p247
      %p900 = pneg %p271
      %p901 = pneg %p268
      %p902 = pneg %p292
      %p903 = pneg %p289
      %p904 = pneg %p313
      %p905 = pneg %p310
      %p906 = pneg %p334
      %p907 = pneg %p331
      %p908 = pneg %p355
      %p909 = pneg %p352
      %p910 = pneg %p376
      %p911 = pneg %p373
      %p912 = pneg %p397
      %p913 = pneg %p394
      %p914 = pneg %p418
      %p915 = pneg %p415
      %p916 = pneg %p439
      %p917 = pneg %p436
      %p918 = pneg %p460
      %p919 = pneg %p457
      %p920 = pneg %p481
      %p921 = pneg %p478
      %p922 = pneg %p502
      %p923 = pneg %p499
      %p924 = pneg %p523
      %p925 = pneg %p520
      %p926 = pneg %p544
      %p927 = pneg %p541
      %p928 = pneg %p565
      %p929 = pneg %p562
      %p930 = pneg %p586
      %p931 = pneg %p583
      %p932 = pneg %p607
      %p933 = pneg %p604
      %p934 = pneg %p628
      %p935 = pneg %p625
      %p936 = pneg %p649
      %p937 = pneg %p646
      %p938 = pneg %p670
      %p939 = pneg %p667
      %p940 = pneg %p691
      %p941 = pneg %p688
      %p942 = pneg %p712
      %p943 = pneg %p709
      %p944 = pneg %p738
      %p945 = pneg %p735
      %p946 = scmp.lt.s32.totalorder %s72, 1
      %s947 = scalar_select %p946, %s72, 1
      %s948 = smul.addr %s947, 4
      %s949 = smul.addr %s948, 8
      %s950 = scalar_lea.vmem %s61, %s949
      %p951 = scmp.lt.s32.totalorder %s72, 1
      %s952 = scalar_select %p951, %s72, 1
      %s953 = smul.addr %s952, 4
      %s954 = smul.addr %s953, 8
      %s955 = scalar_lea.vmem %s1, %s954
      %p956 = scmp.lt.s32.totalorder %s72, 1
      %s957 = scalar_select %p956, %s72, 1
      %s958 = smul.addr %s957, 3
      %s959 = smul.addr %s958, 8
      %s960 = scalar_lea.vmem %s3, %s959
      %p961 = scmp.lt.s32.totalorder %s72, 1
      %s962 = scalar_select %p961, %s72, 1
      %s963 = smul.addr %s962, 4
      %s964 = smul.addr %s963, 8
      %s965 = scalar_lea.vmem %s5, %s964
      %p966 = scmp.lt.s32.totalorder %s72, 1
      %s967 = scalar_select %p966, %s72, 1
      %s968 = smul.addr %s967, 4
      %s969 = smul.addr %s968, 8
      %s970 = scalar_lea.vmem %s61, %s969
      %v971 = vld [vmem:[%s955] sm:$0xff]
      %v972 = vld [vmem:[%s955 + $0x8] sm:$0xff]
      %v973 = vld [vmem:[%s955 + $0x10] sm:$0xff]
      %v974 = vld [vmem:[%s955 + $0x18] sm:$0xff]
      %v975 = vld [vmem:[%s960] sm:$0xff]
      %v976 = vld [vmem:[%s960 + $0x8] sm:$0xff]
      %v977 = vld [vmem:[%s960 + $0x10] sm:$0xff]
      %v978 = vld [vmem:[%s965] sm:$0xff]
      %v979 = vld [vmem:[%s965 + $0x8] sm:$0xff]
      %v980 = vld [vmem:[%s965 + $0x10] sm:$0xff]
      %v981 = vld [vmem:[%s965 + $0x18] sm:$0xff]
      %v982 = vld [vmem:[%s11] sm:$0xff]
      %v983 = vld [vmem:[%s11 + $0x8] sm:$0xff]
      %v984 = vld [vmem:[%s11 + $0x10] sm:$0xff]
      %v985 = vld [vmem:[%s11 + $0x18] sm:$0xff]
      %vm986 = vcmask 261120
      %v988 = vsel %vm986, %v982, 0
      %v991 = vsel %vm986, %v983, 0
      %v994 = vsel %vm986, %v984, 0
      %v997 = vsel %vm986, %v985, 0
      %999 = vmatpush.msra.mxu0 0.0
      %1000 = vmatpush.msra.mxu0 0.0
      %1001 = vmatpush.msra.mxu0 0.0
      %1002 = vmatpush.msra.mxu0 0.0
      %1003 = vmatpush.msra.mxu0 0.0
      %1004 = vmatpush.msra.mxu0 0.0
      %1005 = vmatpush.msra.mxu0 0.0
      %1006 = vmatpush.msra.mxu0 0.0
      %1007 = vmatpush.msra.mxu0 0.0
      %1008 = vmatpush.msra.mxu0 0.0
      %1009 = vmatpush.msra.mxu0 0.0
      %1010 = vmatpush.msra.mxu0 0.0
      %1011 = vmatpush.msra.mxu0 %v981
      %1012 = vmatpush.msra.mxu0 %v980
      %1013 = vmatpush.msra.mxu0 %v979
      %1014 = vmatpush.msra.mxu0 %v978
      %1015 = vmatmul.f32.gmra.mxu0 %v988
      %v1016 = vpop.f32.mrf.mxu0
      %v1017 = vadd.f32 0.0, %v1016
      %1018 = vmatmul.f32.gmra.mxu0 %v991
      %v1019 = vpop.f32.mrf.mxu0
      %v1020 = vadd.f32 0.0, %v1019
      %1021 = vmatmul.f32.gmra.mxu0 %v994
      %v1022 = vpop.f32.mrf.mxu0
      %v1023 = vadd.f32 0.0, %v1022
      %1024 = vmatmul.f32.gmra.mxu0 %v997
      %v1025 = vpop.f32.mrf.mxu0
      %v1026 = vadd.f32 0.0, %v1025
      %1027 = vdwg.mxu0
      %v1028 = vmax.f32 %v1017, 0.0
      %v1029 = vmax.f32 %v1020, 0.0
      %v1030 = vmax.f32 %v1023, 0.0
      %v1031 = vmax.f32 %v1026, 0.0
      %vm1032 = vcmask 130048
      %v1033 = vsel %vm1032, %v978, 0.0
      %1034 = vadd.xlane.f32.xlu0 %v1033
      %v1035 = vpop.xlane.xlu0 %1034
      %v1036 = vsel %vm1032, %v979, 0.0
      %1037 = vadd.xlane.f32.xlu0 %v1036
      %v1038 = vpop.xlane.xlu0 %1037
      %v1039 = vsel %vm1032, %v980, 0.0
      %1040 = vadd.xlane.f32.xlu0 %v1039
      %v1041 = vpop.xlane.xlu0 %1040
      %v1042 = vsel %vm1032, %v981, 0.0
      %1043 = vadd.xlane.f32.xlu0 %v1042
      %v1044 = vpop.xlane.xlu0 %1043
      %v1045 = vmul.f32 %v1035, 0.0625
      %v1046 = vmul.f32 %v1038, 0.0625
      %v1047 = vmul.f32 %v1041, 0.0625
      %v1048 = vmul.f32 %v1044, 0.0625
      %v1049 = vld [vmem:[%s13] sm:$0xff]
      %v1050 = vld [vmem:[%s13 + $0x8] sm:$0xff]
      %v1051 = vld [vmem:[%s13 + $0x10] sm:$0xff]
      %v1052 = vld [vmem:[%s13 + $0x18] sm:$0xff]
      %v1054 = vsel %vm986, %v1049, 0
      %v1057 = vsel %vm986, %v1050, 0
      %v1060 = vsel %vm986, %v1051, 0
      %v1063 = vsel %vm986, %v1052, 0
      %1065 = vmatpush.msra.mxu0 0.0
      %1066 = vmatpush.msra.mxu0 0.0
      %1067 = vmatpush.msra.mxu0 0.0
      %1068 = vmatpush.msra.mxu0 0.0
      %1069 = vmatpush.msra.mxu0 0.0
      %1070 = vmatpush.msra.mxu0 0.0
      %1071 = vmatpush.msra.mxu0 0.0
      %1072 = vmatpush.msra.mxu0 0.0
      %1073 = vmatpush.msra.mxu0 0.0
      %1074 = vmatpush.msra.mxu0 0.0
      %1075 = vmatpush.msra.mxu0 0.0
      %1076 = vmatpush.msra.mxu0 0.0
      %1077 = vmatpush.msra.mxu0 %v1048
      %1078 = vmatpush.msra.mxu0 %v1047
      %1079 = vmatpush.msra.mxu0 %v1046
      %1080 = vmatpush.msra.mxu0 %v1045
      %1081 = vmatmul.f32.gmra.mxu0 %v1054
      %v1082 = vpop.f32.mrf.mxu0
      %v1083 = vadd.f32 0.0, %v1082
      %1084 = vmatmul.f32.gmra.mxu0 %v1057
      %v1085 = vpop.f32.mrf.mxu0
      %v1086 = vadd.f32 0.0, %v1085
      %1087 = vmatmul.f32.gmra.mxu0 %v1060
      %v1088 = vpop.f32.mrf.mxu0
      %v1089 = vadd.f32 0.0, %v1088
      %1090 = vmatmul.f32.gmra.mxu0 %v1063
      %v1091 = vpop.f32.mrf.mxu0
      %v1092 = vadd.f32 0.0, %v1091
      %1093 = vdwg.mxu0
      %v1094 = vmax.f32 %v1083, 0.0
      %v1095 = vmax.f32 %v1086, 0.0
      %v1096 = vmax.f32 %v1089, 0.0
      %v1097 = vmax.f32 %v1092, 0.0
      %1099 = vset.pattern.permute.xlu0 0
      %1100 = vperm.xlu0 %1099, %v1094
      %v1101 = vpop.permute.xlu0 %1100
      %1104 = vset.pattern.permute.xlu0 0
      %1105 = vperm.xlu0 %1104, %v1095
      %v1106 = vpop.permute.xlu0 %1105
      %1109 = vset.pattern.permute.xlu0 0
      %1110 = vperm.xlu0 %1109, %v1096
      %v1111 = vpop.permute.xlu0 %1110
      %1114 = vset.pattern.permute.xlu0 0
      %1115 = vperm.xlu0 %1114, %v1097
      %v1116 = vpop.permute.xlu0 %1115
      %v1118 = vadd.f32 %v1028, %v1101
      %v1119 = vadd.f32 %v1029, %v1106
      %v1120 = vadd.f32 %v1030, %v1111
      %v1121 = vadd.f32 %v1031, %v1116
      %v1122 = vld [vmem:[%s7] sm:$0xff]
      %v1123 = vld [vmem:[%s7 + $0x8] sm:$0xff]
      %v1125 = vsel %vm1032, %v1118, 0
      %v1128 = vsel %vm1032, %v1119, 0
      %v1131 = vsel %vm1032, %v1120, 0
      %v1134 = vsel %vm1032, %v1121, 0
      %1136 = vmatpush.msra.mxu0 0.0
      %1137 = vmatpush.msra.mxu0 0.0
      %1138 = vmatpush.msra.mxu0 0.0
      %1139 = vmatpush.msra.mxu0 0.0
      %1140 = vmatpush.msra.mxu0 0.0
      %1141 = vmatpush.msra.mxu0 0.0
      %1142 = vmatpush.msra.mxu0 0.0
      %1143 = vmatpush.msra.mxu0 0.0
      %1144 = vmatpush.msra.mxu0 0.0
      %1145 = vmatpush.msra.mxu0 0.0
      %1146 = vmatpush.msra.mxu0 0.0
      %1147 = vmatpush.msra.mxu0 0.0
      %1148 = vmatpush.msra.mxu0 0.0
      %1149 = vmatpush.msra.mxu0 0.0
      %1150 = vmatpush.msra.mxu0 %v1123
      %1151 = vmatpush.msra.mxu0 %v1122
      %1152 = vmatmul.f32.gmra.mxu0 %v1125
      %v1153 = vpop.f32.mrf.mxu0
      %v1154 = vadd.f32 0.0, %v1153
      %1155 = vmatmul.f32.gmra.mxu0 %v1128
      %v1156 = vpop.f32.mrf.mxu0
      %v1157 = vadd.f32 0.0, %v1156
      %1158 = vmatmul.f32.gmra.mxu0 %v1131
      %v1159 = vpop.f32.mrf.mxu0
      %v1160 = vadd.f32 0.0, %v1159
      %1161 = vmatmul.f32.gmra.mxu0 %v1134
      %v1162 = vpop.f32.mrf.mxu0
      %v1163 = vadd.f32 0.0, %v1162
      %1164 = vdwg.mxu0
      %v1165 = vld [vmem:[%s15] sm:$0xff]
      %v1166 = vld [vmem:[%s15 + $0x8] sm:$0xff]
      %v1167 = vld [vmem:[%s15 + $0x10] sm:$0xff]
      %v1168 = vld [vmem:[%s15 + $0x18] sm:$0xff]
      %v1169 = vld [vmem:[%s15 + $0x20] sm:$0xff]
      %v1170 = vld [vmem:[%s15 + $0x28] sm:$0xff]
      %v1171 = vld [vmem:[%s15 + $0x30] sm:$0xff]
      %v1172 = vld [vmem:[%s15 + $0x38] sm:$0xff]
      %v1173 = vld [vmem:[%s15 + $0x40] sm:$0xff]
      %v1174 = vld [vmem:[%s15 + $0x48] sm:$0xff]
      %v1175 = vld [vmem:[%s15 + $0x50] sm:$0xff]
      %v1176 = vld [vmem:[%s15 + $0x58] sm:$0xff]
      %v1177 = vld [vmem:[%s17] sm:$0xff]
      %v1178 = vld [vmem:[%s17 + $0x8] sm:$0xff]
      %v1179 = vld [vmem:[%s17 + $0x10] sm:$0xff]
      %v1180 = vld [vmem:[%s17 + $0x18] sm:$0xff]
      %1181 = vst [vmem:[#allocation2] sm:$0xff] 0.0
      %1182 = vst [vmem:[#allocation2 + $0x8] sm:$0xff] 0.0
      %1183 = vst [vmem:[#allocation2 + $0x10] sm:$0xff] 0.0
      %1184 = vst [vmem:[#allocation2 + $0x18] sm:$0xff] 0.0
      %1185 = vst [vmem:[#allocation2 + $0x20] sm:$0xff] 0.0
      %1186 = vst [vmem:[#allocation2 + $0x28] sm:$0xff] 0.0
      %1187 = vst [vmem:[#allocation2 + $0x30] sm:$0xff] 0.0
      %1188 = vst [vmem:[#allocation2 + $0x38] sm:$0xff] 0.0
      %1189 = vst [vmem:[#allocation2 + $0x40] sm:$0xff] 0.0
      %1190 = vst [vmem:[#allocation2 + $0x48] sm:$0xff] 0.0
      %1191 = vst [vmem:[#allocation2 + $0x50] sm:$0xff] 0.0
      %1192 = vst [vmem:[#allocation2 + $0x58] sm:$0xff] 0.0
      %1193 = vst [vmem:[#allocation2 + $0x60] sm:$0xff] 0.0
      %1194 = vst [vmem:[#allocation2 + $0x68] sm:$0xff] 0.0
      %1195 = vst [vmem:[#allocation2 + $0x70] sm:$0xff] 0.0
      %1196 = vst [vmem:[#allocation2 + $0x78] sm:$0xff] 0.0
      %1197 = vst.msk [vmem:[#allocation2 + $0x8] sm:$0xff] %vm1032, %v1118
      %1198 = vst.msk [vmem:[#allocation2 + $0x28] sm:$0xff] %vm1032, %v1119
      %1199 = vst.msk [vmem:[#allocation2 + $0x48] sm:$0xff] %vm1032, %v1120
      %1200 = vst.msk [vmem:[#allocation2 + $0x68] sm:$0xff] %vm1032, %v1121
      %v1201 = vlaneseq
      %v1202 = vand.u32 %v1201, 127
      %v1203 = vand.u32 %v1202, 3
      %v1204 = vld [vmem:[#allocation2] sm:$0xff]
      %v1205 = vld [vmem:[#allocation2 + $0x8] sm:$0xff]
      %v1206 = vld [vmem:[#allocation2 + $0x20] sm:$0xff]
      %v1207 = vld [vmem:[#allocation2 + $0x28] sm:$0xff]
      %v1208 = vld [vmem:[#allocation2 + $0x40] sm:$0xff]
      %v1209 = vld [vmem:[#allocation2 + $0x48] sm:$0xff]
      %v1210 = vld [vmem:[#allocation2 + $0x60] sm:$0xff]
      %v1211 = vld [vmem:[#allocation2 + $0x68] sm:$0xff]
      %vm1212 = vcmp.ge.s32.totalorder %v1203, 1
      %v1213 = vsel %vm1212, 1, 0
      %vm1214 = vcmp.eq.s32.totalorder %v1213, 1
      %1223 = vrot.lane.b32.xlu0 %v1204, 5
      %v1224 = vpop.permute.xlu0 %1223
      %1225 = vrot.lane.b32.xlu0 %v1205, 5
      %v1226 = vpop.permute.xlu0 %1225
      %1227 = vrot.lane.b32.xlu0 %v1206, 5
      %v1228 = vpop.permute.xlu0 %1227
      %1229 = vrot.lane.b32.xlu0 %v1207, 5
      %v1230 = vpop.permute.xlu0 %1229
      %1231 = vrot.lane.b32.xlu0 %v1208, 5
      %v1232 = vpop.permute.xlu0 %1231
      %1233 = vrot.lane.b32.xlu0 %v1209, 5
      %v1234 = vpop.permute.xlu0 %1233
      %1235 = vrot.lane.b32.xlu0 %v1210, 5
      %v1236 = vpop.permute.xlu0 %1235
      %1237 = vrot.lane.b32.xlu0 %v1211, 5
      %v1238 = vpop.permute.xlu0 %1237
      %vm1239 = vcmask 39936
      %v1240 = vsel %vm1239, %v1224, %v1226
      %v1241 = vsel %vm1239, %v1228, %v1230
      %v1242 = vsel %vm1239, %v1232, %v1234
      %v1243 = vsel %vm1239, %v1236, %v1238
      %v1248 = vsel %vm1214, %v1240, 0.0
      %v1249 = vsel %vm1214, %v1241, 0.0
      %v1250 = vsel %vm1214, %v1242, 0.0
      %v1251 = vsel %vm1214, %v1243, 0.0
      %1252 = vst.msk [vmem:[#allocation3] sm:$0xff] %vm1032, %v1248
      %1253 = vst.msk [vmem:[#allocation3 + $0x10] sm:$0xff] %vm1032, %v1249
      %1254 = vst.msk [vmem:[#allocation3 + $0x20] sm:$0xff] %vm1032, %v1250
      %1255 = vst.msk [vmem:[#allocation3 + $0x30] sm:$0xff] %vm1032, %v1251
      %v1256 = vld [vmem:[#allocation2] sm:$0xff]
      %v1257 = vld [vmem:[#allocation2 + $0x8] sm:$0xff]
      %v1258 = vld [vmem:[#allocation2 + $0x20] sm:$0xff]
      %v1259 = vld [vmem:[#allocation2 + $0x28] sm:$0xff]
      %v1260 = vld [vmem:[#allocation2 + $0x40] sm:$0xff]
      %v1261 = vld [vmem:[#allocation2 + $0x48] sm:$0xff]
      %v1262 = vld [vmem:[#allocation2 + $0x60] sm:$0xff]
      %v1263 = vld [vmem:[#allocation2 + $0x68] sm:$0xff]
      %1272 = vrot.lane.b32.xlu0 %v1256, 4
      %v1273 = vpop.permute.xlu0 %1272
      %1274 = vrot.lane.b32.xlu0 %v1257, 4
      %v1275 = vpop.permute.xlu0 %1274
      %1276 = vrot.lane.b32.xlu0 %v1258, 4
      %v1277 = vpop.permute.xlu0 %1276
      %1278 = vrot.lane.b32.xlu0 %v1259, 4
      %v1279 = vpop.permute.xlu0 %1278
      %1280 = vrot.lane.b32.xlu0 %v1260, 4
      %v1281 = vpop.permute.xlu0 %1280
      %1282 = vrot.lane.b32.xlu0 %v1261, 4
      %v1283 = vpop.permute.xlu0 %1282
      %1284 = vrot.lane.b32.xlu0 %v1262, 4
      %v1285 = vpop.permute.xlu0 %1284
      %1286 = vrot.lane.b32.xlu0 %v1263, 4
      %v1287 = vpop.permute.xlu0 %1286
      %vm1288 = vcmask 31744
      %v1289 = vsel %vm1288, %v1273, %v1275
      %v1290 = vsel %vm1288, %v1277, %v1279
      %v1291 = vsel %vm1288, %v1281, %v1283
      %v1292 = vsel %vm1288, %v1285, %v1287
      %1297 = vst.msk [vmem:[#allocation3 + $0x40] sm:$0xff] %vm1032, %v1289
      %1298 = vst.msk [vmem:[#allocation3 + $0x50] sm:$0xff] %vm1032, %v1290
      %1299 = vst.msk [vmem:[#allocation3 + $0x60] sm:$0xff] %vm1032, %v1291
      %1300 = vst.msk [vmem:[#allocation3 + $0x70] sm:$0xff] %vm1032, %v1292
      %v1301 = vld [vmem:[#allocation2] sm:$0xff]
      %v1302 = vld [vmem:[#allocation2 + $0x8] sm:$0xff]
      %v1303 = vld [vmem:[#allocation2 + $0x20] sm:$0xff]
      %v1304 = vld [vmem:[#allocation2 + $0x28] sm:$0xff]
      %v1305 = vld [vmem:[#allocation2 + $0x40] sm:$0xff]
      %v1306 = vld [vmem:[#allocation2 + $0x48] sm:$0xff]
      %v1307 = vld [vmem:[#allocation2 + $0x60] sm:$0xff]
      %v1308 = vld [vmem:[#allocation2 + $0x68] sm:$0xff]
      %vm1309 = vcmp.le.s32.totalorder %v1203, 2
      %v1310 = vsel %vm1309, 1, 0
      %vm1311 = vcmp.eq.s32.totalorder %v1310, 1
      %1320 = vrot.lane.b32.xlu0 %v1301, 3
      %v1321 = vpop.permute.xlu0 %1320
      %1322 = vrot.lane.b32.xlu0 %v1302, 3
      %v1323 = vpop.permute.xlu0 %1322
      %1324 = vrot.lane.b32.xlu0 %v1303, 3
      %v1325 = vpop.permute.xlu0 %1324
      %1326 = vrot.lane.b32.xlu0 %v1304, 3
      %v1327 = vpop.permute.xlu0 %1326
      %1328 = vrot.lane.b32.xlu0 %v1305, 3
      %v1329 = vpop.permute.xlu0 %1328
      %1330 = vrot.lane.b32.xlu0 %v1306, 3
      %v1331 = vpop.permute.xlu0 %1330
      %1332 = vrot.lane.b32.xlu0 %v1307, 3
      %v1333 = vpop.permute.xlu0 %1332
      %1334 = vrot.lane.b32.xlu0 %v1308, 3
      %v1335 = vpop.permute.xlu0 %1334
      %vm1336 = vcmask 23552
      %v1337 = vsel %vm1336, %v1321, %v1323
      %v1338 = vsel %vm1336, %v1325, %v1327
      %v1339 = vsel %vm1336, %v1329, %v1331
      %v1340 = vsel %vm1336, %v1333, %v1335
      %v1345 = vsel %vm1311, %v1337, 0.0
      %v1346 = vsel %vm1311, %v1338, 0.0
      %v1347 = vsel %vm1311, %v1339, 0.0
      %v1348 = vsel %vm1311, %v1340, 0.0
      %1349 = vst.msk [vmem:[#allocation3 + $0x80] sm:$0xff] %vm1032, %v1345
      %1350 = vst.msk [vmem:[#allocation3 + $0x90] sm:$0xff] %vm1032, %v1346
      %1351 = vst.msk [vmem:[#allocation3 + $0xa0] sm:$0xff] %vm1032, %v1347
      %1352 = vst.msk [vmem:[#allocation3 + $0xb0] sm:$0xff] %vm1032, %v1348
      %v1353 = vld [vmem:[#allocation2] sm:$0xff]
      %v1354 = vld [vmem:[#allocation2 + $0x8] sm:$0xff]
      %v1355 = vld [vmem:[#allocation2 + $0x20] sm:$0xff]
      %v1356 = vld [vmem:[#allocation2 + $0x28] sm:$0xff]
      %v1357 = vld [vmem:[#allocation2 + $0x40] sm:$0xff]
      %v1358 = vld [vmem:[#allocation2 + $0x48] sm:$0xff]
      %v1359 = vld [vmem:[#allocation2 + $0x60] sm:$0xff]
      %v1360 = vld [vmem:[#allocation2 + $0x68] sm:$0xff]
      %1369 = vrot.lane.b32.xlu0 %v1353, 1
      %v1370 = vpop.permute.xlu0 %1369
      %1371 = vrot.lane.b32.xlu0 %v1354, 1
      %v1372 = vpop.permute.xlu0 %1371
      %1373 = vrot.lane.b32.xlu0 %v1355, 1
      %v1374 = vpop.permute.xlu0 %1373
      %1375 = vrot.lane.b32.xlu0 %v1356, 1
      %v1376 = vpop.permute.xlu0 %1375
      %1377 = vrot.lane.b32.xlu0 %v1357, 1
      %v1378 = vpop.permute.xlu0 %1377
      %1379 = vrot.lane.b32.xlu0 %v1358, 1
      %v1380 = vpop.permute.xlu0 %1379
      %1381 = vrot.lane.b32.xlu0 %v1359, 1
      %v1382 = vpop.permute.xlu0 %1381
      %1383 = vrot.lane.b32.xlu0 %v1360, 1
      %v1384 = vpop.permute.xlu0 %1383
      %vm1385 = vcmask 7168
      %v1386 = vsel %vm1385, %v1370, %v1372
      %v1387 = vsel %vm1385, %v1374, %v1376
      %v1388 = vsel %vm1385, %v1378, %v1380
      %v1389 = vsel %vm1385, %v1382, %v1384
      %v1394 = vsel %vm1214, %v1386, 0.0
      %v1395 = vsel %vm1214, %v1387, 0.0
      %v1396 = vsel %vm1214, %v1388, 0.0
      %v1397 = vsel %vm1214, %v1389, 0.0
      %1398 = vst.msk [vmem:[#allocation3 + $0xc0] sm:$0xff] %vm1032, %v1394
      %1399 = vst.msk [vmem:[#allocation3 + $0xd0] sm:$0xff] %vm1032, %v1395
      %1400 = vst.msk [vmem:[#allocation3 + $0xe0] sm:$0xff] %vm1032, %v1396
      %1401 = vst.msk [vmem:[#allocation3 + $0xf0] sm:$0xff] %vm1032, %v1397
      %v1402 = vld [vmem:[#allocation2 + $0x8] sm:$0xff]
      %v1403 = vld [vmem:[#allocation2 + $0x28] sm:$0xff]
      %v1404 = vld [vmem:[#allocation2 + $0x48] sm:$0xff]
      %v1405 = vld [vmem:[#allocation2 + $0x68] sm:$0xff]
      %1406 = vst.msk [vmem:[#allocation3 + $0x100] sm:$0xff] %vm1032, %v1402
      %1407 = vst.msk [vmem:[#allocation3 + $0x110] sm:$0xff] %vm1032, %v1403
      %1408 = vst.msk [vmem:[#allocation3 + $0x120] sm:$0xff] %vm1032, %v1404
      %1409 = vst.msk [vmem:[#allocation3 + $0x130] sm:$0xff] %vm1032, %v1405
      %v1410 = vld [vmem:[#allocation2 + $0x8] sm:$0xff]
      %v1411 = vld [vmem:[#allocation2 + $0x28] sm:$0xff]
      %v1412 = vld [vmem:[#allocation2 + $0x48] sm:$0xff]
      %v1413 = vld [vmem:[#allocation2 + $0x68] sm:$0xff]
      %1418 = vrot.lane.b32.xlu0 %v1410, 127
      %v1419 = vpop.permute.xlu0 %1418
      %1420 = vrot.lane.b32.xlu0 %v1411, 127
      %v1421 = vpop.permute.xlu0 %1420
      %1422 = vrot.lane.b32.xlu0 %v1412, 127
      %v1423 = vpop.permute.xlu0 %1422
      %1424 = vrot.lane.b32.xlu0 %v1413, 127
      %v1425 = vpop.permute.xlu0 %1424
      %v1430 = vsel %vm1311, %v1419, 0.0
      %v1431 = vsel %vm1311, %v1421, 0.0
      %v1432 = vsel %vm1311, %v1423, 0.0
      %v1433 = vsel %vm1311, %v1425, 0.0
      %1434 = vst.msk [vmem:[#allocation3 + $0x140] sm:$0xff] %vm1032, %v1430
      %1435 = vst.msk [vmem:[#allocation3 + $0x150] sm:$0xff] %vm1032, %v1431
      %1436 = vst.msk [vmem:[#allocation3 + $0x160] sm:$0xff] %vm1032, %v1432
      %1437 = vst.msk [vmem:[#allocation3 + $0x170] sm:$0xff] %vm1032, %v1433
      %v1438 = vld [vmem:[#allocation2 + $0x8] sm:$0xff]
      %v1439 = vld [vmem:[#allocation2 + $0x28] sm:$0xff]
      %v1440 = vld [vmem:[#allocation2 + $0x48] sm:$0xff]
      %v1441 = vld [vmem:[#allocation2 + $0x68] sm:$0xff]
      %1446 = vrot.lane.b32.xlu0 %v1438, 125
      %v1447 = vpop.permute.xlu0 %1446
      %1448 = vrot.lane.b32.xlu0 %v1439, 125
      %v1449 = vpop.permute.xlu0 %1448
      %1450 = vrot.lane.b32.xlu0 %v1440, 125
      %v1451 = vpop.permute.xlu0 %1450
      %1452 = vrot.lane.b32.xlu0 %v1441, 125
      %v1453 = vpop.permute.xlu0 %1452
      %v1458 = vsel %vm1214, %v1447, 0.0
      %v1459 = vsel %vm1214, %v1449, 0.0
      %v1460 = vsel %vm1214, %v1451, 0.0
      %v1461 = vsel %vm1214, %v1453, 0.0
      %1462 = vst.msk [vmem:[#allocation3 + $0x180] sm:$0xff] %vm1032, %v1458
      %1463 = vst.msk [vmem:[#allocation3 + $0x190] sm:$0xff] %vm1032, %v1459
      %1464 = vst.msk [vmem:[#allocation3 + $0x1a0] sm:$0xff] %vm1032, %v1460
      %1465 = vst.msk [vmem:[#allocation3 + $0x1b0] sm:$0xff] %vm1032, %v1461
      %v1466 = vld [vmem:[#allocation2 + $0x8] sm:$0xff]
      %v1467 = vld [vmem:[#allocation2 + $0x28] sm:$0xff]
      %v1468 = vld [vmem:[#allocation2 + $0x48] sm:$0xff]
      %v1469 = vld [vmem:[#allocation2 + $0x68] sm:$0xff]
      %1474 = vrot.lane.b32.xlu0 %v1466, 124
      %v1475 = vpop.permute.xlu0 %1474
      %1476 = vrot.lane.b32.xlu0 %v1467, 124
      %v1477 = vpop.permute.xlu0 %1476
      %1478 = vrot.lane.b32.xlu0 %v1468, 124
      %v1479 = vpop.permute.xlu0 %1478
      %1480 = vrot.lane.b32.xlu0 %v1469, 124
      %v1481 = vpop.permute.xlu0 %1480
      %1486 = vst.msk [vmem:[#allocation3 + $0x1c0] sm:$0xff] %vm1032, %v1475
      %1487 = vst.msk [vmem:[#allocation3 + $0x1d0] sm:$0xff] %vm1032, %v1477
      %1488 = vst.msk [vmem:[#allocation3 + $0x1e0] sm:$0xff] %vm1032, %v1479
      %1489 = vst.msk [vmem:[#allocation3 + $0x1f0] sm:$0xff] %vm1032, %v1481
      %v1490 = vld [vmem:[#allocation2 + $0x8] sm:$0xff]
      %v1491 = vld [vmem:[#allocation2 + $0x28] sm:$0xff]
      %v1492 = vld [vmem:[#allocation2 + $0x48] sm:$0xff]
      %v1493 = vld [vmem:[#allocation2 + $0x68] sm:$0xff]
      %1498 = vrot.lane.b32.xlu0 %v1490, 123
      %v1499 = vpop.permute.xlu0 %1498
      %1500 = vrot.lane.b32.xlu0 %v1491, 123
      %v1501 = vpop.permute.xlu0 %1500
      %1502 = vrot.lane.b32.xlu0 %v1492, 123
      %v1503 = vpop.permute.xlu0 %1502
      %1504 = vrot.lane.b32.xlu0 %v1493, 123
      %v1505 = vpop.permute.xlu0 %1504
      %v1510 = vsel %vm1311, %v1499, 0.0
      %v1511 = vsel %vm1311, %v1501, 0.0
      %v1512 = vsel %vm1311, %v1503, 0.0
      %v1513 = vsel %vm1311, %v1505, 0.0
      %1514 = vst.msk [vmem:[#allocation3 + $0x200] sm:$0xff] %vm1032, %v1510
      %1515 = vst.msk [vmem:[#allocation3 + $0x210] sm:$0xff] %vm1032, %v1511
      %1516 = vst.msk [vmem:[#allocation3 + $0x220] sm:$0xff] %vm1032, %v1512
      %1517 = vst.msk [vmem:[#allocation3 + $0x230] sm:$0xff] %vm1032, %v1513
      %v1518 = vld [vmem:[#allocation3] sm:$0xff]
      %v1519 = vld [vmem:[#allocation3 + $0x10] sm:$0xff]
      %v1520 = vld [vmem:[#allocation3 + $0x20] sm:$0xff]
      %v1521 = vld [vmem:[#allocation3 + $0x30] sm:$0xff]
      %v1522 = vld [vmem:[#allocation3 + $0x40] sm:$0xff]
      %v1523 = vld [vmem:[#allocation3 + $0x50] sm:$0xff]
      %v1524 = vld [vmem:[#allocation3 + $0x60] sm:$0xff]
      %v1525 = vld [vmem:[#allocation3 + $0x70] sm:$0xff]
      %v1526 = vld [vmem:[#allocation3 + $0x80] sm:$0xff]
      %v1527 = vld [vmem:[#allocation3 + $0x90] sm:$0xff]
      %v1528 = vld [vmem:[#allocation3 + $0xa0] sm:$0xff]
      %v1529 = vld [vmem:[#allocation3 + $0xb0] sm:$0xff]
      %v1530 = vld [vmem:[#allocation3 + $0xc0] sm:$0xff]
      %v1531 = vld [vmem:[#allocation3 + $0xd0] sm:$0xff]
      %v1532 = vld [vmem:[#allocation3 + $0xe0] sm:$0xff]
      %v1533 = vld [vmem:[#allocation3 + $0xf0] sm:$0xff]
      %v1534 = vld [vmem:[#allocation3 + $0x100] sm:$0xff]
      %v1535 = vld [vmem:[#allocation3 + $0x110] sm:$0xff]
      %v1536 = vld [vmem:[#allocation3 + $0x120] sm:$0xff]
      %v1537 = vld [vmem:[#allocation3 + $0x130] sm:$0xff]
      %v1538 = vld [vmem:[#allocation3 + $0x140] sm:$0xff]
      %v1539 = vld [vmem:[#allocation3 + $0x150] sm:$0xff]
      %v1540 = vld [vmem:[#allocation3 + $0x160] sm:$0xff]
      %v1541 = vld [vmem:[#allocation3 + $0x170] sm:$0xff]
      %v1542 = vld [vmem:[#allocation3 + $0x180] sm:$0xff]
      %v1543 = vld [vmem:[#allocation3 + $0x190] sm:$0xff]
      %v1544 = vld [vmem:[#allocation3 + $0x1a0] sm:$0xff]
      %v1545 = vld [vmem:[#allocation3 + $0x1b0] sm:$0xff]
      %v1546 = vld [vmem:[#allocation3 + $0x1c0] sm:$0xff]
      %v1547 = vld [vmem:[#allocation3 + $0x1d0] sm:$0xff]
      %v1548 = vld [vmem:[#allocation3 + $0x1e0] sm:$0xff]
      %v1549 = vld [vmem:[#allocation3 + $0x1f0] sm:$0xff]
      %v1550 = vld [vmem:[#allocation3 + $0x200] sm:$0xff]
      %v1551 = vld [vmem:[#allocation3 + $0x210] sm:$0xff]
      %v1552 = vld [vmem:[#allocation3 + $0x220] sm:$0xff]
      %v1553 = vld [vmem:[#allocation3 + $0x230] sm:$0xff]
      %1555 = vset.pattern.permute.xlu0 0
      %1556 = vperm.xlu0 %1555, %v1177
      %v1557 = vpop.permute.xlu0 %1556
      %1560 = vset.pattern.permute.xlu0 0
      %1561 = vperm.xlu0 %1560, %v1178
      %v1562 = vpop.permute.xlu0 %1561
      %1565 = vset.pattern.permute.xlu0 0
      %1566 = vperm.xlu0 %1565, %v1179
      %v1567 = vpop.permute.xlu0 %1566
      %1570 = vset.pattern.permute.xlu0 0
      %1571 = vperm.xlu0 %1570, %v1180
      %v1572 = vpop.permute.xlu0 %1571
      %v1575 = vsel %vm986, %v1167, 0
      %v1578 = vsel %vm986, %v1170, 0
      %v1581 = vsel %vm986, %v1173, 0
      %v1584 = vsel %vm986, %v1176, 0
      %1586 = vmatpush.msra.mxu0 %v1533
      %1587 = vmatpush.msra.mxu0 %v1532
      %1588 = vmatpush.msra.mxu0 %v1531
      %1589 = vmatpush.msra.mxu0 %v1530
      %1590 = vmatpush.msra.mxu0 %v1529
      %1591 = vmatpush.msra.mxu0 %v1528
      %1592 = vmatpush.msra.mxu0 %v1527
      %1593 = vmatpush.msra.mxu0 %v1526
      %1594 = vmatpush.msra.mxu0 %v1525
      %1595 = vmatpush.msra.mxu0 %v1524
      %1596 = vmatpush.msra.mxu0 %v1523
      %1597 = vmatpush.msra.mxu0 %v1522
      %1598 = vmatpush.msra.mxu0 %v1521
      %1599 = vmatpush.msra.mxu0 %v1520
      %1600 = vmatpush.msra.mxu0 %v1519
      %1601 = vmatpush.msra.mxu0 %v1518
      %1602 = vmatmul.f32.gmra.mxu0 %v1165
      %v1603 = vpop.f32.mrf.mxu0
      %v1604 = vadd.f32 %v1557, %v1603
      %1605 = vmatmul.f32.gmra.mxu0 %v1168
      %v1606 = vpop.f32.mrf.mxu0
      %v1607 = vadd.f32 %v1562, %v1606
      %1608 = vmatmul.f32.gmra.mxu0 %v1171
      %v1609 = vpop.f32.mrf.mxu0
      %v1610 = vadd.f32 %v1567, %v1609
      %1611 = vmatmul.f32.gmra.mxu0 %v1174
      %v1612 = vpop.f32.mrf.mxu0
      %v1613 = vadd.f32 %v1572, %v1612
      %1614 = vdwg.mxu0
      %1615 = vmatpush.msra.mxu0 %v1549
      %1616 = vmatpush.msra.mxu0 %v1548
      %1617 = vmatpush.msra.mxu0 %v1547
      %1618 = vmatpush.msra.mxu0 %v1546
      %1619 = vmatpush.msra.mxu0 %v1545
      %1620 = vmatpush.msra.mxu0 %v1544
      %1621 = vmatpush.msra.mxu0 %v1543
      %1622 = vmatpush.msra.mxu0 %v1542
      %1623 = vmatpush.msra.mxu0 %v1541
      %1624 = vmatpush.msra.mxu0 %v1540
      %1625 = vmatpush.msra.mxu0 %v1539
      %1626 = vmatpush.msra.mxu0 %v1538
      %1627 = vmatpush.msra.mxu0 %v1537
      %1628 = vmatpush.msra.mxu0 %v1536
      %1629 = vmatpush.msra.mxu0 %v1535
      %1630 = vmatpush.msra.mxu0 %v1534
      %1631 = vmatmul.f32.gmra.mxu0 %v1166
      %v1632 = vpop.f32.mrf.mxu0
      %v1633 = vadd.f32 %v1604, %v1632
      %1634 = vmatmul.f32.gmra.mxu0 %v1169
      %v1635 = vpop.f32.mrf.mxu0
      %v1636 = vadd.f32 %v1607, %v1635
      %1637 = vmatmul.f32.gmra.mxu0 %v1172
      %v1638 = vpop.f32.mrf.mxu0
      %v1639 = vadd.f32 %v1610, %v1638
      %1640 = vmatmul.f32.gmra.mxu0 %v1175
      %v1641 = vpop.f32.mrf.mxu0
      %v1642 = vadd.f32 %v1613, %v1641
      %1643 = vdwg.mxu0
      %1644 = vmatpush.msra.mxu0 0.0
      %1645 = vmatpush.msra.mxu0 0.0
      %1646 = vmatpush.msra.mxu0 0.0
      %1647 = vmatpush.msra.mxu0 0.0
      %1648 = vmatpush.msra.mxu0 0.0
      %1649 = vmatpush.msra.mxu0 0.0
      %1650 = vmatpush.msra.mxu0 0.0
      %1651 = vmatpush.msra.mxu0 0.0
      %1652 = vmatpush.msra.mxu0 0.0
      %1653 = vmatpush.msra.mxu0 0.0
      %1654 = vmatpush.msra.mxu0 0.0
      %1655 = vmatpush.msra.mxu0 0.0
      %1656 = vmatpush.msra.mxu0 %v1553
      %1657 = vmatpush.msra.mxu0 %v1552
      %1658 = vmatpush.msra.mxu0 %v1551
      %1659 = vmatpush.msra.mxu0 %v1550
      %1660 = vmatmul.f32.gmra.mxu0 %v1575
      %v1661 = vpop.f32.mrf.mxu0
      %v1662 = vadd.f32 %v1633, %v1661
      %1663 = vmatmul.f32.gmra.mxu0 %v1578
      %v1664 = vpop.f32.mrf.mxu0
      %v1665 = vadd.f32 %v1636, %v1664
      %1666 = vmatmul.f32.gmra.mxu0 %v1581
      %v1667 = vpop.f32.mrf.mxu0
      %v1668 = vadd.f32 %v1639, %v1667
      %1669 = vmatmul.f32.gmra.mxu0 %v1584
      %v1670 = vpop.f32.mrf.mxu0
      %v1671 = vadd.f32 %v1642, %v1670
      %1672 = vdwg.mxu0
      %v1673 = vld [vmem:[%s19] sm:$0xff]
      %v1674 = vld [vmem:[%s19 + $0x8] sm:$0xff]
      %v1675 = vld [vmem:[%s19 + $0x10] sm:$0xff]
      %v1676 = vld [vmem:[%s19 + $0x18] sm:$0xff]
      %v1677 = vld [vmem:[%s21] sm:$0xff]
      %v1678 = vld [vmem:[%s21 + $0x8] sm:$0xff]
      %v1679 = vld [vmem:[%s21 + $0x10] sm:$0xff]
      %v1680 = vld [vmem:[%s21 + $0x18] sm:$0xff]
      %1682 = vset.pattern.permute.xlu0 0
      %1683 = vperm.xlu0 %1682, %v1677
      %v1684 = vpop.permute.xlu0 %1683
      %1687 = vset.pattern.permute.xlu0 0
      %1688 = vperm.xlu0 %1687, %v1678
      %v1689 = vpop.permute.xlu0 %1688
      %1692 = vset.pattern.permute.xlu0 0
      %1693 = vperm.xlu0 %1692, %v1679
      %v1694 = vpop.permute.xlu0 %1693
      %1697 = vset.pattern.permute.xlu0 0
      %1698 = vperm.xlu0 %1697, %v1680
      %v1699 = vpop.permute.xlu0 %1698
      %vm1701 = vcmask 195584
      %v1703 = vsel %vm1701, %v1673, 0
      %v1706 = vsel %vm1701, %v1674, 0
      %v1709 = vsel %vm1701, %v1675, 0
      %v1712 = vsel %vm1701, %v1676, 0
      %1714 = vmatpush.msra.mxu0 0.0
      %1715 = vmatpush.msra.mxu0 0.0
      %1716 = vmatpush.msra.mxu0 0.0
      %1717 = vmatpush.msra.mxu0 0.0
      %1718 = vmatpush.msra.mxu0 0.0
      %1719 = vmatpush.msra.mxu0 0.0
      %1720 = vmatpush.msra.mxu0 0.0
      %1721 = vmatpush.msra.mxu0 0.0
      %1722 = vmatpush.msra.mxu0 0.0
      %1723 = vmatpush.msra.mxu0 0.0
      %1724 = vmatpush.msra.mxu0 0.0
      %1725 = vmatpush.msra.mxu0 0.0
      %1726 = vmatpush.msra.mxu0 0.0
      %1727 = vmatpush.msra.mxu0 %v977
      %1728 = vmatpush.msra.mxu0 %v976
      %1729 = vmatpush.msra.mxu0 %v975
      %1730 = vmatmul.f32.gmra.mxu0 %v1703
      %v1731 = vpop.f32.mrf.mxu0
      %v1732 = vadd.f32 %v1684, %v1731
      %1733 = vmatmul.f32.gmra.mxu0 %v1706
      %v1734 = vpop.f32.mrf.mxu0
      %v1735 = vadd.f32 %v1689, %v1734
      %1736 = vmatmul.f32.gmra.mxu0 %v1709
      %v1737 = vpop.f32.mrf.mxu0
      %v1738 = vadd.f32 %v1694, %v1737
      %1739 = vmatmul.f32.gmra.mxu0 %v1712
      %v1740 = vpop.f32.mrf.mxu0
      %v1741 = vadd.f32 %v1699, %v1740
      %1742 = vdwg.mxu0
      %v1743 = vadd.f32 %v1732, %v1154
      %v1744 = vadd.f32 %v1735, %v1157
      %v1745 = vadd.f32 %v1738, %v1160
      %v1746 = vadd.f32 %v1741, %v1163
      %v1747 = vld [vmem:[%s9] sm:$0xff]
      %v1748 = vld [vmem:[%s9 + $0x8] sm:$0xff]
      %v1749 = vld [vmem:[%s9 + $0x10] sm:$0xff]
      %v1750 = vld [vmem:[%s9 + $0x18] sm:$0xff]
      %v1751 = vld [vmem:[%s9 + $0x20] sm:$0xff]
      %v1752 = vld [vmem:[%s9 + $0x28] sm:$0xff]
      %v1753 = vld [vmem:[%s9 + $0x30] sm:$0xff]
      %v1754 = vld [vmem:[%s9 + $0x38] sm:$0xff]
      %v1755 = vld [vmem:[%s9 + $0x40] sm:$0xff]
      %v1756 = vld [vmem:[%s9 + $0x48] sm:$0xff]
      %v1757 = vld [vmem:[%s9 + $0x50] sm:$0xff]
      %v1758 = vld [vmem:[%s9 + $0x58] sm:$0xff]
      %v1759 = vld [vmem:[%s9 + $0x60] sm:$0xff]
      %v1760 = vld [vmem:[%s9 + $0x68] sm:$0xff]
      %v1761 = vld [vmem:[%s9 + $0x70] sm:$0xff]
      %v1762 = vld [vmem:[%s9 + $0x78] sm:$0xff]
      %vm1763 = vcmask 523264
      %v1765 = vsel %vm1763, %v1743, 0
      %v1768 = vsel %vm1763, %v1744, 0
      %v1771 = vsel %vm1763, %v1745, 0
      %v1774 = vsel %vm1763, %v1746, 0
      %1776 = vmatpush.msra.mxu0 0.0
      %1777 = vmatpush.msra.mxu0 0.0
      %1778 = vmatpush.msra.mxu0 0.0
      %1779 = vmatpush.msra.mxu0 0.0
      %1780 = vmatpush.msra.mxu0 0.0
      %1781 = vmatpush.msra.mxu0 0.0
      %1782 = vmatpush.msra.mxu0 0.0
      %1783 = vmatpush.msra.mxu0 0.0
      %1784 = vmatpush.msra.mxu0 %v1761
      %1785 = vmatpush.msra.mxu0 %v1759
      %1786 = vmatpush.msra.mxu0 %v1757
      %1787 = vmatpush.msra.mxu0 %v1755
      %1788 = vmatpush.msra.mxu0 %v1753
      %1789 = vmatpush.msra.mxu0 %v1751
      %1790 = vmatpush.msra.mxu0 %v1749
      %1791 = vmatpush.msra.mxu0 %v1747
      %1792 = vmatmul.f32.gmra.mxu0 %v1765
      %v1793 = vpop.f32.mrf.mxu0
      %v1794 = vadd.f32 0.0, %v1793
      %1795 = vmatmul.f32.gmra.mxu0 %v1768
      %v1796 = vpop.f32.mrf.mxu0
      %v1797 = vadd.f32 0.0, %v1796
      %1798 = vmatmul.f32.gmra.mxu0 %v1771
      %v1799 = vpop.f32.mrf.mxu0
      %v1800 = vadd.f32 0.0, %v1799
      %1801 = vmatmul.f32.gmra.mxu0 %v1774
      %v1802 = vpop.f32.mrf.mxu0
      %v1803 = vadd.f32 0.0, %v1802
      %1804 = vdwg.mxu0
      %1805 = vmatpush.msra.mxu0 0.0
      %1806 = vmatpush.msra.mxu0 0.0
      %1807 = vmatpush.msra.mxu0 0.0
      %1808 = vmatpush.msra.mxu0 0.0
      %1809 = vmatpush.msra.mxu0 0.0
      %1810 = vmatpush.msra.mxu0 0.0
      %1811 = vmatpush.msra.mxu0 0.0
      %1812 = vmatpush.msra.mxu0 0.0
      %1813 = vmatpush.msra.mxu0 %v1762
      %1814 = vmatpush.msra.mxu0 %v1760
      %1815 = vmatpush.msra.mxu0 %v1758
      %1816 = vmatpush.msra.mxu0 %v1756
      %1817 = vmatpush.msra.mxu0 %v1754
      %1818 = vmatpush.msra.mxu0 %v1752
      %1819 = vmatpush.msra.mxu0 %v1750
      %1820 = vmatpush.msra.mxu0 %v1748
      %1821 = vmatmul.f32.gmra.mxu0 %v1765
      %v1822 = vpop.f32.mrf.mxu0
      %v1823 = vadd.f32 0.0, %v1822
      %1824 = vmatmul.f32.gmra.mxu0 %v1768
      %v1825 = vpop.f32.mrf.mxu0
      %v1826 = vadd.f32 0.0, %v1825
      %1827 = vmatmul.f32.gmra.mxu0 %v1771
      %v1828 = vpop.f32.mrf.mxu0
      %v1829 = vadd.f32 0.0, %v1828
      %1830 = vmatmul.f32.gmra.mxu0 %v1774
      %v1831 = vpop.f32.mrf.mxu0
      %v1832 = vadd.f32 0.0, %v1831
      %1833 = vdwg.mxu0
      %v1834 = vld [vmem:[%s23] sm:$0xff]
      %v1835 = vld [vmem:[%s23 + $0x8] sm:$0xff]
      %v1836 = vld [vmem:[%s23 + $0x10] sm:$0xff]
      %v1837 = vld [vmem:[%s23 + $0x18] sm:$0xff]
      %v1838 = vld [vmem:[%s23 + $0x20] sm:$0xff]
      %v1839 = vld [vmem:[%s23 + $0x28] sm:$0xff]
      %v1840 = vld [vmem:[%s23 + $0x30] sm:$0xff]
      %v1841 = vld [vmem:[%s23 + $0x38] sm:$0xff]
      %v1842 = vld [vmem:[%s23 + $0x40] sm:$0xff]
      %v1843 = vld [vmem:[%s23 + $0x48] sm:$0xff]
      %v1844 = vld [vmem:[%s23 + $0x50] sm:$0xff]
      %v1845 = vld [vmem:[%s23 + $0x58] sm:$0xff]
      %v1846 = vld [vmem:[%s25] sm:$0xff]
      %v1847 = vld [vmem:[%s25 + $0x8] sm:$0xff]
      %v1848 = vld [vmem:[%s25 + $0x10] sm:$0xff]
      %v1849 = vld [vmem:[%s25 + $0x18] sm:$0xff]
      %1850 = vst [vmem:[#allocation2] sm:$0xff] 0.0
      %1851 = vst [vmem:[#allocation2 + $0x8] sm:$0xff] 0.0
      %1852 = vst [vmem:[#allocation2 + $0x10] sm:$0xff] 0.0
      %1853 = vst [vmem:[#allocation2 + $0x18] sm:$0xff] 0.0
      %1854 = vst [vmem:[#allocation2 + $0x20] sm:$0xff] 0.0
      %1855 = vst [vmem:[#allocation2 + $0x28] sm:$0xff] 0.0
      %1856 = vst [vmem:[#allocation2 + $0x30] sm:$0xff] 0.0
      %1857 = vst [vmem:[#allocation2 + $0x38] sm:$0xff] 0.0
      %1858 = vst [vmem:[#allocation2 + $0x40] sm:$0xff] 0.0
      %1859 = vst [vmem:[#allocation2 + $0x48] sm:$0xff] 0.0
      %1860 = vst [vmem:[#allocation2 + $0x50] sm:$0xff] 0.0
      %1861 = vst [vmem:[#allocation2 + $0x58] sm:$0xff] 0.0
      %1862 = vst [vmem:[#allocation2 + $0x60] sm:$0xff] 0.0
      %1863 = vst [vmem:[#allocation2 + $0x68] sm:$0xff] 0.0
      %1864 = vst [vmem:[#allocation2 + $0x70] sm:$0xff] 0.0
      %1865 = vst [vmem:[#allocation2 + $0x78] sm:$0xff] 0.0
      %1866 = vst.msk [vmem:[#allocation2 + $0x8] sm:$0xff] %vm1763, %v1743
      %1867 = vst.msk [vmem:[#allocation2 + $0x28] sm:$0xff] %vm1763, %v1744
      %1868 = vst.msk [vmem:[#allocation2 + $0x48] sm:$0xff] %vm1763, %v1745
      %1869 = vst.msk [vmem:[#allocation2 + $0x68] sm:$0xff] %vm1763, %v1746
      %v1870 = vand.u32 %v1202, 7
      %v1871 = vld [vmem:[#allocation2] sm:$0xff]
      %v1872 = vld [vmem:[#allocation2 + $0x8] sm:$0xff]
      %v1873 = vld [vmem:[#allocation2 + $0x20] sm:$0xff]
      %v1874 = vld [vmem:[#allocation2 + $0x28] sm:$0xff]
      %v1875 = vld [vmem:[#allocation2 + $0x40] sm:$0xff]
      %v1876 = vld [vmem:[#allocation2 + $0x48] sm:$0xff]
      %v1877 = vld [vmem:[#allocation2 + $0x60] sm:$0xff]
      %v1878 = vld [vmem:[#allocation2 + $0x68] sm:$0xff]
      %vm1879 = vcmp.ge.s32.totalorder %v1870, 1
      %v1880 = vsel %vm1879, 1, 0
      %vm1881 = vcmp.eq.s32.totalorder %v1880, 1
      %1890 = vrot.lane.b32.xlu0 %v1871, 9
      %v1891 = vpop.permute.xlu0 %1890
      %1892 = vrot.lane.b32.xlu0 %v1872, 9
      %v1893 = vpop.permute.xlu0 %1892
      %1894 = vrot.lane.b32.xlu0 %v1873, 9
      %v1895 = vpop.permute.xlu0 %1894
      %1896 = vrot.lane.b32.xlu0 %v1874, 9
      %v1897 = vpop.permute.xlu0 %1896
      %1898 = vrot.lane.b32.xlu0 %v1875, 9
      %v1899 = vpop.permute.xlu0 %1898
      %1900 = vrot.lane.b32.xlu0 %v1876, 9
      %v1901 = vpop.permute.xlu0 %1900
      %1902 = vrot.lane.b32.xlu0 %v1877, 9
      %v1903 = vpop.permute.xlu0 %1902
      %1904 = vrot.lane.b32.xlu0 %v1878, 9
      %v1905 = vpop.permute.xlu0 %1904
      %vm1906 = vcmask 72704
      %v1907 = vsel %vm1906, %v1891, %v1893
      %v1908 = vsel %vm1906, %v1895, %v1897
      %v1909 = vsel %vm1906, %v1899, %v1901
      %v1910 = vsel %vm1906, %v1903, %v1905
      %v1915 = vsel %vm1881, %v1907, 0.0
      %v1916 = vsel %vm1881, %v1908, 0.0
      %v1917 = vsel %vm1881, %v1909, 0.0
      %v1918 = vsel %vm1881, %v1910, 0.0
      %1919 = vst.msk [vmem:[#allocation3] sm:$0xff] %vm1763, %v1915
      %1920 = vst.msk [vmem:[#allocation3 + $0x10] sm:$0xff] %vm1763, %v1916
      %1921 = vst.msk [vmem:[#allocation3 + $0x20] sm:$0xff] %vm1763, %v1917
      %1922 = vst.msk [vmem:[#allocation3 + $0x30] sm:$0xff] %vm1763, %v1918
      %v1923 = vld [vmem:[#allocation2] sm:$0xff]
      %v1924 = vld [vmem:[#allocation2 + $0x8] sm:$0xff]
      %v1925 = vld [vmem:[#allocation2 + $0x20] sm:$0xff]
      %v1926 = vld [vmem:[#allocation2 + $0x28] sm:$0xff]
      %v1927 = vld [vmem:[#allocation2 + $0x40] sm:$0xff]
      %v1928 = vld [vmem:[#allocation2 + $0x48] sm:$0xff]
      %v1929 = vld [vmem:[#allocation2 + $0x60] sm:$0xff]
      %v1930 = vld [vmem:[#allocation2 + $0x68] sm:$0xff]
      %1939 = vrot.lane.b32.xlu0 %v1923, 8
      %v1940 = vpop.permute.xlu0 %1939
      %1941 = vrot.lane.b32.xlu0 %v1924, 8
      %v1942 = vpop.permute.xlu0 %1941
      %1943 = vrot.lane.b32.xlu0 %v1925, 8
      %v1944 = vpop.permute.xlu0 %1943
      %1945 = vrot.lane.b32.xlu0 %v1926, 8
      %v1946 = vpop.permute.xlu0 %1945
      %1947 = vrot.lane.b32.xlu0 %v1927, 8
      %v1948 = vpop.permute.xlu0 %1947
      %1949 = vrot.lane.b32.xlu0 %v1928, 8
      %v1950 = vpop.permute.xlu0 %1949
      %1951 = vrot.lane.b32.xlu0 %v1929, 8
      %v1952 = vpop.permute.xlu0 %1951
      %1953 = vrot.lane.b32.xlu0 %v1930, 8
      %v1954 = vpop.permute.xlu0 %1953
      %vm1955 = vcmask 64512
      %v1956 = vsel %vm1955, %v1940, %v1942
      %v1957 = vsel %vm1955, %v1944, %v1946
      %v1958 = vsel %vm1955, %v1948, %v1950
      %v1959 = vsel %vm1955, %v1952, %v1954
      %1964 = vst.msk [vmem:[#allocation3 + $0x40] sm:$0xff] %vm1763, %v1956
      %1965 = vst.msk [vmem:[#allocation3 + $0x50] sm:$0xff] %vm1763, %v1957
      %1966 = vst.msk [vmem:[#allocation3 + $0x60] sm:$0xff] %vm1763, %v1958
      %1967 = vst.msk [vmem:[#allocation3 + $0x70] sm:$0xff] %vm1763, %v1959
      %v1968 = vld [vmem:[#allocation2] sm:$0xff]
      %v1969 = vld [vmem:[#allocation2 + $0x8] sm:$0xff]
      %v1970 = vld [vmem:[#allocation2 + $0x20] sm:$0xff]
      %v1971 = vld [vmem:[#allocation2 + $0x28] sm:$0xff]
      %v1972 = vld [vmem:[#allocation2 + $0x40] sm:$0xff]
      %v1973 = vld [vmem:[#allocation2 + $0x48] sm:$0xff]
      %v1974 = vld [vmem:[#allocation2 + $0x60] sm:$0xff]
      %v1975 = vld [vmem:[#allocation2 + $0x68] sm:$0xff]
      %vm1976 = vcmp.le.s32.totalorder %v1870, 6
      %v1977 = vsel %vm1976, 1, 0
      %vm1978 = vcmp.eq.s32.totalorder %v1977, 1
      %1987 = vrot.lane.b32.xlu0 %v1968, 7
      %v1988 = vpop.permute.xlu0 %1987
      %1989 = vrot.lane.b32.xlu0 %v1969, 7
      %v1990 = vpop.permute.xlu0 %1989
      %1991 = vrot.lane.b32.xlu0 %v1970, 7
      %v1992 = vpop.permute.xlu0 %1991
      %1993 = vrot.lane.b32.xlu0 %v1971, 7
      %v1994 = vpop.permute.xlu0 %1993
      %1995 = vrot.lane.b32.xlu0 %v1972, 7
      %v1996 = vpop.permute.xlu0 %1995
      %1997 = vrot.lane.b32.xlu0 %v1973, 7
      %v1998 = vpop.permute.xlu0 %1997
      %1999 = vrot.lane.b32.xlu0 %v1974, 7
      %v2000 = vpop.permute.xlu0 %1999
      %2001 = vrot.lane.b32.xlu0 %v1975, 7
      %v2002 = vpop.permute.xlu0 %2001
      %vm2003 = vcmask 56320
      %v2004 = vsel %vm2003, %v1988, %v1990
      %v2005 = vsel %vm2003, %v1992, %v1994
      %v2006 = vsel %vm2003, %v1996, %v1998
      %v2007 = vsel %vm2003, %v2000, %v2002
      %v2012 = vsel %vm1978, %v2004, 0.0
      %v2013 = vsel %vm1978, %v2005, 0.0
      %v2014 = vsel %vm1978, %v2006, 0.0
      %v2015 = vsel %vm1978, %v2007, 0.0
      %2016 = vst.msk [vmem:[#allocation3 + $0x80] sm:$0xff] %vm1763, %v2012
      %2017 = vst.msk [vmem:[#allocation3 + $0x90] sm:$0xff] %vm1763, %v2013
      %2018 = vst.msk [vmem:[#allocation3 + $0xa0] sm:$0xff] %vm1763, %v2014
      %2019 = vst.msk [vmem:[#allocation3 + $0xb0] sm:$0xff] %vm1763, %v2015
      %v2020 = vld [vmem:[#allocation2] sm:$0xff]
      %v2021 = vld [vmem:[#allocation2 + $0x8] sm:$0xff]
      %v2022 = vld [vmem:[#allocation2 + $0x20] sm:$0xff]
      %v2023 = vld [vmem:[#allocation2 + $0x28] sm:$0xff]
      %v2024 = vld [vmem:[#allocation2 + $0x40] sm:$0xff]
      %v2025 = vld [vmem:[#allocation2 + $0x48] sm:$0xff]
      %v2026 = vld [vmem:[#allocation2 + $0x60] sm:$0xff]
      %v2027 = vld [vmem:[#allocation2 + $0x68] sm:$0xff]
      %2036 = vrot.lane.b32.xlu0 %v2020, 1
      %v2037 = vpop.permute.xlu0 %2036
      %2038 = vrot.lane.b32.xlu0 %v2021, 1
      %v2039 = vpop.permute.xlu0 %2038
      %2040 = vrot.lane.b32.xlu0 %v2022, 1
      %v2041 = vpop.permute.xlu0 %2040
      %2042 = vrot.lane.b32.xlu0 %v2023, 1
      %v2043 = vpop.permute.xlu0 %2042
      %2044 = vrot.lane.b32.xlu0 %v2024, 1
      %v2045 = vpop.permute.xlu0 %2044
      %2046 = vrot.lane.b32.xlu0 %v2025, 1
      %v2047 = vpop.permute.xlu0 %2046
      %2048 = vrot.lane.b32.xlu0 %v2026, 1
      %v2049 = vpop.permute.xlu0 %2048
      %2050 = vrot.lane.b32.xlu0 %v2027, 1
      %v2051 = vpop.permute.xlu0 %2050
      %v2052 = vsel %vm1385, %v2037, %v2039
      %v2053 = vsel %vm1385, %v2041, %v2043
      %v2054 = vsel %vm1385, %v2045, %v2047
      %v2055 = vsel %vm1385, %v2049, %v2051
      %v2060 = vsel %vm1881, %v2052, 0.0
      %v2061 = vsel %vm1881, %v2053, 0.0
      %v2062 = vsel %vm1881, %v2054, 0.0
      %v2063 = vsel %vm1881, %v2055, 0.0
      %2064 = vst.msk [vmem:[#allocation3 + $0xc0] sm:$0xff] %vm1763, %v2060
      %2065 = vst.msk [vmem:[#allocation3 + $0xd0] sm:$0xff] %vm1763, %v2061
      %2066 = vst.msk [vmem:[#allocation3 + $0xe0] sm:$0xff] %vm1763, %v2062
      %2067 = vst.msk [vmem:[#allocation3 + $0xf0] sm:$0xff] %vm1763, %v2063
      %v2068 = vld [vmem:[#allocation2 + $0x8] sm:$0xff]
      %v2069 = vld [vmem:[#allocation2 + $0x28] sm:$0xff]
      %v2070 = vld [vmem:[#allocation2 + $0x48] sm:$0xff]
      %v2071 = vld [vmem:[#allocation2 + $0x68] sm:$0xff]
      %2072 = vst.msk [vmem:[#allocation3 + $0x100] sm:$0xff] %vm1763, %v2068
      %2073 = vst.msk [vmem:[#allocation3 + $0x110] sm:$0xff] %vm1763, %v2069
      %2074 = vst.msk [vmem:[#allocation3 + $0x120] sm:$0xff] %vm1763, %v2070
      %2075 = vst.msk [vmem:[#allocation3 + $0x130] sm:$0xff] %vm1763, %v2071
      %v2076 = vld [vmem:[#allocation2 + $0x8] sm:$0xff]
      %v2077 = vld [vmem:[#allocation2 + $0x28] sm:$0xff]
      %v2078 = vld [vmem:[#allocation2 + $0x48] sm:$0xff]
      %v2079 = vld [vmem:[#allocation2 + $0x68] sm:$0xff]
      %2084 = vrot.lane.b32.xlu0 %v2076, 127
      %v2085 = vpop.permute.xlu0 %2084
      %2086 = vrot.lane.b32.xlu0 %v2077, 127
      %v2087 = vpop.permute.xlu0 %2086
      %2088 = vrot.lane.b32.xlu0 %v2078, 127
      %v2089 = vpop.permute.xlu0 %2088
      %2090 = vrot.lane.b32.xlu0 %v2079, 127
      %v2091 = vpop.permute.xlu0 %2090
      %v2096 = vsel %vm1978, %v2085, 0.0
      %v2097 = vsel %vm1978, %v2087, 0.0
      %v2098 = vsel %vm1978, %v2089, 0.0
      %v2099 = vsel %vm1978, %v2091, 0.0
      %2100 = vst.msk [vmem:[#allocation3 + $0x140] sm:$0xff] %vm1763, %v2096
      %2101 = vst.msk [vmem:[#allocation3 + $0x150] sm:$0xff] %vm1763, %v2097
      %2102 = vst.msk [vmem:[#allocation3 + $0x160] sm:$0xff] %vm1763, %v2098
      %2103 = vst.msk [vmem:[#allocation3 + $0x170] sm:$0xff] %vm1763, %v2099
      %v2104 = vld [vmem:[#allocation2 + $0x8] sm:$0xff]
      %v2105 = vld [vmem:[#allocation2 + $0x28] sm:$0xff]
      %v2106 = vld [vmem:[#allocation2 + $0x48] sm:$0xff]
      %v2107 = vld [vmem:[#allocation2 + $0x68] sm:$0xff]
      %2112 = vrot.lane.b32.xlu0 %v2104, 121
      %v2113 = vpop.permute.xlu0 %2112
      %2114 = vrot.lane.b32.xlu0 %v2105, 121
      %v2115 = vpop.permute.xlu0 %2114
      %2116 = vrot.lane.b32.xlu0 %v2106, 121
      %v2117 = vpop.permute.xlu0 %2116
      %2118 = vrot.lane.b32.xlu0 %v2107, 121
      %v2119 = vpop.permute.xlu0 %2118
      %v2124 = vsel %vm1881, %v2113, 0.0
      %v2125 = vsel %vm1881, %v2115, 0.0
      %v2126 = vsel %vm1881, %v2117, 0.0
      %v2127 = vsel %vm1881, %v2119, 0.0
      %2128 = vst.msk [vmem:[#allocation3 + $0x180] sm:$0xff] %vm1763, %v2124
      %2129 = vst.msk [vmem:[#allocation3 + $0x190] sm:$0xff] %vm1763, %v2125
      %2130 = vst.msk [vmem:[#allocation3 + $0x1a0] sm:$0xff] %vm1763, %v2126
      %2131 = vst.msk [vmem:[#allocation3 + $0x1b0] sm:$0xff] %vm1763, %v2127
      %v2132 = vld [vmem:[#allocation2 + $0x8] sm:$0xff]
      %v2133 = vld [vmem:[#allocation2 + $0x28] sm:$0xff]
      %v2134 = vld [vmem:[#allocation2 + $0x48] sm:$0xff]
      %v2135 = vld [vmem:[#allocation2 + $0x68] sm:$0xff]
      %2140 = vrot.lane.b32.xlu0 %v2132, 120
      %v2141 = vpop.permute.xlu0 %2140
      %2142 = vrot.lane.b32.xlu0 %v2133, 120
      %v2143 = vpop.permute.xlu0 %2142
      %2144 = vrot.lane.b32.xlu0 %v2134, 120
      %v2145 = vpop.permute.xlu0 %2144
      %2146 = vrot.lane.b32.xlu0 %v2135, 120
      %v2147 = vpop.permute.xlu0 %2146
      %2152 = vst.msk [vmem:[#allocation3 + $0x1c0] sm:$0xff] %vm1763, %v2141
      %2153 = vst.msk [vmem:[#allocation3 + $0x1d0] sm:$0xff] %vm1763, %v2143
      %2154 = vst.msk [vmem:[#allocation3 + $0x1e0] sm:$0xff] %vm1763, %v2145
      %2155 = vst.msk [vmem:[#allocation3 + $0x1f0] sm:$0xff] %vm1763, %v2147
      %v2156 = vld [vmem:[#allocation2 + $0x8] sm:$0xff]
      %v2157 = vld [vmem:[#allocation2 + $0x28] sm:$0xff]
      %v2158 = vld [vmem:[#allocation2 + $0x48] sm:$0xff]
      %v2159 = vld [vmem:[#allocation2 + $0x68] sm:$0xff]
      %2164 = vrot.lane.b32.xlu0 %v2156, 119
      %v2165 = vpop.permute.xlu0 %2164
      %2166 = vrot.lane.b32.xlu0 %v2157, 119
      %v2167 = vpop.permute.xlu0 %2166
      %2168 = vrot.lane.b32.xlu0 %v2158, 119
      %v2169 = vpop.permute.xlu0 %2168
      %2170 = vrot.lane.b32.xlu0 %v2159, 119
      %v2171 = vpop.permute.xlu0 %2170
      %v2176 = vsel %vm1978, %v2165, 0.0
      %v2177 = vsel %vm1978, %v2167, 0.0
      %v2178 = vsel %vm1978, %v2169, 0.0
      %v2179 = vsel %vm1978, %v2171, 0.0
      %2180 = vst.msk [vmem:[#allocation3 + $0x200] sm:$0xff] %vm1763, %v2176
      %2181 = vst.msk [vmem:[#allocation3 + $0x210] sm:$0xff] %vm1763, %v2177
      %2182 = vst.msk [vmem:[#allocation3 + $0x220] sm:$0xff] %vm1763, %v2178
      %2183 = vst.msk [vmem:[#allocation3 + $0x230] sm:$0xff] %vm1763, %v2179
      %v2184 = vld [vmem:[#allocation3] sm:$0xff]
      %v2185 = vld [vmem:[#allocation3 + $0x10] sm:$0xff]
      %v2186 = vld [vmem:[#allocation3 + $0x20] sm:$0xff]
      %v2187 = vld [vmem:[#allocation3 + $0x30] sm:$0xff]
      %v2188 = vld [vmem:[#allocation3 + $0x40] sm:$0xff]
      %v2189 = vld [vmem:[#allocation3 + $0x50] sm:$0xff]
      %v2190 = vld [vmem:[#allocation3 + $0x60] sm:$0xff]
      %v2191 = vld [vmem:[#allocation3 + $0x70] sm:$0xff]
      %v2192 = vld [vmem:[#allocation3 + $0x80] sm:$0xff]
      %v2193 = vld [vmem:[#allocation3 + $0x90] sm:$0xff]
      %v2194 = vld [vmem:[#allocation3 + $0xa0] sm:$0xff]
      %v2195 = vld [vmem:[#allocation3 + $0xb0] sm:$0xff]
      %v2196 = vld [vmem:[#allocation3 + $0xc0] sm:$0xff]
      %v2197 = vld [vmem:[#allocation3 + $0xd0] sm:$0xff]
      %v2198 = vld [vmem:[#allocation3 + $0xe0] sm:$0xff]
      %v2199 = vld [vmem:[#allocation3 + $0xf0] sm:$0xff]
      %v2200 = vld [vmem:[#allocation3 + $0x100] sm:$0xff]
      %v2201 = vld [vmem:[#allocation3 + $0x110] sm:$0xff]
      %v2202 = vld [vmem:[#allocation3 + $0x120] sm:$0xff]
      %v2203 = vld [vmem:[#allocation3 + $0x130] sm:$0xff]
      %v2204 = vld [vmem:[#allocation3 + $0x140] sm:$0xff]
      %v2205 = vld [vmem:[#allocation3 + $0x150] sm:$0xff]
      %v2206 = vld [vmem:[#allocation3 + $0x160] sm:$0xff]
      %v2207 = vld [vmem:[#allocation3 + $0x170] sm:$0xff]
      %v2208 = vld [vmem:[#allocation3 + $0x180] sm:$0xff]
      %v2209 = vld [vmem:[#allocation3 + $0x190] sm:$0xff]
      %v2210 = vld [vmem:[#allocation3 + $0x1a0] sm:$0xff]
      %v2211 = vld [vmem:[#allocation3 + $0x1b0] sm:$0xff]
      %v2212 = vld [vmem:[#allocation3 + $0x1c0] sm:$0xff]
      %v2213 = vld [vmem:[#allocation3 + $0x1d0] sm:$0xff]
      %v2214 = vld [vmem:[#allocation3 + $0x1e0] sm:$0xff]
      %v2215 = vld [vmem:[#allocation3 + $0x1f0] sm:$0xff]
      %v2216 = vld [vmem:[#allocation3 + $0x200] sm:$0xff]
      %v2217 = vld [vmem:[#allocation3 + $0x210] sm:$0xff]
      %v2218 = vld [vmem:[#allocation3 + $0x220] sm:$0xff]
      %v2219 = vld [vmem:[#allocation3 + $0x230] sm:$0xff]
      %2221 = vset.pattern.permute.xlu0 0
      %2222 = vperm.xlu0 %2221, %v1846
      %v2223 = vpop.permute.xlu0 %2222
      %2226 = vset.pattern.permute.xlu0 0
      %2227 = vperm.xlu0 %2226, %v1847
      %v2228 = vpop.permute.xlu0 %2227
      %2231 = vset.pattern.permute.xlu0 0
      %2232 = vperm.xlu0 %2231, %v1848
      %v2233 = vpop.permute.xlu0 %2232
      %2236 = vset.pattern.permute.xlu0 0
      %2237 = vperm.xlu0 %2236, %v1849
      %v2238 = vpop.permute.xlu0 %2237
      %v2241 = vsel %vm986, %v1836, 0
      %v2244 = vsel %vm986, %v1839, 0
      %v2247 = vsel %vm986, %v1842, 0
      %v2250 = vsel %vm986, %v1845, 0
      %2252 = vmatpush.msra.mxu0 %v2199
      %2253 = vmatpush.msra.mxu0 %v2198
      %2254 = vmatpush.msra.mxu0 %v2197
      %2255 = vmatpush.msra.mxu0 %v2196
      %2256 = vmatpush.msra.mxu0 %v2195
      %2257 = vmatpush.msra.mxu0 %v2194
      %2258 = vmatpush.msra.mxu0 %v2193
      %2259 = vmatpush.msra.mxu0 %v2192
      %2260 = vmatpush.msra.mxu0 %v2191
      %2261 = vmatpush.msra.mxu0 %v2190
      %2262 = vmatpush.msra.mxu0 %v2189
      %2263 = vmatpush.msra.mxu0 %v2188
      %2264 = vmatpush.msra.mxu0 %v2187
      %2265 = vmatpush.msra.mxu0 %v2186
      %2266 = vmatpush.msra.mxu0 %v2185
      %2267 = vmatpush.msra.mxu0 %v2184
      %2268 = vmatmul.f32.gmra.mxu0 %v1834
      %v2269 = vpop.f32.mrf.mxu0
      %v2270 = vadd.f32 %v2223, %v2269
      %2271 = vmatmul.f32.gmra.mxu0 %v1837
      %v2272 = vpop.f32.mrf.mxu0
      %v2273 = vadd.f32 %v2228, %v2272
      %2274 = vmatmul.f32.gmra.mxu0 %v1840
      %v2275 = vpop.f32.mrf.mxu0
      %v2276 = vadd.f32 %v2233, %v2275
      %2277 = vmatmul.f32.gmra.mxu0 %v1843
      %v2278 = vpop.f32.mrf.mxu0
      %v2279 = vadd.f32 %v2238, %v2278
      %2280 = vdwg.mxu0
      %2281 = vmatpush.msra.mxu0 %v2215
      %2282 = vmatpush.msra.mxu0 %v2214
      %2283 = vmatpush.msra.mxu0 %v2213
      %2284 = vmatpush.msra.mxu0 %v2212
      %2285 = vmatpush.msra.mxu0 %v2211
      %2286 = vmatpush.msra.mxu0 %v2210
      %2287 = vmatpush.msra.mxu0 %v2209
      %2288 = vmatpush.msra.mxu0 %v2208
      %2289 = vmatpush.msra.mxu0 %v2207
      %2290 = vmatpush.msra.mxu0 %v2206
      %2291 = vmatpush.msra.mxu0 %v2205
      %2292 = vmatpush.msra.mxu0 %v2204
      %2293 = vmatpush.msra.mxu0 %v2203
      %2294 = vmatpush.msra.mxu0 %v2202
      %2295 = vmatpush.msra.mxu0 %v2201
      %2296 = vmatpush.msra.mxu0 %v2200
      %2297 = vmatmul.f32.gmra.mxu0 %v1835
      %v2298 = vpop.f32.mrf.mxu0
      %v2299 = vadd.f32 %v2270, %v2298
      %2300 = vmatmul.f32.gmra.mxu0 %v1838
      %v2301 = vpop.f32.mrf.mxu0
      %v2302 = vadd.f32 %v2273, %v2301
      %2303 = vmatmul.f32.gmra.mxu0 %v1841
      %v2304 = vpop.f32.mrf.mxu0
      %v2305 = vadd.f32 %v2276, %v2304
      %2306 = vmatmul.f32.gmra.mxu0 %v1844
      %v2307 = vpop.f32.mrf.mxu0
      %v2308 = vadd.f32 %v2279, %v2307
      %2309 = vdwg.mxu0
      %2310 = vmatpush.msra.mxu0 0.0
      %2311 = vmatpush.msra.mxu0 0.0
      %2312 = vmatpush.msra.mxu0 0.0
      %2313 = vmatpush.msra.mxu0 0.0
      %2314 = vmatpush.msra.mxu0 0.0
      %2315 = vmatpush.msra.mxu0 0.0
      %2316 = vmatpush.msra.mxu0 0.0
      %2317 = vmatpush.msra.mxu0 0.0
      %2318 = vmatpush.msra.mxu0 0.0
      %2319 = vmatpush.msra.mxu0 0.0
      %2320 = vmatpush.msra.mxu0 0.0
      %2321 = vmatpush.msra.mxu0 0.0
      %2322 = vmatpush.msra.mxu0 %v2219
      %2323 = vmatpush.msra.mxu0 %v2218
      %2324 = vmatpush.msra.mxu0 %v2217
      %2325 = vmatpush.msra.mxu0 %v2216
      %2326 = vmatmul.f32.gmra.mxu0 %v2241
      %v2327 = vpop.f32.mrf.mxu0
      %v2328 = vadd.f32 %v2299, %v2327
      %2329 = vmatmul.f32.gmra.mxu0 %v2244
      %v2330 = vpop.f32.mrf.mxu0
      %v2331 = vadd.f32 %v2302, %v2330
      %2332 = vmatmul.f32.gmra.mxu0 %v2247
      %v2333 = vpop.f32.mrf.mxu0
      %v2334 = vadd.f32 %v2305, %v2333
      %2335 = vmatmul.f32.gmra.mxu0 %v2250
      %v2336 = vpop.f32.mrf.mxu0
      %v2337 = vadd.f32 %v2308, %v2336
      %2338 = vdwg.mxu0
      %v2339 = vld [vmem:[%s27] sm:$0xff]
      %v2340 = vld [vmem:[%s27 + $0x8] sm:$0xff]
      %v2341 = vld [vmem:[%s27 + $0x10] sm:$0xff]
      %v2342 = vld [vmem:[%s27 + $0x18] sm:$0xff]
      %v2343 = vld [vmem:[%s29] sm:$0xff]
      %v2344 = vld [vmem:[%s29 + $0x8] sm:$0xff]
      %v2345 = vld [vmem:[%s29 + $0x10] sm:$0xff]
      %v2346 = vld [vmem:[%s29 + $0x18] sm:$0xff]
      %2348 = vset.pattern.permute.xlu0 0
      %2349 = vperm.xlu0 %2348, %v2343
      %v2350 = vpop.permute.xlu0 %2349
      %2353 = vset.pattern.permute.xlu0 0
      %2354 = vperm.xlu0 %2353, %v2344
      %v2355 = vpop.permute.xlu0 %2354
      %2358 = vset.pattern.permute.xlu0 0
      %2359 = vperm.xlu0 %2358, %v2345
      %v2360 = vpop.permute.xlu0 %2359
      %2363 = vset.pattern.permute.xlu0 0
      %2364 = vperm.xlu0 %2363, %v2346
      %v2365 = vpop.permute.xlu0 %2364
      %v2368 = vsel %vm1032, %v2339, 0
      %v2371 = vsel %vm1032, %v2340, 0
      %v2374 = vsel %vm1032, %v2341, 0
      %v2377 = vsel %vm1032, %v2342, 0
      %2379 = vmatpush.msra.mxu0 0.0
      %2380 = vmatpush.msra.mxu0 0.0
      %2381 = vmatpush.msra.mxu0 0.0
      %2382 = vmatpush.msra.mxu0 0.0
      %2383 = vmatpush.msra.mxu0 0.0
      %2384 = vmatpush.msra.mxu0 0.0
      %2385 = vmatpush.msra.mxu0 0.0
      %2386 = vmatpush.msra.mxu0 0.0
      %2387 = vmatpush.msra.mxu0 0.0
      %2388 = vmatpush.msra.mxu0 0.0
      %2389 = vmatpush.msra.mxu0 0.0
      %2390 = vmatpush.msra.mxu0 0.0
      %2391 = vmatpush.msra.mxu0 0.0
      %2392 = vmatpush.msra.mxu0 0.0
      %2393 = vmatpush.msra.mxu0 %v973
      %2394 = vmatpush.msra.mxu0 %v971
      %2395 = vmatmul.f32.gmra.mxu0 %v2368
      %v2396 = vpop.f32.mrf.mxu0
      %v2397 = vadd.f32 %v2350, %v2396
      %2398 = vmatmul.f32.gmra.mxu0 %v2371
      %v2399 = vpop.f32.mrf.mxu0
      %v2400 = vadd.f32 %v2355, %v2399
      %2401 = vmatmul.f32.gmra.mxu0 %v2374
      %v2402 = vpop.f32.mrf.mxu0
      %v2403 = vadd.f32 %v2360, %v2402
      %2404 = vmatmul.f32.gmra.mxu0 %v2377
      %v2405 = vpop.f32.mrf.mxu0
      %v2406 = vadd.f32 %v2365, %v2405
      %2407 = vdwg.mxu0
      %2408 = vmatpush.msra.mxu0 0.0
      %2409 = vmatpush.msra.mxu0 0.0
      %2410 = vmatpush.msra.mxu0 0.0
      %2411 = vmatpush.msra.mxu0 0.0
      %2412 = vmatpush.msra.mxu0 0.0
      %2413 = vmatpush.msra.mxu0 0.0
      %2414 = vmatpush.msra.mxu0 0.0
      %2415 = vmatpush.msra.mxu0 0.0
      %2416 = vmatpush.msra.mxu0 0.0
      %2417 = vmatpush.msra.mxu0 0.0
      %2418 = vmatpush.msra.mxu0 0.0
      %2419 = vmatpush.msra.mxu0 0.0
      %2420 = vmatpush.msra.mxu0 0.0
      %2421 = vmatpush.msra.mxu0 0.0
      %2422 = vmatpush.msra.mxu0 %v974
      %2423 = vmatpush.msra.mxu0 %v972
      %2424 = vmatmul.f32.gmra.mxu0 %v2368
      %v2425 = vpop.f32.mrf.mxu0
      %v2426 = vadd.f32 %v2350, %v2425
      %2427 = vmatmul.f32.gmra.mxu0 %v2371
      %v2428 = vpop.f32.mrf.mxu0
      %v2429 = vadd.f32 %v2355, %v2428
      %2430 = vmatmul.f32.gmra.mxu0 %v2374
      %v2431 = vpop.f32.mrf.mxu0
      %v2432 = vadd.f32 %v2360, %v2431
      %2433 = vmatmul.f32.gmra.mxu0 %v2377
      %v2434 = vpop.f32.mrf.mxu0
      %v2435 = vadd.f32 %v2365, %v2434
      %2436 = vdwg.mxu0
      %v2437 = vadd.f32 %v2397, %v1794
      %v2438 = vadd.f32 %v2426, %v1823
      %v2439 = vadd.f32 %v2400, %v1797
      %v2440 = vadd.f32 %v2429, %v1826
      %v2441 = vadd.f32 %v2403, %v1800
      %v2442 = vadd.f32 %v2432, %v1829
      %v2443 = vadd.f32 %v2406, %v1803
      %v2444 = vadd.f32 %v2435, %v1832
      %v2445 = vld [vmem:[%s31] sm:$0xff]
      %v2446 = vld [vmem:[%s31 + $0x8] sm:$0xff]
      %v2447 = vld [vmem:[%s31 + $0x10] sm:$0xff]
      %v2448 = vld [vmem:[%s31 + $0x18] sm:$0xff]
      %v2449 = vld [vmem:[%s31 + $0x20] sm:$0xff]
      %v2450 = vld [vmem:[%s31 + $0x28] sm:$0xff]
      %v2451 = vld [vmem:[%s31 + $0x30] sm:$0xff]
      %v2452 = vld [vmem:[%s31 + $0x38] sm:$0xff]
      %v2453 = vld [vmem:[%s31 + $0x40] sm:$0xff]
      %v2454 = vld [vmem:[%s31 + $0x48] sm:$0xff]
      %v2455 = vld [vmem:[%s31 + $0x50] sm:$0xff]
      %v2456 = vld [vmem:[%s31 + $0x58] sm:$0xff]
      %v2457 = vld [vmem:[%s33] sm:$0xff]
      %v2458 = vld [vmem:[%s33 + $0x8] sm:$0xff]
      %v2459 = vld [vmem:[%s33 + $0x10] sm:$0xff]
      %v2460 = vld [vmem:[%s33 + $0x18] sm:$0xff]
      %2461 = vst [vmem:[#allocation2] sm:$0xff] 0.0
      %2462 = vst [vmem:[#allocation2 + $0x8] sm:$0xff] 0.0
      %2463 = vst [vmem:[#allocation2 + $0x10] sm:$0xff] 0.0
      %2464 = vst [vmem:[#allocation2 + $0x18] sm:$0xff] 0.0
      %2465 = vst [vmem:[#allocation2 + $0x20] sm:$0xff] 0.0
      %2466 = vst [vmem:[#allocation2 + $0x28] sm:$0xff] 0.0
      %2467 = vst [vmem:[#allocation2 + $0x30] sm:$0xff] 0.0
      %2468 = vst [vmem:[#allocation2 + $0x38] sm:$0xff] 0.0
      %2469 = vst [vmem:[#allocation2 + $0x40] sm:$0xff] 0.0
      %2470 = vst [vmem:[#allocation2 + $0x48] sm:$0xff] 0.0
      %2471 = vst [vmem:[#allocation2 + $0x50] sm:$0xff] 0.0
      %2472 = vst [vmem:[#allocation2 + $0x58] sm:$0xff] 0.0
      %2473 = vst [vmem:[#allocation2 + $0x60] sm:$0xff] 0.0
      %2474 = vst [vmem:[#allocation2 + $0x68] sm:$0xff] 0.0
      %2475 = vst [vmem:[#allocation2 + $0x70] sm:$0xff] 0.0
      %2476 = vst [vmem:[#allocation2 + $0x78] sm:$0xff] 0.0
      %2477 = vst [vmem:[#allocation2 + $0x8] sm:$0xff] %v2437
      %2478 = vst [vmem:[#allocation2 + $0x10] sm:$0xff] %v2438
      %2479 = vst [vmem:[#allocation2 + $0x28] sm:$0xff] %v2439
      %2480 = vst [vmem:[#allocation2 + $0x30] sm:$0xff] %v2440
      %2481 = vst [vmem:[#allocation2 + $0x48] sm:$0xff] %v2441
      %2482 = vst [vmem:[#allocation2 + $0x50] sm:$0xff] %v2442
      %2483 = vst [vmem:[#allocation2 + $0x68] sm:$0xff] %v2443
      %2484 = vst [vmem:[#allocation2 + $0x70] sm:$0xff] %v2444
      %v2485 = vadd.s32 %v1202, 128
      %v2486 = vand.u32 %v1202, 15
      %v2487 = vand.u32 %v2485, 15
      %v2488 = vld [vmem:[#allocation2] sm:$0xff]
      %v2489 = vld [vmem:[#allocation2 + $0x8] sm:$0xff]
      %v2490 = vld [vmem:[#allocation2 + $0x10] sm:$0xff]
      %v2491 = vld [vmem:[#allocation2 + $0x20] sm:$0xff]
      %v2492 = vld [vmem:[#allocation2 + $0x28] sm:$0xff]
      %v2493 = vld [vmem:[#allocation2 + $0x30] sm:$0xff]
      %v2494 = vld [vmem:[#allocation2 + $0x40] sm:$0xff]
      %v2495 = vld [vmem:[#allocation2 + $0x48] sm:$0xff]
      %v2496 = vld [vmem:[#allocation2 + $0x50] sm:$0xff]
      %v2497 = vld [vmem:[#allocation2 + $0x60] sm:$0xff]
      %v2498 = vld [vmem:[#allocation2 + $0x68] sm:$0xff]
      %v2499 = vld [vmem:[#allocation2 + $0x70] sm:$0xff]
      %vm2500 = vcmp.ge.s32.totalorder %v2486, 1
      %vm2501 = vcmp.ge.s32.totalorder %v2487, 1
      %v2502 = vsel %vm2500, 1, 0
      %v2503 = vsel %vm2501, 1, 0
      %vm2504 = vcmp.eq.s32.totalorder %v2502, 1
      %vm2505 = vcmp.eq.s32.totalorder %v2503, 1
      %2518 = vrot.lane.b32.xlu0 %v2488, 17
      %v2519 = vpop.permute.xlu0 %2518
      %2520 = vrot.lane.b32.xlu0 %v2489, 17
      %v2521 = vpop.permute.xlu0 %2520
      %2522 = vrot.lane.b32.xlu0 %v2490, 17
      %v2523 = vpop.permute.xlu0 %2522
      %2524 = vrot.lane.b32.xlu0 %v2491, 17
      %v2525 = vpop.permute.xlu0 %2524
      %2526 = vrot.lane.b32.xlu0 %v2492, 17
      %v2527 = vpop.permute.xlu0 %2526
      %2528 = vrot.lane.b32.xlu0 %v2493, 17
      %v2529 = vpop.permute.xlu0 %2528
      %2530 = vrot.lane.b32.xlu0 %v2494, 17
      %v2531 = vpop.permute.xlu0 %2530
      %2532 = vrot.lane.b32.xlu0 %v2495, 17
      %v2533 = vpop.permute.xlu0 %2532
      %2534 = vrot.lane.b32.xlu0 %v2496, 17
      %v2535 = vpop.permute.xlu0 %2534
      %2536 = vrot.lane.b32.xlu0 %v2497, 17
      %v2537 = vpop.permute.xlu0 %2536
      %2538 = vrot.lane.b32.xlu0 %v2498, 17
      %v2539 = vpop.permute.xlu0 %2538
      %2540 = vrot.lane.b32.xlu0 %v2499, 17
      %v2541 = vpop.permute.xlu0 %2540
      %vm2542 = vcmask 138240
      %v2543 = vsel %vm2542, %v2519, %v2521
      %v2544 = vsel %vm2542, %v2521, %v2523
      %v2545 = vsel %vm2542, %v2525, %v2527
      %v2546 = vsel %vm2542, %v2527, %v2529
      %v2547 = vsel %vm2542, %v2531, %v2533
      %v2548 = vsel %vm2542, %v2533, %v2535
      %v2549 = vsel %vm2542, %v2537, %v2539
      %v2550 = vsel %vm2542, %v2539, %v2541
      %v2559 = vsel %vm2504, %v2543, 0.0
      %v2560 = vsel %vm2505, %v2544, 0.0
      %v2561 = vsel %vm2504, %v2545, 0.0
      %v2562 = vsel %vm2505, %v2546, 0.0
      %v2563 = vsel %vm2504, %v2547, 0.0
      %v2564 = vsel %vm2505, %v2548, 0.0
      %v2565 = vsel %vm2504, %v2549, 0.0
      %v2566 = vsel %vm2505, %v2550, 0.0
      %2567 = vst [vmem:[#allocation3] sm:$0xff] %v2559
      %2568 = vst [vmem:[#allocation3 + $0x8] sm:$0xff] %v2560
      %2569 = vst [vmem:[#allocation3 + $0x10] sm:$0xff] %v2561
      %2570 = vst [vmem:[#allocation3 + $0x18] sm:$0xff] %v2562
      %2571 = vst [vmem:[#allocation3 + $0x20] sm:$0xff] %v2563
      %2572 = vst [vmem:[#allocation3 + $0x28] sm:$0xff] %v2564
      %2573 = vst [vmem:[#allocation3 + $0x30] sm:$0xff] %v2565
      %2574 = vst [vmem:[#allocation3 + $0x38] sm:$0xff] %v2566
      %v2575 = vld [vmem:[#allocation2] sm:$0xff]
      %v2576 = vld [vmem:[#allocation2 + $0x8] sm:$0xff]
      %v2577 = vld [vmem:[#allocation2 + $0x10] sm:$0xff]
      %v2578 = vld [vmem:[#allocation2 + $0x20] sm:$0xff]
      %v2579 = vld [vmem:[#allocation2 + $0x28] sm:$0xff]
      %v2580 = vld [vmem:[#allocation2 + $0x30] sm:$0xff]
      %v2581 = vld [vmem:[#allocation2 + $0x40] sm:$0xff]
      %v2582 = vld [vmem:[#allocation2 + $0x48] sm:$0xff]
      %v2583 = vld [vmem:[#allocation2 + $0x50] sm:$0xff]
      %v2584 = vld [vmem:[#allocation2 + $0x60] sm:$0xff]
      %v2585 = vld [vmem:[#allocation2 + $0x68] sm:$0xff]
      %v2586 = vld [vmem:[#allocation2 + $0x70] sm:$0xff]
      %2599 = vrot.lane.b32.xlu0 %v2575, 16
      %v2600 = vpop.permute.xlu0 %2599
      %2601 = vrot.lane.b32.xlu0 %v2576, 16
      %v2602 = vpop.permute.xlu0 %2601
      %2603 = vrot.lane.b32.xlu0 %v2577, 16
      %v2604 = vpop.permute.xlu0 %2603
      %2605 = vrot.lane.b32.xlu0 %v2578, 16
      %v2606 = vpop.permute.xlu0 %2605
      %2607 = vrot.lane.b32.xlu0 %v2579, 16
      %v2608 = vpop.permute.xlu0 %2607
      %2609 = vrot.lane.b32.xlu0 %v2580, 16
      %v2610 = vpop.permute.xlu0 %2609
      %2611 = vrot.lane.b32.xlu0 %v2581, 16
      %v2612 = vpop.permute.xlu0 %2611
      %2613 = vrot.lane.b32.xlu0 %v2582, 16
      %v2614 = vpop.permute.xlu0 %2613
      %2615 = vrot.lane.b32.xlu0 %v2583, 16
      %v2616 = vpop.permute.xlu0 %2615
      %2617 = vrot.lane.b32.xlu0 %v2584, 16
      %v2618 = vpop.permute.xlu0 %2617
      %2619 = vrot.lane.b32.xlu0 %v2585, 16
      %v2620 = vpop.permute.xlu0 %2619
      %2621 = vrot.lane.b32.xlu0 %v2586, 16
      %v2622 = vpop.permute.xlu0 %2621
      %v2623 = vsel %vm1032, %v2600, %v2602
      %v2624 = vsel %vm1032, %v2602, %v2604
      %v2625 = vsel %vm1032, %v2606, %v2608
      %v2626 = vsel %vm1032, %v2608, %v2610
      %v2627 = vsel %vm1032, %v2612, %v2614
      %v2628 = vsel %vm1032, %v2614, %v2616
      %v2629 = vsel %vm1032, %v2618, %v2620
      %v2630 = vsel %vm1032, %v2620, %v2622
      %2639 = vst [vmem:[#allocation3 + $0x40] sm:$0xff] %v2623
      %2640 = vst [vmem:[#allocation3 + $0x48] sm:$0xff] %v2624
      %2641 = vst [vmem:[#allocation3 + $0x50] sm:$0xff] %v2625
      %2642 = vst [vmem:[#allocation3 + $0x58] sm:$0xff] %v2626
      %2643 = vst [vmem:[#allocation3 + $0x60] sm:$0xff] %v2627
      %2644 = vst [vmem:[#allocation3 + $0x68] sm:$0xff] %v2628
      %2645 = vst [vmem:[#allocation3 + $0x70] sm:$0xff] %v2629
      %2646 = vst [vmem:[#allocation3 + $0x78] sm:$0xff] %v2630
      %v2647 = vld [vmem:[#allocation2] sm:$0xff]
      %v2648 = vld [vmem:[#allocation2 + $0x8] sm:$0xff]
      %v2649 = vld [vmem:[#allocation2 + $0x10] sm:$0xff]
      %v2650 = vld [vmem:[#allocation2 + $0x20] sm:$0xff]
      %v2651 = vld [vmem:[#allocation2 + $0x28] sm:$0xff]
      %v2652 = vld [vmem:[#allocation2 + $0x30] sm:$0xff]
      %v2653 = vld [vmem:[#allocation2 + $0x40] sm:$0xff]
      %v2654 = vld [vmem:[#allocation2 + $0x48] sm:$0xff]
      %v2655 = vld [vmem:[#allocation2 + $0x50] sm:$0xff]
      %v2656 = vld [vmem:[#allocation2 + $0x60] sm:$0xff]
      %v2657 = vld [vmem:[#allocation2 + $0x68] sm:$0xff]
      %v2658 = vld [vmem:[#allocation2 + $0x70] sm:$0xff]
      %vm2659 = vcmp.le.s32.totalorder %v2486, 14
      %vm2660 = vcmp.le.s32.totalorder %v2487, 14
      %v2661 = vsel %vm2659, 1, 0
      %v2662 = vsel %vm2660, 1, 0
      %vm2663 = vcmp.eq.s32.totalorder %v2661, 1
      %vm2664 = vcmp.eq.s32.totalorder %v2662, 1
      %2677 = vrot.lane.b32.xlu0 %v2647, 15
      %v2678 = vpop.permute.xlu0 %2677
      %2679 = vrot.lane.b32.xlu0 %v2648, 15
      %v2680 = vpop.permute.xlu0 %2679
      %2681 = vrot.lane.b32.xlu0 %v2649, 15
      %v2682 = vpop.permute.xlu0 %2681
      %2683 = vrot.lane.b32.xlu0 %v2650, 15
      %v2684 = vpop.permute.xlu0 %2683
      %2685 = vrot.lane.b32.xlu0 %v2651, 15
      %v2686 = vpop.permute.xlu0 %2685
      %2687 = vrot.lane.b32.xlu0 %v2652, 15
      %v2688 = vpop.permute.xlu0 %2687
      %2689 = vrot.lane.b32.xlu0 %v2653, 15
      %v2690 = vpop.permute.xlu0 %2689
      %2691 = vrot.lane.b32.xlu0 %v2654, 15
      %v2692 = vpop.permute.xlu0 %2691
      %2693 = vrot.lane.b32.xlu0 %v2655, 15
      %v2694 = vpop.permute.xlu0 %2693
      %2695 = vrot.lane.b32.xlu0 %v2656, 15
      %v2696 = vpop.permute.xlu0 %2695
      %2697 = vrot.lane.b32.xlu0 %v2657, 15
      %v2698 = vpop.permute.xlu0 %2697
      %2699 = vrot.lane.b32.xlu0 %v2658, 15
      %v2700 = vpop.permute.xlu0 %2699
      %vm2701 = vcmask 121856
      %v2702 = vsel %vm2701, %v2678, %v2680
      %v2703 = vsel %vm2701, %v2680, %v2682
      %v2704 = vsel %vm2701, %v2684, %v2686
      %v2705 = vsel %vm2701, %v2686, %v2688
      %v2706 = vsel %vm2701, %v2690, %v2692
      %v2707 = vsel %vm2701, %v2692, %v2694
      %v2708 = vsel %vm2701, %v2696, %v2698
      %v2709 = vsel %vm2701, %v2698, %v2700
      %v2718 = vsel %vm2663, %v2702, 0.0
      %v2719 = vsel %vm2664, %v2703, 0.0
      %v2720 = vsel %vm2663, %v2704, 0.0
      %v2721 = vsel %vm2664, %v2705, 0.0
      %v2722 = vsel %vm2663, %v2706, 0.0
      %v2723 = vsel %vm2664, %v2707, 0.0
      %v2724 = vsel %vm2663, %v2708, 0.0
      %v2725 = vsel %vm2664, %v2709, 0.0
      %2726 = vst [vmem:[#allocation3 + $0x80] sm:$0xff] %v2718
      %2727 = vst [vmem:[#allocation3 + $0x88] sm:$0xff] %v2719
      %2728 = vst [vmem:[#allocation3 + $0x90] sm:$0xff] %v2720
      %2729 = vst [vmem:[#allocation3 + $0x98] sm:$0xff] %v2721
      %2730 = vst [vmem:[#allocation3 + $0xa0] sm:$0xff] %v2722
      %2731 = vst [vmem:[#allocation3 + $0xa8] sm:$0xff] %v2723
      %2732 = vst [vmem:[#allocation3 + $0xb0] sm:$0xff] %v2724
      %2733 = vst [vmem:[#allocation3 + $0xb8] sm:$0xff] %v2725
      %v2734 = vld [vmem:[#allocation2] sm:$0xff]
      %v2735 = vld [vmem:[#allocation2 + $0x8] sm:$0xff]
      %v2736 = vld [vmem:[#allocation2 + $0x10] sm:$0xff]
      %v2737 = vld [vmem:[#allocation2 + $0x20] sm:$0xff]
      %v2738 = vld [vmem:[#allocation2 + $0x28] sm:$0xff]
      %v2739 = vld [vmem:[#allocation2 + $0x30] sm:$0xff]
      %v2740 = vld [vmem:[#allocation2 + $0x40] sm:$0xff]
      %v2741 = vld [vmem:[#allocation2 + $0x48] sm:$0xff]
      %v2742 = vld [vmem:[#allocation2 + $0x50] sm:$0xff]
      %v2743 = vld [vmem:[#allocation2 + $0x60] sm:$0xff]
      %v2744 = vld [vmem:[#allocation2 + $0x68] sm:$0xff]
      %v2745 = vld [vmem:[#allocation2 + $0x70] sm:$0xff]
      %2758 = vrot.lane.b32.xlu0 %v2734, 1
      %v2759 = vpop.permute.xlu0 %2758
      %2760 = vrot.lane.b32.xlu0 %v2735, 1
      %v2761 = vpop.permute.xlu0 %2760
      %2762 = vrot.lane.b32.xlu0 %v2736, 1
      %v2763 = vpop.permute.xlu0 %2762
      %2764 = vrot.lane.b32.xlu0 %v2737, 1
      %v2765 = vpop.permute.xlu0 %2764
      %2766 = vrot.lane.b32.xlu0 %v2738, 1
      %v2767 = vpop.permute.xlu0 %2766
      %2768 = vrot.lane.b32.xlu0 %v2739, 1
      %v2769 = vpop.permute.xlu0 %2768
      %2770 = vrot.lane.b32.xlu0 %v2740, 1
      %v2771 = vpop.permute.xlu0 %2770
      %2772 = vrot.lane.b32.xlu0 %v2741, 1
      %v2773 = vpop.permute.xlu0 %2772
      %2774 = vrot.lane.b32.xlu0 %v2742, 1
      %v2775 = vpop.permute.xlu0 %2774
      %2776 = vrot.lane.b32.xlu0 %v2743, 1
      %v2777 = vpop.permute.xlu0 %2776
      %2778 = vrot.lane.b32.xlu0 %v2744, 1
      %v2779 = vpop.permute.xlu0 %2778
      %2780 = vrot.lane.b32.xlu0 %v2745, 1
      %v2781 = vpop.permute.xlu0 %2780
      %v2782 = vsel %vm1385, %v2759, %v2761
      %v2783 = vsel %vm1385, %v2761, %v2763
      %v2784 = vsel %vm1385, %v2765, %v2767
      %v2785 = vsel %vm1385, %v2767, %v2769
      %v2786 = vsel %vm1385, %v2771, %v2773
      %v2787 = vsel %vm1385, %v2773, %v2775
      %v2788 = vsel %vm1385, %v2777, %v2779
      %v2789 = vsel %vm1385, %v2779, %v2781
      %v2798 = vsel %vm2504, %v2782, 0.0
      %v2799 = vsel %vm2505, %v2783, 0.0
      %v2800 = vsel %vm2504, %v2784, 0.0
      %v2801 = vsel %vm2505, %v2785, 0.0
      %v2802 = vsel %vm2504, %v2786, 0.0
      %v2803 = vsel %vm2505, %v2787, 0.0
      %v2804 = vsel %vm2504, %v2788, 0.0
      %v2805 = vsel %vm2505, %v2789, 0.0
      %2806 = vst [vmem:[#allocation3 + $0xc0] sm:$0xff] %v2798
      %2807 = vst [vmem:[#allocation3 + $0xc8] sm:$0xff] %v2799
      %2808 = vst [vmem:[#allocation3 + $0xd0] sm:$0xff] %v2800
      %2809 = vst [vmem:[#allocation3 + $0xd8] sm:$0xff] %v2801
      %2810 = vst [vmem:[#allocation3 + $0xe0] sm:$0xff] %v2802
      %2811 = vst [vmem:[#allocation3 + $0xe8] sm:$0xff] %v2803
      %2812 = vst [vmem:[#allocation3 + $0xf0] sm:$0xff] %v2804
      %2813 = vst [vmem:[#allocation3 + $0xf8] sm:$0xff] %v2805
      %v2814 = vld [vmem:[#allocation2 + $0x8] sm:$0xff]
      %v2815 = vld [vmem:[#allocation2 + $0x10] sm:$0xff]
      %v2816 = vld [vmem:[#allocation2 + $0x28] sm:$0xff]
      %v2817 = vld [vmem:[#allocation2 + $0x30] sm:$0xff]
      %v2818 = vld [vmem:[#allocation2 + $0x48] sm:$0xff]
      %v2819 = vld [vmem:[#allocation2 + $0x50] sm:$0xff]
      %v2820 = vld [vmem:[#allocation2 + $0x68] sm:$0xff]
      %v2821 = vld [vmem:[#allocation2 + $0x70] sm:$0xff]
      %2822 = vst [vmem:[#allocation3 + $0x100] sm:$0xff] %v2814
      %2823 = vst [vmem:[#allocation3 + $0x108] sm:$0xff] %v2815
      %2824 = vst [vmem:[#allocation3 + $0x110] sm:$0xff] %v2816
      %2825 = vst [vmem:[#allocation3 + $0x118] sm:$0xff] %v2817
      %2826 = vst [vmem:[#allocation3 + $0x120] sm:$0xff] %v2818
      %2827 = vst [vmem:[#allocation3 + $0x128] sm:$0xff] %v2819
      %2828 = vst [vmem:[#allocation3 + $0x130] sm:$0xff] %v2820
      %2829 = vst [vmem:[#allocation3 + $0x138] sm:$0xff] %v2821
      %v2830 = vld [vmem:[#allocation2 + $0x8] sm:$0xff]
      %v2831 = vld [vmem:[#allocation2 + $0x10] sm:$0xff]
      %v2832 = vld [vmem:[#allocation2 + $0x18] sm:$0xff]
      %v2833 = vld [vmem:[#allocation2 + $0x28] sm:$0xff]
      %v2834 = vld [vmem:[#allocation2 + $0x30] sm:$0xff]
      %v2835 = vld [vmem:[#allocation2 + $0x38] sm:$0xff]
      %v2836 = vld [vmem:[#allocation2 + $0x48] sm:$0xff]
      %v2837 = vld [vmem:[#allocation2 + $0x50] sm:$0xff]
      %v2838 = vld [vmem:[#allocation2 + $0x58] sm:$0xff]
      %v2839 = vld [vmem:[#allocation2 + $0x68] sm:$0xff]
      %v2840 = vld [vmem:[#allocation2 + $0x70] sm:$0xff]
      %v2841 = vld [vmem:[#allocation2 + $0x78] sm:$0xff]
      %2854 = vrot.lane.b32.xlu0 %v2830, 127
      %v2855 = vpop.permute.xlu0 %2854
      %2856 = vrot.lane.b32.xlu0 %v2831, 127
      %v2857 = vpop.permute.xlu0 %2856
      %2858 = vrot.lane.b32.xlu0 %v2832, 127
      %v2859 = vpop.permute.xlu0 %2858
      %2860 = vrot.lane.b32.xlu0 %v2833, 127
      %v2861 = vpop.permute.xlu0 %2860
      %2862 = vrot.lane.b32.xlu0 %v2834, 127
      %v2863 = vpop.permute.xlu0 %2862
      %2864 = vrot.lane.b32.xlu0 %v2835, 127
      %v2865 = vpop.permute.xlu0 %2864
      %2866 = vrot.lane.b32.xlu0 %v2836, 127
      %v2867 = vpop.permute.xlu0 %2866
      %2868 = vrot.lane.b32.xlu0 %v2837, 127
      %v2869 = vpop.permute.xlu0 %2868
      %2870 = vrot.lane.b32.xlu0 %v2838, 127
      %v2871 = vpop.permute.xlu0 %2870
      %2872 = vrot.lane.b32.xlu0 %v2839, 127
      %v2873 = vpop.permute.xlu0 %2872
      %2874 = vrot.lane.b32.xlu0 %v2840, 127
      %v2875 = vpop.permute.xlu0 %2874
      %2876 = vrot.lane.b32.xlu0 %v2841, 127
      %v2877 = vpop.permute.xlu0 %2876
      %vm2878 = vcmask 1039360
      %v2879 = vsel %vm2878, %v2855, %v2857
      %v2880 = vsel %vm2878, %v2857, %v2859
      %v2881 = vsel %vm2878, %v2861, %v2863
      %v2882 = vsel %vm2878, %v2863, %v2865
      %v2883 = vsel %vm2878, %v2867, %v2869
      %v2884 = vsel %vm2878, %v2869, %v2871
      %v2885 = vsel %vm2878, %v2873, %v2875
      %v2886 = vsel %vm2878, %v2875, %v2877
      %v2895 = vsel %vm2663, %v2879, 0.0
      %v2896 = vsel %vm2664, %v2880, 0.0
      %v2897 = vsel %vm2663, %v2881, 0.0
      %v2898 = vsel %vm2664, %v2882, 0.0
      %v2899 = vsel %vm2663, %v2883, 0.0
      %v2900 = vsel %vm2664, %v2884, 0.0
      %v2901 = vsel %vm2663, %v2885, 0.0
      %v2902 = vsel %vm2664, %v2886, 0.0
      %2903 = vst [vmem:[#allocation3 + $0x140] sm:$0xff] %v2895
      %2904 = vst [vmem:[#allocation3 + $0x148] sm:$0xff] %v2896
      %2905 = vst [vmem:[#allocation3 + $0x150] sm:$0xff] %v2897
      %2906 = vst [vmem:[#allocation3 + $0x158] sm:$0xff] %v2898
      %2907 = vst [vmem:[#allocation3 + $0x160] sm:$0xff] %v2899
      %2908 = vst [vmem:[#allocation3 + $0x168] sm:$0xff] %v2900
      %2909 = vst [vmem:[#allocation3 + $0x170] sm:$0xff] %v2901
      %2910 = vst [vmem:[#allocation3 + $0x178] sm:$0xff] %v2902
      %v2911 = vld [vmem:[#allocation2 + $0x8] sm:$0xff]
      %v2912 = vld [vmem:[#allocation2 + $0x10] sm:$0xff]
      %v2913 = vld [vmem:[#allocation2 + $0x18] sm:$0xff]
      %v2914 = vld [vmem:[#allocation2 + $0x28] sm:$0xff]
      %v2915 = vld [vmem:[#allocation2 + $0x30] sm:$0xff]
      %v2916 = vld [vmem:[#allocation2 + $0x38] sm:$0xff]
      %v2917 = vld [vmem:[#allocation2 + $0x48] sm:$0xff]
      %v2918 = vld [vmem:[#allocation2 + $0x50] sm:$0xff]
      %v2919 = vld [vmem:[#allocation2 + $0x58] sm:$0xff]
      %v2920 = vld [vmem:[#allocation2 + $0x68] sm:$0xff]
      %v2921 = vld [vmem:[#allocation2 + $0x70] sm:$0xff]
      %v2922 = vld [vmem:[#allocation2 + $0x78] sm:$0xff]
      %2935 = vrot.lane.b32.xlu0 %v2911, 113
      %v2936 = vpop.permute.xlu0 %2935
      %2937 = vrot.lane.b32.xlu0 %v2912, 113
      %v2938 = vpop.permute.xlu0 %2937
      %2939 = vrot.lane.b32.xlu0 %v2913, 113
      %v2940 = vpop.permute.xlu0 %2939
      %2941 = vrot.lane.b32.xlu0 %v2914, 113
      %v2942 = vpop.permute.xlu0 %2941
      %2943 = vrot.lane.b32.xlu0 %v2915, 113
      %v2944 = vpop.permute.xlu0 %2943
      %2945 = vrot.lane.b32.xlu0 %v2916, 113
      %v2946 = vpop.permute.xlu0 %2945
      %2947 = vrot.lane.b32.xlu0 %v2917, 113
      %v2948 = vpop.permute.xlu0 %2947
      %2949 = vrot.lane.b32.xlu0 %v2918, 113
      %v2950 = vpop.permute.xlu0 %2949
      %2951 = vrot.lane.b32.xlu0 %v2919, 113
      %v2952 = vpop.permute.xlu0 %2951
      %2953 = vrot.lane.b32.xlu0 %v2920, 113
      %v2954 = vpop.permute.xlu0 %2953
      %2955 = vrot.lane.b32.xlu0 %v2921, 113
      %v2956 = vpop.permute.xlu0 %2955
      %2957 = vrot.lane.b32.xlu0 %v2922, 113
      %v2958 = vpop.permute.xlu0 %2957
      %vm2959 = vcmask 924672
      %v2960 = vsel %vm2959, %v2936, %v2938
      %v2961 = vsel %vm2959, %v2938, %v2940
      %v2962 = vsel %vm2959, %v2942, %v2944
      %v2963 = vsel %vm2959, %v2944, %v2946
      %v2964 = vsel %vm2959, %v2948, %v2950
      %v2965 = vsel %vm2959, %v2950, %v2952
      %v2966 = vsel %vm2959, %v2954, %v2956
      %v2967 = vsel %vm2959, %v2956, %v2958
      %v2976 = vsel %vm2504, %v2960, 0.0
      %v2977 = vsel %vm2505, %v2961, 0.0
      %v2978 = vsel %vm2504, %v2962, 0.0
      %v2979 = vsel %vm2505, %v2963, 0.0
      %v2980 = vsel %vm2504, %v2964, 0.0
      %v2981 = vsel %vm2505, %v2965, 0.0
      %v2982 = vsel %vm2504, %v2966, 0.0
      %v2983 = vsel %vm2505, %v2967, 0.0
      %2984 = vst [vmem:[#allocation3 + $0x180] sm:$0xff] %v2976
      %2985 = vst [vmem:[#allocation3 + $0x188] sm:$0xff] %v2977
      %2986 = vst [vmem:[#allocation3 + $0x190] sm:$0xff] %v2978
      %2987 = vst [vmem:[#allocation3 + $0x198] sm:$0xff] %v2979
      %2988 = vst [vmem:[#allocation3 + $0x1a0] sm:$0xff] %v2980
      %2989 = vst [vmem:[#allocation3 + $0x1a8] sm:$0xff] %v2981
      %2990 = vst [vmem:[#allocation3 + $0x1b0] sm:$0xff] %v2982
      %2991 = vst [vmem:[#allocation3 + $0x1b8] sm:$0xff] %v2983
      %v2992 = vld [vmem:[#allocation2 + $0x8] sm:$0xff]
      %v2993 = vld [vmem:[#allocation2 + $0x10] sm:$0xff]
      %v2994 = vld [vmem:[#allocation2 + $0x18] sm:$0xff]
      %v2995 = vld [vmem:[#allocation2 + $0x28] sm:$0xff]
      %v2996 = vld [vmem:[#allocation2 + $0x30] sm:$0xff]
      %v2997 = vld [vmem:[#allocation2 + $0x38] sm:$0xff]
      %v2998 = vld [vmem:[#allocation2 + $0x48] sm:$0xff]
      %v2999 = vld [vmem:[#allocation2 + $0x50] sm:$0xff]
      %v3000 = vld [vmem:[#allocation2 + $0x58] sm:$0xff]
      %v3001 = vld [vmem:[#allocation2 + $0x68] sm:$0xff]
      %v3002 = vld [vmem:[#allocation2 + $0x70] sm:$0xff]
      %v3003 = vld [vmem:[#allocation2 + $0x78] sm:$0xff]
      %3016 = vrot.lane.b32.xlu0 %v2992, 112
      %v3017 = vpop.permute.xlu0 %3016
      %3018 = vrot.lane.b32.xlu0 %v2993, 112
      %v3019 = vpop.permute.xlu0 %3018
      %3020 = vrot.lane.b32.xlu0 %v2994, 112
      %v3021 = vpop.permute.xlu0 %3020
      %3022 = vrot.lane.b32.xlu0 %v2995, 112
      %v3023 = vpop.permute.xlu0 %3022
      %3024 = vrot.lane.b32.xlu0 %v2996, 112
      %v3025 = vpop.permute.xlu0 %3024
      %3026 = vrot.lane.b32.xlu0 %v2997, 112
      %v3027 = vpop.permute.xlu0 %3026
      %3028 = vrot.lane.b32.xlu0 %v2998, 112
      %v3029 = vpop.permute.xlu0 %3028
      %3030 = vrot.lane.b32.xlu0 %v2999, 112
      %v3031 = vpop.permute.xlu0 %3030
      %3032 = vrot.lane.b32.xlu0 %v3000, 112
      %v3033 = vpop.permute.xlu0 %3032
      %3034 = vrot.lane.b32.xlu0 %v3001, 112
      %v3035 = vpop.permute.xlu0 %3034
      %3036 = vrot.lane.b32.xlu0 %v3002, 112
      %v3037 = vpop.permute.xlu0 %3036
      %3038 = vrot.lane.b32.xlu0 %v3003, 112
      %v3039 = vpop.permute.xlu0 %3038
      %vm3040 = vcmask 916480
      %v3041 = vsel %vm3040, %v3017, %v3019
      %v3042 = vsel %vm3040, %v3019, %v3021
      %v3043 = vsel %vm3040, %v3023, %v3025
      %v3044 = vsel %vm3040, %v3025, %v3027
      %v3045 = vsel %vm3040, %v3029, %v3031
      %v3046 = vsel %vm3040, %v3031, %v3033
      %v3047 = vsel %vm3040, %v3035, %v3037
      %v3048 = vsel %vm3040, %v3037, %v3039
      %3057 = vst [vmem:[#allocation3 + $0x1c0] sm:$0xff] %v3041
      %3058 = vst [vmem:[#allocation3 + $0x1c8] sm:$0xff] %v3042
      %3059 = vst [vmem:[#allocation3 + $0x1d0] sm:$0xff] %v3043
      %3060 = vst [vmem:[#allocation3 + $0x1d8] sm:$0xff] %v3044
      %3061 = vst [vmem:[#allocation3 + $0x1e0] sm:$0xff] %v3045
      %3062 = vst [vmem:[#allocation3 + $0x1e8] sm:$0xff] %v3046
      %3063 = vst [vmem:[#allocation3 + $0x1f0] sm:$0xff] %v3047
      %3064 = vst [vmem:[#allocation3 + $0x1f8] sm:$0xff] %v3048
      %v3065 = vld [vmem:[#allocation2 + $0x8] sm:$0xff]
      %v3066 = vld [vmem:[#allocation2 + $0x10] sm:$0xff]
      %v3067 = vld [vmem:[#allocation2 + $0x18] sm:$0xff]
      %v3068 = vld [vmem:[#allocation2 + $0x28] sm:$0xff]
      %v3069 = vld [vmem:[#allocation2 + $0x30] sm:$0xff]
      %v3070 = vld [vmem:[#allocation2 + $0x38] sm:$0xff]
      %v3071 = vld [vmem:[#allocation2 + $0x48] sm:$0xff]
      %v3072 = vld [vmem:[#allocation2 + $0x50] sm:$0xff]
      %v3073 = vld [vmem:[#allocation2 + $0x58] sm:$0xff]
      %v3074 = vld [vmem:[#allocation2 + $0x68] sm:$0xff]
      %v3075 = vld [vmem:[#allocation2 + $0x70] sm:$0xff]
      %v3076 = vld [vmem:[#allocation2 + $0x78] sm:$0xff]
      %3089 = vrot.lane.b32.xlu0 %v3065, 111
      %v3090 = vpop.permute.xlu0 %3089
      %3091 = vrot.lane.b32.xlu0 %v3066, 111
      %v3092 = vpop.permute.xlu0 %3091
      %3093 = vrot.lane.b32.xlu0 %v3067, 111
      %v3094 = vpop.permute.xlu0 %3093
      %3095 = vrot.lane.b32.xlu0 %v3068, 111
      %v3096 = vpop.permute.xlu0 %3095
      %3097 = vrot.lane.b32.xlu0 %v3069, 111
      %v3098 = vpop.permute.xlu0 %3097
      %3099 = vrot.lane.b32.xlu0 %v3070, 111
      %v3100 = vpop.permute.xlu0 %3099
      %3101 = vrot.lane.b32.xlu0 %v3071, 111
      %v3102 = vpop.permute.xlu0 %3101
      %3103 = vrot.lane.b32.xlu0 %v3072, 111
      %v3104 = vpop.permute.xlu0 %3103
      %3105 = vrot.lane.b32.xlu0 %v3073, 111
      %v3106 = vpop.permute.xlu0 %3105
      %3107 = vrot.lane.b32.xlu0 %v3074, 111
      %v3108 = vpop.permute.xlu0 %3107
      %3109 = vrot.lane.b32.xlu0 %v3075, 111
      %v3110 = vpop.permute.xlu0 %3109
      %3111 = vrot.lane.b32.xlu0 %v3076, 111
      %v3112 = vpop.permute.xlu0 %3111
      %vm3113 = vcmask 908288
      %v3114 = vsel %vm3113, %v3090, %v3092
      %v3115 = vsel %vm3113, %v3092, %v3094
      %v3116 = vsel %vm3113, %v3096, %v3098
      %v3117 = vsel %vm3113, %v3098, %v3100
      %v3118 = vsel %vm3113, %v3102, %v3104
      %v3119 = vsel %vm3113, %v3104, %v3106
      %v3120 = vsel %vm3113, %v3108, %v3110
      %v3121 = vsel %vm3113, %v3110, %v3112
      %v3130 = vsel %vm2663, %v3114, 0.0
      %v3131 = vsel %vm2664, %v3115, 0.0
      %v3132 = vsel %vm2663, %v3116, 0.0
      %v3133 = vsel %vm2664, %v3117, 0.0
      %v3134 = vsel %vm2663, %v3118, 0.0
      %v3135 = vsel %vm2664, %v3119, 0.0
      %v3136 = vsel %vm2663, %v3120, 0.0
      %v3137 = vsel %vm2664, %v3121, 0.0
      %3138 = vst [vmem:[#allocation3 + $0x200] sm:$0xff] %v3130
      %3139 = vst [vmem:[#allocation3 + $0x208] sm:$0xff] %v3131
      %3140 = vst [vmem:[#allocation3 + $0x210] sm:$0xff] %v3132
      %3141 = vst [vmem:[#allocation3 + $0x218] sm:$0xff] %v3133
      %3142 = vst [vmem:[#allocation3 + $0x220] sm:$0xff] %v3134
      %3143 = vst [vmem:[#allocation3 + $0x228] sm:$0xff] %v3135
      %3144 = vst [vmem:[#allocation3 + $0x230] sm:$0xff] %v3136
      %3145 = vst [vmem:[#allocation3 + $0x238] sm:$0xff] %v3137
      %v3146 = vld [vmem:[#allocation3] sm:$0xff]
      %v3147 = vld [vmem:[#allocation3 + $0x8] sm:$0xff]
      %v3148 = vld [vmem:[#allocation3 + $0x10] sm:$0xff]
      %v3149 = vld [vmem:[#allocation3 + $0x18] sm:$0xff]
      %v3150 = vld [vmem:[#allocation3 + $0x20] sm:$0xff]
      %v3151 = vld [vmem:[#allocation3 + $0x28] sm:$0xff]
      %v3152 = vld [vmem:[#allocation3 + $0x30] sm:$0xff]
      %v3153 = vld [vmem:[#allocation3 + $0x38] sm:$0xff]
      %v3154 = vld [vmem:[#allocation3 + $0x40] sm:$0xff]
      %v3155 = vld [vmem:[#allocation3 + $0x48] sm:$0xff]
      %v3156 = vld [vmem:[#allocation3 + $0x50] sm:$0xff]
      %v3157 = vld [vmem:[#allocation3 + $0x58] sm:$0xff]
      %v3158 = vld [vmem:[#allocation3 + $0x60] sm:$0xff]
      %v3159 = vld [vmem:[#allocation3 + $0x68] sm:$0xff]
      %v3160 = vld [vmem:[#allocation3 + $0x70] sm:$0xff]
      %v3161 = vld [vmem:[#allocation3 + $0x78] sm:$0xff]
      %v3162 = vld [vmem:[#allocation3 + $0x80] sm:$0xff]
      %v3163 = vld [vmem:[#allocation3 + $0x88] sm:$0xff]
      %v3164 = vld [vmem:[#allocation3 + $0x90] sm:$0xff]
      %v3165 = vld [vmem:[#allocation3 + $0x98] sm:$0xff]
      %v3166 = vld [vmem:[#allocation3 + $0xa0] sm:$0xff]
      %v3167 = vld [vmem:[#allocation3 + $0xa8] sm:$0xff]
      %v3168 = vld [vmem:[#allocation3 + $0xb0] sm:$0xff]
      %v3169 = vld [vmem:[#allocation3 + $0xb8] sm:$0xff]
      %v3170 = vld [vmem:[#allocation3 + $0xc0] sm:$0xff]
      %v3171 = vld [vmem:[#allocation3 + $0xc8] sm:$0xff]
      %v3172 = vld [vmem:[#allocation3 + $0xd0] sm:$0xff]
      %v3173 = vld [vmem:[#allocation3 + $0xd8] sm:$0xff]
      %v3174 = vld [vmem:[#allocation3 + $0xe0] sm:$0xff]
      %v3175 = vld [vmem:[#allocation3 + $0xe8] sm:$0xff]
      %v3176 = vld [vmem:[#allocation3 + $0xf0] sm:$0xff]
      %v3177 = vld [vmem:[#allocation3 + $0xf8] sm:$0xff]
      %v3178 = vld [vmem:[#allocation3 + $0x100] sm:$0xff]
      %v3179 = vld [vmem:[#allocation3 + $0x108] sm:$0xff]
      %v3180 = vld [vmem:[#allocation3 + $0x110] sm:$0xff]
      %v3181 = vld [vmem:[#allocation3 + $0x118] sm:$0xff]
      %v3182 = vld [vmem:[#allocation3 + $0x120] sm:$0xff]
      %v3183 = vld [vmem:[#allocation3 + $0x128] sm:$0xff]
      %v3184 = vld [vmem:[#allocation3 + $0x130] sm:$0xff]
      %v3185 = vld [vmem:[#allocation3 + $0x138] sm:$0xff]
      %v3186 = vld [vmem:[#allocation3 + $0x140] sm:$0xff]
      %v3187 = vld [vmem:[#allocation3 + $0x148] sm:$0xff]
      %v3188 = vld [vmem:[#allocation3 + $0x150] sm:$0xff]
      %v3189 = vld [vmem:[#allocation3 + $0x158] sm:$0xff]
      %v3190 = vld [vmem:[#allocation3 + $0x160] sm:$0xff]
      %v3191 = vld [vmem:[#allocation3 + $0x168] sm:$0xff]
      %v3192 = vld [vmem:[#allocation3 + $0x170] sm:$0xff]
      %v3193 = vld [vmem:[#allocation3 + $0x178] sm:$0xff]
      %v3194 = vld [vmem:[#allocation3 + $0x180] sm:$0xff]
      %v3195 = vld [vmem:[#allocation3 + $0x188] sm:$0xff]
      %v3196 = vld [vmem:[#allocation3 + $0x190] sm:$0xff]
      %v3197 = vld [vmem:[#allocation3 + $0x198] sm:$0xff]
      %v3198 = vld [vmem:[#allocation3 + $0x1a0] sm:$0xff]
      %v3199 = vld [vmem:[#allocation3 + $0x1a8] sm:$0xff]
      %v3200 = vld [vmem:[#allocation3 + $0x1b0] sm:$0xff]
      %v3201 = vld [vmem:[#allocation3 + $0x1b8] sm:$0xff]
      %v3202 = vld [vmem:[#allocation3 + $0x1c0] sm:$0xff]
      %v3203 = vld [vmem:[#allocation3 + $0x1c8] sm:$0xff]
      %v3204 = vld [vmem:[#allocation3 + $0x1d0] sm:$0xff]
      %v3205 = vld [vmem:[#allocation3 + $0x1d8] sm:$0xff]
      %v3206 = vld [vmem:[#allocation3 + $0x1e0] sm:$0xff]
      %v3207 = vld [vmem:[#allocation3 + $0x1e8] sm:$0xff]
      %v3208 = vld [vmem:[#allocation3 + $0x1f0] sm:$0xff]
      %v3209 = vld [vmem:[#allocation3 + $0x1f8] sm:$0xff]
      %v3210 = vld [vmem:[#allocation3 + $0x200] sm:$0xff]
      %v3211 = vld [vmem:[#allocation3 + $0x208] sm:$0xff]
      %v3212 = vld [vmem:[#allocation3 + $0x210] sm:$0xff]
      %v3213 = vld [vmem:[#allocation3 + $0x218] sm:$0xff]
      %v3214 = vld [vmem:[#allocation3 + $0x220] sm:$0xff]
      %v3215 = vld [vmem:[#allocation3 + $0x228] sm:$0xff]
      %v3216 = vld [vmem:[#allocation3 + $0x230] sm:$0xff]
      %v3217 = vld [vmem:[#allocation3 + $0x238] sm:$0xff]
      %3219 = vset.pattern.permute.xlu0 0
      %3220 = vperm.xlu0 %3219, %v2457
      %v3221 = vpop.permute.xlu0 %3220
      %3224 = vset.pattern.permute.xlu0 0
      %3225 = vperm.xlu0 %3224, %v2458
      %v3226 = vpop.permute.xlu0 %3225
      %3229 = vset.pattern.permute.xlu0 0
      %3230 = vperm.xlu0 %3229, %v2459
      %v3231 = vpop.permute.xlu0 %3230
      %3234 = vset.pattern.permute.xlu0 0
      %3235 = vperm.xlu0 %3234, %v2460
      %v3236 = vpop.permute.xlu0 %3235
      %v3239 = vsel %vm986, %v2447, 0
      %v3242 = vsel %vm986, %v2450, 0
      %v3245 = vsel %vm986, %v2453, 0
      %v3248 = vsel %vm986, %v2456, 0
      %3250 = vmatpush.msra.mxu0 %v3176
      %3251 = vmatpush.msra.mxu0 %v3174
      %3252 = vmatpush.msra.mxu0 %v3172
      %3253 = vmatpush.msra.mxu0 %v3170
      %3254 = vmatpush.msra.mxu0 %v3168
      %3255 = vmatpush.msra.mxu0 %v3166
      %3256 = vmatpush.msra.mxu0 %v3164
      %3257 = vmatpush.msra.mxu0 %v3162
      %3258 = vmatpush.msra.mxu0 %v3160
      %3259 = vmatpush.msra.mxu0 %v3158
      %3260 = vmatpush.msra.mxu0 %v3156
      %3261 = vmatpush.msra.mxu0 %v3154
      %3262 = vmatpush.msra.mxu0 %v3152
      %3263 = vmatpush.msra.mxu0 %v3150
      %3264 = vmatpush.msra.mxu0 %v3148
      %3265 = vmatpush.msra.mxu0 %v3146
      %3266 = vmatmul.f32.gmra.mxu0 %v2445
      %v3267 = vpop.f32.mrf.mxu0
      %v3268 = vadd.f32 %v3221, %v3267
      %3269 = vmatmul.f32.gmra.mxu0 %v2448
      %v3270 = vpop.f32.mrf.mxu0
      %v3271 = vadd.f32 %v3226, %v3270
      %3272 = vmatmul.f32.gmra.mxu0 %v2451
      %v3273 = vpop.f32.mrf.mxu0
      %v3274 = vadd.f32 %v3231, %v3273
      %3275 = vmatmul.f32.gmra.mxu0 %v2454
      %v3276 = vpop.f32.mrf.mxu0
      %v3277 = vadd.f32 %v3236, %v3276
      %3278 = vdwg.mxu0
      %3279 = vmatpush.msra.mxu0 %v3208
      %3280 = vmatpush.msra.mxu0 %v3206
      %3281 = vmatpush.msra.mxu0 %v3204
      %3282 = vmatpush.msra.mxu0 %v3202
      %3283 = vmatpush.msra.mxu0 %v3200
      %3284 = vmatpush.msra.mxu0 %v3198
      %3285 = vmatpush.msra.mxu0 %v3196
      %3286 = vmatpush.msra.mxu0 %v3194
      %3287 = vmatpush.msra.mxu0 %v3192
      %3288 = vmatpush.msra.mxu0 %v3190
      %3289 = vmatpush.msra.mxu0 %v3188
      %3290 = vmatpush.msra.mxu0 %v3186
      %3291 = vmatpush.msra.mxu0 %v3184
      %3292 = vmatpush.msra.mxu0 %v3182
      %3293 = vmatpush.msra.mxu0 %v3180
      %3294 = vmatpush.msra.mxu0 %v3178
      %3295 = vmatmul.f32.gmra.mxu0 %v2446
      %v3296 = vpop.f32.mrf.mxu0
      %v3297 = vadd.f32 %v3268, %v3296
      %3298 = vmatmul.f32.gmra.mxu0 %v2449
      %v3299 = vpop.f32.mrf.mxu0
      %v3300 = vadd.f32 %v3271, %v3299
      %3301 = vmatmul.f32.gmra.mxu0 %v2452
      %v3302 = vpop.f32.mrf.mxu0
      %v3303 = vadd.f32 %v3274, %v3302
      %3304 = vmatmul.f32.gmra.mxu0 %v2455
      %v3305 = vpop.f32.mrf.mxu0
      %v3306 = vadd.f32 %v3277, %v3305
      %3307 = vdwg.mxu0
      %3308 = vmatpush.msra.mxu0 0.0
      %3309 = vmatpush.msra.mxu0 0.0
      %3310 = vmatpush.msra.mxu0 0.0
      %3311 = vmatpush.msra.mxu0 0.0
      %3312 = vmatpush.msra.mxu0 0.0
      %3313 = vmatpush.msra.mxu0 0.0
      %3314 = vmatpush.msra.mxu0 0.0
      %3315 = vmatpush.msra.mxu0 0.0
      %3316 = vmatpush.msra.mxu0 0.0
      %3317 = vmatpush.msra.mxu0 0.0
      %3318 = vmatpush.msra.mxu0 0.0
      %3319 = vmatpush.msra.mxu0 0.0
      %3320 = vmatpush.msra.mxu0 %v3216
      %3321 = vmatpush.msra.mxu0 %v3214
      %3322 = vmatpush.msra.mxu0 %v3212
      %3323 = vmatpush.msra.mxu0 %v3210
      %3324 = vmatmul.f32.gmra.mxu0 %v3239
      %v3325 = vpop.f32.mrf.mxu0
      %v3326 = vadd.f32 %v3297, %v3325
      %3327 = vmatmul.f32.gmra.mxu0 %v3242
      %v3328 = vpop.f32.mrf.mxu0
      %v3329 = vadd.f32 %v3300, %v3328
      %3330 = vmatmul.f32.gmra.mxu0 %v3245
      %v3331 = vpop.f32.mrf.mxu0
      %v3332 = vadd.f32 %v3303, %v3331
      %3333 = vmatmul.f32.gmra.mxu0 %v3248
      %v3334 = vpop.f32.mrf.mxu0
      %v3335 = vadd.f32 %v3306, %v3334
      %3336 = vdwg.mxu0
      %3337 = vmatpush.msra.mxu0 %v3177
      %3338 = vmatpush.msra.mxu0 %v3175
      %3339 = vmatpush.msra.mxu0 %v3173
      %3340 = vmatpush.msra.mxu0 %v3171
      %3341 = vmatpush.msra.mxu0 %v3169
      %3342 = vmatpush.msra.mxu0 %v3167
      %3343 = vmatpush.msra.mxu0 %v3165
      %3344 = vmatpush.msra.mxu0 %v3163
      %3345 = vmatpush.msra.mxu0 %v3161
      %3346 = vmatpush.msra.mxu0 %v3159
      %3347 = vmatpush.msra.mxu0 %v3157
      %3348 = vmatpush.msra.mxu0 %v3155
      %3349 = vmatpush.msra.mxu0 %v3153
      %3350 = vmatpush.msra.mxu0 %v3151
      %3351 = vmatpush.msra.mxu0 %v3149
      %3352 = vmatpush.msra.mxu0 %v3147
      %3353 = vmatmul.f32.gmra.mxu0 %v2445
      %v3354 = vpop.f32.mrf.mxu0
      %v3355 = vadd.f32 %v3221, %v3354
      %3356 = vmatmul.f32.gmra.mxu0 %v2448
      %v3357 = vpop.f32.mrf.mxu0
      %v3358 = vadd.f32 %v3226, %v3357
      %3359 = vmatmul.f32.gmra.mxu0 %v2451
      %v3360 = vpop.f32.mrf.mxu0
      %v3361 = vadd.f32 %v3231, %v3360
      %3362 = vmatmul.f32.gmra.mxu0 %v2454
      %v3363 = vpop.f32.mrf.mxu0
      %v3364 = vadd.f32 %v3236, %v3363
      %3365 = vdwg.mxu0
      %3366 = vmatpush.msra.mxu0 %v3209
      %3367 = vmatpush.msra.mxu0 %v3207
      %3368 = vmatpush.msra.mxu0 %v3205
      %3369 = vmatpush.msra.mxu0 %v3203
      %3370 = vmatpush.msra.mxu0 %v3201
      %3371 = vmatpush.msra.mxu0 %v3199
      %3372 = vmatpush.msra.mxu0 %v3197
      %3373 = vmatpush.msra.mxu0 %v3195
      %3374 = vmatpush.msra.mxu0 %v3193
      %3375 = vmatpush.msra.mxu0 %v3191
      %3376 = vmatpush.msra.mxu0 %v3189
      %3377 = vmatpush.msra.mxu0 %v3187
      %3378 = vmatpush.msra.mxu0 %v3185
      %3379 = vmatpush.msra.mxu0 %v3183
      %3380 = vmatpush.msra.mxu0 %v3181
      %3381 = vmatpush.msra.mxu0 %v3179
      %3382 = vmatmul.f32.gmra.mxu0 %v2446
      %v3383 = vpop.f32.mrf.mxu0
      %v3384 = vadd.f32 %v3355, %v3383
      %3385 = vmatmul.f32.gmra.mxu0 %v2449
      %v3386 = vpop.f32.mrf.mxu0
      %v3387 = vadd.f32 %v3358, %v3386
      %3388 = vmatmul.f32.gmra.mxu0 %v2452
      %v3389 = vpop.f32.mrf.mxu0
      %v3390 = vadd.f32 %v3361, %v3389
      %3391 = vmatmul.f32.gmra.mxu0 %v2455
      %v3392 = vpop.f32.mrf.mxu0
      %v3393 = vadd.f32 %v3364, %v3392
      %3394 = vdwg.mxu0
      %3395 = vmatpush.msra.mxu0 0.0
      %3396 = vmatpush.msra.mxu0 0.0
      %3397 = vmatpush.msra.mxu0 0.0
      %3398 = vmatpush.msra.mxu0 0.0
      %3399 = vmatpush.msra.mxu0 0.0
      %3400 = vmatpush.msra.mxu0 0.0
      %3401 = vmatpush.msra.mxu0 0.0
      %3402 = vmatpush.msra.mxu0 0.0
      %3403 = vmatpush.msra.mxu0 0.0
      %3404 = vmatpush.msra.mxu0 0.0
      %3405 = vmatpush.msra.mxu0 0.0
      %3406 = vmatpush.msra.mxu0 0.0
      %3407 = vmatpush.msra.mxu0 %v3217
      %3408 = vmatpush.msra.mxu0 %v3215
      %3409 = vmatpush.msra.mxu0 %v3213
      %3410 = vmatpush.msra.mxu0 %v3211
      %3411 = vmatmul.f32.gmra.mxu0 %v3239
      %v3412 = vpop.f32.mrf.mxu0
      %v3413 = vadd.f32 %v3384, %v3412
      %3414 = vmatmul.f32.gmra.mxu0 %v3242
      %v3415 = vpop.f32.mrf.mxu0
      %v3416 = vadd.f32 %v3387, %v3415
      %3417 = vmatmul.f32.gmra.mxu0 %v3245
      %v3418 = vpop.f32.mrf.mxu0
      %v3419 = vadd.f32 %v3390, %v3418
      %3420 = vmatmul.f32.gmra.mxu0 %v3248
      %v3421 = vpop.f32.mrf.mxu0
      %v3422 = vadd.f32 %v3393, %v3421
      %3423 = vdwg.mxu0
      %v3424 = vadd.f32 %v3326, %v3413
      %3425 = vadd.xlane.f32.xlu0 %v3424
      %v3426 = vpop.xlane.xlu0 %3425
      %v3427 = vadd.f32 %v3329, %v3416
      %3428 = vadd.xlane.f32.xlu0 %v3427
      %v3429 = vpop.xlane.xlu0 %3428
      %v3430 = vadd.f32 %v3332, %v3419
      %3431 = vadd.xlane.f32.xlu0 %v3430
      %v3432 = vpop.xlane.xlu0 %3431
      %v3433 = vadd.f32 %v3335, %v3422
      %3434 = vadd.xlane.f32.xlu0 %v3433
      %v3435 = vpop.xlane.xlu0 %3434
      %v3436 = vmul.f32 %v3426, 0.00390625
      %v3437 = vmul.f32 %v3429, 0.00390625
      %v3438 = vmul.f32 %v3432, 0.00390625
      %v3439 = vmul.f32 %v3435, 0.00390625
      %v3440 = vld [vmem:[%s35] sm:$0xff]
      %v3441 = vld [vmem:[%s37] sm:$0xff]
      %v3443 = vsel %vm986, %v3440, 0
      %3445 = vmatpush.msra.mxu0 0.0
      %3446 = vmatpush.msra.mxu0 0.0
      %3447 = vmatpush.msra.mxu0 0.0
      %3448 = vmatpush.msra.mxu0 0.0
      %3449 = vmatpush.msra.mxu0 0.0
      %3450 = vmatpush.msra.mxu0 0.0
      %3451 = vmatpush.msra.mxu0 0.0
      %3452 = vmatpush.msra.mxu0 0.0
      %3453 = vmatpush.msra.mxu0 0.0
      %3454 = vmatpush.msra.mxu0 0.0
      %3455 = vmatpush.msra.mxu0 0.0
      %3456 = vmatpush.msra.mxu0 0.0
      %3457 = vmatpush.msra.mxu0 %v3439
      %3458 = vmatpush.msra.mxu0 %v3438
      %3459 = vmatpush.msra.mxu0 %v3437
      %3460 = vmatpush.msra.mxu0 %v3436
      %3461 = vmatmul.f32.gmra.mxu0 %v3443
      %v3462 = vpop.f32.mrf.mxu0
      %v3463 = vadd.f32 %v3441, %v3462
      %3464 = vdwg.mxu0
      %v3465 = vmax.f32 %v3463, 0.0
      %v3466 = vld [vmem:[%s39] sm:$0xff]
      %v3467 = vld [vmem:[%s39 + $0x8] sm:$0xff]
      %v3468 = vld [vmem:[%s39 + $0x10] sm:$0xff]
      %v3469 = vld [vmem:[%s39 + $0x18] sm:$0xff]
      %v3470 = vld [vmem:[%s41] sm:$0xff]
      %v3471 = vld [vmem:[%s41 + $0x8] sm:$0xff]
      %v3472 = vld [vmem:[%s41 + $0x10] sm:$0xff]
      %v3473 = vld [vmem:[%s41 + $0x18] sm:$0xff]
      %v3475 = vsel %vm1955, %v3466, 0
      %v3478 = vsel %vm1955, %v3467, 0
      %v3481 = vsel %vm1955, %v3468, 0
      %v3484 = vsel %vm1955, %v3469, 0
      %3486 = vmatpush.msra.mxu0 0.0
      %3487 = vmatpush.msra.mxu0 0.0
      %3488 = vmatpush.msra.mxu0 0.0
      %3489 = vmatpush.msra.mxu0 0.0
      %3490 = vmatpush.msra.mxu0 0.0
      %3491 = vmatpush.msra.mxu0 0.0
      %3492 = vmatpush.msra.mxu0 0.0
      %3493 = vmatpush.msra.mxu0 0.0
      %3494 = vmatpush.msra.mxu0 0.0
      %3495 = vmatpush.msra.mxu0 0.0
      %3496 = vmatpush.msra.mxu0 0.0
      %3497 = vmatpush.msra.mxu0 0.0
      %3498 = vmatpush.msra.mxu0 0.0
      %3499 = vmatpush.msra.mxu0 0.0
      %3500 = vmatpush.msra.mxu0 0.0
      %3501 = vmatpush.msra.mxu0 %v3465
      %3502 = vmatmul.f32.gmra.mxu0 %v3475
      %v3503 = vpop.f32.mrf.mxu0
      %v3504 = vadd.f32 %v3470, %v3503
      %3505 = vmatmul.f32.gmra.mxu0 %v3478
      %v3506 = vpop.f32.mrf.mxu0
      %v3507 = vadd.f32 %v3471, %v3506
      %3508 = vmatmul.f32.gmra.mxu0 %v3481
      %v3509 = vpop.f32.mrf.mxu0
      %v3510 = vadd.f32 %v3472, %v3509
      %3511 = vmatmul.f32.gmra.mxu0 %v3484
      %v3512 = vpop.f32.mrf.mxu0
      %v3513 = vadd.f32 %v3473, %v3512
      %3514 = vdwg.mxu0
      %v3515 = vxor.u32 %v3504, 2147483648
      %v3516 = vxor.u32 %v3507, 2147483648
      %v3517 = vxor.u32 %v3510, 2147483648
      %v3518 = vxor.u32 %v3513, 2147483648
      %v3519 = vmul.f32 %v3515, 1.442695
      %v3520 = vpow.pop %v3519
      %v3521 = vmul.f32 %v3516, 1.442695
      %v3522 = vpow.pop %v3521
      %v3523 = vmul.f32 %v3517, 1.442695
      %v3524 = vpow.pop %v3523
      %v3525 = vmul.f32 %v3518, 1.442695
      %v3526 = vpow.pop %v3525
      %v3527 = vadd.f32 %v3520, 1.0
      %v3528 = vadd.f32 %v3522, 1.0
      %v3529 = vadd.f32 %v3524, 1.0
      %v3530 = vadd.f32 %v3526, 1.0
      %v3531 = vrcp.pop %v3527
      %v3532 = vmul.f32 %v3527, %v3531
      %v3533 = vsub.f32 1.0, %v3532
      %v3534 = vmul.f32 %v3531, %v3533
      %v3535 = vadd.f32 %v3531, %v3534
      %vm3536 = vweird.f32 %v3527
      %vm3537 = vweird.f32 %v3531
      %vm3538 = vmor %vm3536, %vm3537
      %v3539 = vsel %vm3538, %v3531, %v3535
      %v3540 = vand.u32 2147483647, %v3527
      %vm3541 = vcmp.eq.f32.partialorder %v3540, 8.507059e+37
      %v3542 = vand.u32 %v3527, 2147483648
      %v3543 = vor.u32 1.1754944e-38, %v3542
      %v3544 = vsel %vm3541, %v3543, %v3539
      %v3545 = vmul.f32 1.0, %v3544
      %v3546 = vrcp.pop %v3528
      %v3547 = vmul.f32 %v3528, %v3546
      %v3548 = vsub.f32 1.0, %v3547
      %v3549 = vmul.f32 %v3546, %v3548
      %v3550 = vadd.f32 %v3546, %v3549
      %vm3551 = vweird.f32 %v3528
      %vm3552 = vweird.f32 %v3546
      %vm3553 = vmor %vm3551, %vm3552
      %v3554 = vsel %vm3553, %v3546, %v3550
      %v3555 = vand.u32 2147483647, %v3528
      %vm3556 = vcmp.eq.f32.partialorder %v3555, 8.507059e+37
      %v3557 = vand.u32 %v3528, 2147483648
      %v3558 = vor.u32 1.1754944e-38, %v3557
      %v3559 = vsel %vm3556, %v3558, %v3554
      %v3560 = vmul.f32 1.0, %v3559
      %v3561 = vrcp.pop %v3529
      %v3562 = vmul.f32 %v3529, %v3561
      %v3563 = vsub.f32 1.0, %v3562
      %v3564 = vmul.f32 %v3561, %v3563
      %v3565 = vadd.f32 %v3561, %v3564
      %vm3566 = vweird.f32 %v3529
      %vm3567 = vweird.f32 %v3561
      %vm3568 = vmor %vm3566, %vm3567
      %v3569 = vsel %vm3568, %v3561, %v3565
      %v3570 = vand.u32 2147483647, %v3529
      %vm3571 = vcmp.eq.f32.partialorder %v3570, 8.507059e+37
      %v3572 = vand.u32 %v3529, 2147483648
      %v3573 = vor.u32 1.1754944e-38, %v3572
      %v3574 = vsel %vm3571, %v3573, %v3569
      %v3575 = vmul.f32 1.0, %v3574
      %v3576 = vrcp.pop %v3530
      %v3577 = vmul.f32 %v3530, %v3576
      %v3578 = vsub.f32 1.0, %v3577
      %v3579 = vmul.f32 %v3576, %v3578
      %v3580 = vadd.f32 %v3576, %v3579
      %vm3581 = vweird.f32 %v3530
      %vm3582 = vweird.f32 %v3576
      %vm3583 = vmor %vm3581, %vm3582
      %v3584 = vsel %vm3583, %v3576, %v3580
      %v3585 = vand.u32 2147483647, %v3530
      %vm3586 = vcmp.eq.f32.partialorder %v3585, 8.507059e+37
      %v3587 = vand.u32 %v3530, 2147483648
      %v3588 = vor.u32 1.1754944e-38, %v3587
      %v3589 = vsel %vm3586, %v3588, %v3584
      %v3590 = vmul.f32 1.0, %v3589
      %v3591 = vsel %vm1763, %v2328, 0.0
      %3592 = vadd.xlane.f32.xlu0 %v3591
      %v3593 = vpop.xlane.xlu0 %3592
      %v3594 = vsel %vm1763, %v2331, 0.0
      %3595 = vadd.xlane.f32.xlu0 %v3594
      %v3596 = vpop.xlane.xlu0 %3595
      %v3597 = vsel %vm1763, %v2334, 0.0
      %3598 = vadd.xlane.f32.xlu0 %v3597
      %v3599 = vpop.xlane.xlu0 %3598
      %v3600 = vsel %vm1763, %v2337, 0.0
      %3601 = vadd.xlane.f32.xlu0 %v3600
      %v3602 = vpop.xlane.xlu0 %3601
      %v3603 = vmul.f32 %v3593, 0.015625
      %v3604 = vmul.f32 %v3596, 0.015625
      %v3605 = vmul.f32 %v3599, 0.015625
      %v3606 = vmul.f32 %v3602, 0.015625
      %v3607 = vld [vmem:[%s43] sm:$0xff]
      %v3608 = vld [vmem:[%s45] sm:$0xff]
      %v3610 = vsel %vm986, %v3607, 0
      %3612 = vmatpush.msra.mxu0 0.0
      %3613 = vmatpush.msra.mxu0 0.0
      %3614 = vmatpush.msra.mxu0 0.0
      %3615 = vmatpush.msra.mxu0 0.0
      %3616 = vmatpush.msra.mxu0 0.0
      %3617 = vmatpush.msra.mxu0 0.0
      %3618 = vmatpush.msra.mxu0 0.0
      %3619 = vmatpush.msra.mxu0 0.0
      %3620 = vmatpush.msra.mxu0 0.0
      %3621 = vmatpush.msra.mxu0 0.0
      %3622 = vmatpush.msra.mxu0 0.0
      %3623 = vmatpush.msra.mxu0 0.0
      %3624 = vmatpush.msra.mxu0 %v3606
      %3625 = vmatpush.msra.mxu0 %v3605
      %3626 = vmatpush.msra.mxu0 %v3604
      %3627 = vmatpush.msra.mxu0 %v3603
      %3628 = vmatmul.f32.gmra.mxu0 %v3610
      %v3629 = vpop.f32.mrf.mxu0
      %v3630 = vadd.f32 %v3608, %v3629
      %3631 = vdwg.mxu0
      %v3632 = vmax.f32 %v3630, 0.0
      %v3633 = vld [vmem:[%s47] sm:$0xff]
      %v3634 = vld [vmem:[%s47 + $0x8] sm:$0xff]
      %v3635 = vld [vmem:[%s47 + $0x10] sm:$0xff]
      %v3636 = vld [vmem:[%s47 + $0x18] sm:$0xff]
      %v3637 = vld [vmem:[%s49] sm:$0xff]
      %v3638 = vld [vmem:[%s49 + $0x8] sm:$0xff]
      %v3639 = vld [vmem:[%s49 + $0x10] sm:$0xff]
      %v3640 = vld [vmem:[%s49 + $0x18] sm:$0xff]
      %v3642 = vsel %vm1955, %v3633, 0
      %v3645 = vsel %vm1955, %v3634, 0
      %v3648 = vsel %vm1955, %v3635, 0
      %v3651 = vsel %vm1955, %v3636, 0
      %3653 = vmatpush.msra.mxu0 0.0
      %3654 = vmatpush.msra.mxu0 0.0
      %3655 = vmatpush.msra.mxu0 0.0
      %3656 = vmatpush.msra.mxu0 0.0
      %3657 = vmatpush.msra.mxu0 0.0
      %3658 = vmatpush.msra.mxu0 0.0
      %3659 = vmatpush.msra.mxu0 0.0
      %3660 = vmatpush.msra.mxu0 0.0
      %3661 = vmatpush.msra.mxu0 0.0
      %3662 = vmatpush.msra.mxu0 0.0
      %3663 = vmatpush.msra.mxu0 0.0
      %3664 = vmatpush.msra.mxu0 0.0
      %3665 = vmatpush.msra.mxu0 0.0
      %3666 = vmatpush.msra.mxu0 0.0
      %3667 = vmatpush.msra.mxu0 0.0
      %3668 = vmatpush.msra.mxu0 %v3632
      %3669 = vmatmul.f32.gmra.mxu0 %v3642
      %v3670 = vpop.f32.mrf.mxu0
      %v3671 = vadd.f32 %v3637, %v3670
      %3672 = vmatmul.f32.gmra.mxu0 %v3645
      %v3673 = vpop.f32.mrf.mxu0
      %v3674 = vadd.f32 %v3638, %v3673
      %3675 = vmatmul.f32.gmra.mxu0 %v3648
      %v3676 = vpop.f32.mrf.mxu0
      %v3677 = vadd.f32 %v3639, %v3676
      %3678 = vmatmul.f32.gmra.mxu0 %v3651
      %v3679 = vpop.f32.mrf.mxu0
      %v3680 = vadd.f32 %v3640, %v3679
      %3681 = vdwg.mxu0
      %v3682 = vxor.u32 %v3671, 2147483648
      %v3683 = vxor.u32 %v3674, 2147483648
      %v3684 = vxor.u32 %v3677, 2147483648
      %v3685 = vxor.u32 %v3680, 2147483648
      %v3686 = vmul.f32 %v3682, 1.442695
      %v3687 = vpow.pop %v3686
      %v3688 = vmul.f32 %v3683, 1.442695
      %v3689 = vpow.pop %v3688
      %v3690 = vmul.f32 %v3684, 1.442695
      %v3691 = vpow.pop %v3690
      %v3692 = vmul.f32 %v3685, 1.442695
      %v3693 = vpow.pop %v3692
      %v3694 = vadd.f32 %v3687, 1.0
      %v3695 = vadd.f32 %v3689, 1.0
      %v3696 = vadd.f32 %v3691, 1.0
      %v3697 = vadd.f32 %v3693, 1.0
      %v3698 = vrcp.pop %v3694
      %v3699 = vmul.f32 %v3694, %v3698
      %v3700 = vsub.f32 1.0, %v3699
      %v3701 = vmul.f32 %v3698, %v3700
      %v3702 = vadd.f32 %v3698, %v3701
      %vm3703 = vweird.f32 %v3694
      %vm3704 = vweird.f32 %v3698
      %vm3705 = vmor %vm3703, %vm3704
      %v3706 = vsel %vm3705, %v3698, %v3702
      %v3707 = vand.u32 2147483647, %v3694
      %vm3708 = vcmp.eq.f32.partialorder %v3707, 8.507059e+37
      %v3709 = vand.u32 %v3694, 2147483648
      %v3710 = vor.u32 1.1754944e-38, %v3709
      %v3711 = vsel %vm3708, %v3710, %v3706
      %v3712 = vmul.f32 1.0, %v3711
      %v3713 = vrcp.pop %v3695
      %v3714 = vmul.f32 %v3695, %v3713
      %v3715 = vsub.f32 1.0, %v3714
      %v3716 = vmul.f32 %v3713, %v3715
      %v3717 = vadd.f32 %v3713, %v3716
      %vm3718 = vweird.f32 %v3695
      %vm3719 = vweird.f32 %v3713
      %vm3720 = vmor %vm3718, %vm3719
      %v3721 = vsel %vm3720, %v3713, %v3717
      %v3722 = vand.u32 2147483647, %v3695
      %vm3723 = vcmp.eq.f32.partialorder %v3722, 8.507059e+37
      %v3724 = vand.u32 %v3695, 2147483648
      %v3725 = vor.u32 1.1754944e-38, %v3724
      %v3726 = vsel %vm3723, %v3725, %v3721
      %v3727 = vmul.f32 1.0, %v3726
      %v3728 = vrcp.pop %v3696
      %v3729 = vmul.f32 %v3696, %v3728
      %v3730 = vsub.f32 1.0, %v3729
      %v3731 = vmul.f32 %v3728, %v3730
      %v3732 = vadd.f32 %v3728, %v3731
      %vm3733 = vweird.f32 %v3696
      %vm3734 = vweird.f32 %v3728
      %vm3735 = vmor %vm3733, %vm3734
      %v3736 = vsel %vm3735, %v3728, %v3732
      %v3737 = vand.u32 2147483647, %v3696
      %vm3738 = vcmp.eq.f32.partialorder %v3737, 8.507059e+37
      %v3739 = vand.u32 %v3696, 2147483648
      %v3740 = vor.u32 1.1754944e-38, %v3739
      %v3741 = vsel %vm3738, %v3740, %v3736
      %v3742 = vmul.f32 1.0, %v3741
      %v3743 = vrcp.pop %v3697
      %v3744 = vmul.f32 %v3697, %v3743
      %v3745 = vsub.f32 1.0, %v3744
      %v3746 = vmul.f32 %v3743, %v3745
      %v3747 = vadd.f32 %v3743, %v3746
      %vm3748 = vweird.f32 %v3697
      %vm3749 = vweird.f32 %v3743
      %vm3750 = vmor %vm3748, %vm3749
      %v3751 = vsel %vm3750, %v3743, %v3747
      %v3752 = vand.u32 2147483647, %v3697
      %vm3753 = vcmp.eq.f32.partialorder %v3752, 8.507059e+37
      %v3754 = vand.u32 %v3697, 2147483648
      %v3755 = vor.u32 1.1754944e-38, %v3754
      %v3756 = vsel %vm3753, %v3755, %v3751
      %v3757 = vmul.f32 1.0, %v3756
      %v3758 = vsel %vm1032, %v1662, 0.0
      %3759 = vadd.xlane.f32.xlu0 %v3758
      %v3760 = vpop.xlane.xlu0 %3759
      %v3761 = vsel %vm1032, %v1665, 0.0
      %3762 = vadd.xlane.f32.xlu0 %v3761
      %v3763 = vpop.xlane.xlu0 %3762
      %v3764 = vsel %vm1032, %v1668, 0.0
      %3765 = vadd.xlane.f32.xlu0 %v3764
      %v3766 = vpop.xlane.xlu0 %3765
      %v3767 = vsel %vm1032, %v1671, 0.0
      %3768 = vadd.xlane.f32.xlu0 %v3767
      %v3769 = vpop.xlane.xlu0 %3768
      %v3770 = vmul.f32 %v3760, 0.0625
      %v3771 = vmul.f32 %v3763, 0.0625
      %v3772 = vmul.f32 %v3766, 0.0625
      %v3773 = vmul.f32 %v3769, 0.0625
      %v3774 = vld [vmem:[%s51] sm:$0xff]
      %v3775 = vld [vmem:[%s53] sm:$0xff]
      %v3777 = vsel %vm986, %v3774, 0
      %3779 = vmatpush.msra.mxu0 0.0
      %3780 = vmatpush.msra.mxu0 0.0
      %3781 = vmatpush.msra.mxu0 0.0
      %3782 = vmatpush.msra.mxu0 0.0
      %3783 = vmatpush.msra.mxu0 0.0
      %3784 = vmatpush.msra.mxu0 0.0
      %3785 = vmatpush.msra.mxu0 0.0
      %3786 = vmatpush.msra.mxu0 0.0
      %3787 = vmatpush.msra.mxu0 0.0
      %3788 = vmatpush.msra.mxu0 0.0
      %3789 = vmatpush.msra.mxu0 0.0
      %3790 = vmatpush.msra.mxu0 0.0
      %3791 = vmatpush.msra.mxu0 %v3773
      %3792 = vmatpush.msra.mxu0 %v3772
      %3793 = vmatpush.msra.mxu0 %v3771
      %3794 = vmatpush.msra.mxu0 %v3770
      %3795 = vmatmul.f32.gmra.mxu0 %v3777
      %v3796 = vpop.f32.mrf.mxu0
      %v3797 = vadd.f32 %v3775, %v3796
      %3798 = vdwg.mxu0
      %v3799 = vmax.f32 %v3797, 0.0
      %v3800 = vld [vmem:[%s55] sm:$0xff]
      %v3801 = vld [vmem:[%s55 + $0x8] sm:$0xff]
      %v3802 = vld [vmem:[%s55 + $0x10] sm:$0xff]
      %v3803 = vld [vmem:[%s55 + $0x18] sm:$0xff]
      %v3804 = vld [vmem:[%s57] sm:$0xff]
      %v3805 = vld [vmem:[%s57 + $0x8] sm:$0xff]
      %v3806 = vld [vmem:[%s57 + $0x10] sm:$0xff]
      %v3807 = vld [vmem:[%s57 + $0x18] sm:$0xff]
      %v3809 = vsel %vm1955, %v3800, 0
      %v3812 = vsel %vm1955, %v3801, 0
      %v3815 = vsel %vm1955, %v3802, 0
      %v3818 = vsel %vm1955, %v3803, 0
      %3820 = vmatpush.msra.mxu0 0.0
      %3821 = vmatpush.msra.mxu0 0.0
      %3822 = vmatpush.msra.mxu0 0.0
      %3823 = vmatpush.msra.mxu0 0.0
      %3824 = vmatpush.msra.mxu0 0.0
      %3825 = vmatpush.msra.mxu0 0.0
      %3826 = vmatpush.msra.mxu0 0.0
      %3827 = vmatpush.msra.mxu0 0.0
      %3828 = vmatpush.msra.mxu0 0.0
      %3829 = vmatpush.msra.mxu0 0.0
      %3830 = vmatpush.msra.mxu0 0.0
      %3831 = vmatpush.msra.mxu0 0.0
      %3832 = vmatpush.msra.mxu0 0.0
      %3833 = vmatpush.msra.mxu0 0.0
      %3834 = vmatpush.msra.mxu0 0.0
      %3835 = vmatpush.msra.mxu0 %v3799
      %3836 = vmatmul.f32.gmra.mxu0 %v3809
      %v3837 = vpop.f32.mrf.mxu0
      %v3838 = vadd.f32 %v3804, %v3837
      %3839 = vmatmul.f32.gmra.mxu0 %v3812
      %v3840 = vpop.f32.mrf.mxu0
      %v3841 = vadd.f32 %v3805, %v3840
      %3842 = vmatmul.f32.gmra.mxu0 %v3815
      %v3843 = vpop.f32.mrf.mxu0
      %v3844 = vadd.f32 %v3806, %v3843
      %3845 = vmatmul.f32.gmra.mxu0 %v3818
      %v3846 = vpop.f32.mrf.mxu0
      %v3847 = vadd.f32 %v3807, %v3846
      %3848 = vdwg.mxu0
      %v3849 = vxor.u32 %v3838, 2147483648
      %v3850 = vxor.u32 %v3841, 2147483648
      %v3851 = vxor.u32 %v3844, 2147483648
      %v3852 = vxor.u32 %v3847, 2147483648
      %v3853 = vmul.f32 %v3849, 1.442695
      %v3854 = vpow.pop %v3853
      %v3855 = vmul.f32 %v3850, 1.442695
      %v3856 = vpow.pop %v3855
      %v3857 = vmul.f32 %v3851, 1.442695
      %v3858 = vpow.pop %v3857
      %v3859 = vmul.f32 %v3852, 1.442695
      %v3860 = vpow.pop %v3859
      %v3861 = vadd.f32 %v3854, 1.0
      %v3862 = vadd.f32 %v3856, 1.0
      %v3863 = vadd.f32 %v3858, 1.0
      %v3864 = vadd.f32 %v3860, 1.0
      %v3865 = vrcp.pop %v3861
      %v3866 = vmul.f32 %v3861, %v3865
      %v3867 = vsub.f32 1.0, %v3866
      %v3868 = vmul.f32 %v3865, %v3867
      %v3869 = vadd.f32 %v3865, %v3868
      %vm3870 = vweird.f32 %v3861
      %vm3871 = vweird.f32 %v3865
      %vm3872 = vmor %vm3870, %vm3871
      %v3873 = vsel %vm3872, %v3865, %v3869
      %v3874 = vand.u32 2147483647, %v3861
      %vm3875 = vcmp.eq.f32.partialorder %v3874, 8.507059e+37
      %v3876 = vand.u32 %v3861, 2147483648
      %v3877 = vor.u32 1.1754944e-38, %v3876
      %v3878 = vsel %vm3875, %v3877, %v3873
      %v3879 = vmul.f32 1.0, %v3878
      %v3880 = vrcp.pop %v3862
      %v3881 = vmul.f32 %v3862, %v3880
      %v3882 = vsub.f32 1.0, %v3881
      %v3883 = vmul.f32 %v3880, %v3882
      %v3884 = vadd.f32 %v3880, %v3883
      %vm3885 = vweird.f32 %v3862
      %vm3886 = vweird.f32 %v3880
      %vm3887 = vmor %vm3885, %vm3886
      %v3888 = vsel %vm3887, %v3880, %v3884
      %v3889 = vand.u32 2147483647, %v3862
      %vm3890 = vcmp.eq.f32.partialorder %v3889, 8.507059e+37
      %v3891 = vand.u32 %v3862, 2147483648
      %v3892 = vor.u32 1.1754944e-38, %v3891
      %v3893 = vsel %vm3890, %v3892, %v3888
      %v3894 = vmul.f32 1.0, %v3893
      %v3895 = vrcp.pop %v3863
      %v3896 = vmul.f32 %v3863, %v3895
      %v3897 = vsub.f32 1.0, %v3896
      %v3898 = vmul.f32 %v3895, %v3897
      %v3899 = vadd.f32 %v3895, %v3898
      %vm3900 = vweird.f32 %v3863
      %vm3901 = vweird.f32 %v3895
      %vm3902 = vmor %vm3900, %vm3901
      %v3903 = vsel %vm3902, %v3895, %v3899
      %v3904 = vand.u32 2147483647, %v3863
      %vm3905 = vcmp.eq.f32.partialorder %v3904, 8.507059e+37
      %v3906 = vand.u32 %v3863, 2147483648
      %v3907 = vor.u32 1.1754944e-38, %v3906
      %v3908 = vsel %vm3905, %v3907, %v3903
      %v3909 = vmul.f32 1.0, %v3908
      %v3910 = vrcp.pop %v3864
      %v3911 = vmul.f32 %v3864, %v3910
      %v3912 = vsub.f32 1.0, %v3911
      %v3913 = vmul.f32 %v3910, %v3912
      %v3914 = vadd.f32 %v3910, %v3913
      %vm3915 = vweird.f32 %v3864
      %vm3916 = vweird.f32 %v3910
      %vm3917 = vmor %vm3915, %vm3916
      %v3918 = vsel %vm3917, %v3910, %v3914
      %v3919 = vand.u32 2147483647, %v3864
      %vm3920 = vcmp.eq.f32.partialorder %v3919, 8.507059e+37
      %v3921 = vand.u32 %v3864, 2147483648
      %v3922 = vor.u32 1.1754944e-38, %v3921
      %v3923 = vsel %vm3920, %v3922, %v3918
      %v3924 = vmul.f32 1.0, %v3923
      %v3925 = vadd.f32 %v3712, %v3545
      %v3926 = vadd.f32 %v3727, %v3560
      %v3927 = vadd.f32 %v3742, %v3575
      %v3928 = vadd.f32 %v3757, %v3590
      %v3929 = vmul.f32 %v3925, 0.5
      %v3930 = vmul.f32 %v3926, 0.5
      %v3931 = vmul.f32 %v3927, 0.5
      %v3932 = vmul.f32 %v3928, 0.5
      %v3933 = vadd.f32 %v3879, %v3929
      %v3934 = vadd.f32 %v3894, %v3930
      %v3935 = vadd.f32 %v3909, %v3931
      %v3936 = vadd.f32 %v3924, %v3932
      %v3937 = vmul.f32 %v3933, 0.5
      %v3938 = vmul.f32 %v3934, 0.5
      %v3939 = vmul.f32 %v3935, 0.5
      %v3940 = vmul.f32 %v3936, 0.5
      %v3941 = vld [vmem:[%s59] sm:$0xff]
      %v3942 = vld [vmem:[%s59 + $0x8] sm:$0xff]
      %v3943 = vld [vmem:[%s59 + $0x10] sm:$0xff]
      %v3944 = vld [vmem:[%s59 + $0x18] sm:$0xff]
      %3946 = vset.pattern.permute.xlu0 0
      %3947 = vperm.xlu0 %3946, %v3937
      %v3948 = vpop.permute.xlu0 %3947
      %3951 = vset.pattern.permute.xlu0 0
      %3952 = vperm.xlu0 %3951, %v3938
      %v3953 = vpop.permute.xlu0 %3952
      %3956 = vset.pattern.permute.xlu0 0
      %3957 = vperm.xlu0 %3956, %v3939
      %v3958 = vpop.permute.xlu0 %3957
      %3961 = vset.pattern.permute.xlu0 0
      %3962 = vperm.xlu0 %3961, %v3940
      %v3963 = vpop.permute.xlu0 %3962
      %v3965 = vmul.f32 %v1662, %v3948
      %v3966 = vmul.f32 %v1665, %v3953
      %v3967 = vmul.f32 %v1668, %v3958
      %v3968 = vmul.f32 %v1671, %v3963
      %v3970 = vsel %vm986, %v3941, 0
      %v3973 = vsel %vm986, %v3942, 0
      %v3976 = vsel %vm986, %v3943, 0
      %v3979 = vsel %vm986, %v3944, 0
      %3981 = vmatpush.msra.mxu0 0.0
      %3982 = vmatpush.msra.mxu0 0.0
      %3983 = vmatpush.msra.mxu0 0.0
      %3984 = vmatpush.msra.mxu0 0.0
      %3985 = vmatpush.msra.mxu0 0.0
      %3986 = vmatpush.msra.mxu0 0.0
      %3987 = vmatpush.msra.mxu0 0.0
      %3988 = vmatpush.msra.mxu0 0.0
      %3989 = vmatpush.msra.mxu0 0.0
      %3990 = vmatpush.msra.mxu0 0.0
      %3991 = vmatpush.msra.mxu0 0.0
      %3992 = vmatpush.msra.mxu0 0.0
      %3993 = vmatpush.msra.mxu0 %v3968
      %3994 = vmatpush.msra.mxu0 %v3967
      %3995 = vmatpush.msra.mxu0 %v3966
      %3996 = vmatpush.msra.mxu0 %v3965
      %3997 = vmatmul.f32.gmra.mxu0 %v3970
      %v3998 = vpop.f32.mrf.mxu0
      %v3999 = vadd.f32 0.0, %v3998
      %4000 = vmatmul.f32.gmra.mxu0 %v3973
      %v4001 = vpop.f32.mrf.mxu0
      %v4002 = vadd.f32 0.0, %v4001
      %4003 = vmatmul.f32.gmra.mxu0 %v3976
      %v4004 = vpop.f32.mrf.mxu0
      %v4005 = vadd.f32 0.0, %v4004
      %4006 = vmatmul.f32.gmra.mxu0 %v3979
      %v4007 = vpop.f32.mrf.mxu0
      %v4008 = vadd.f32 0.0, %v4007
      %4009 = vdwg.mxu0
      %v4010 = vmax.f32 %v3999, 0.0
      %v4011 = vmax.f32 %v4002, 0.0
      %v4012 = vmax.f32 %v4005, 0.0
      %v4013 = vmax.f32 %v4008, 0.0
      %4014 = vst.msk [vmem:[%s970] sm:$0xff] %vm1032, %v4010
      %4015 = vst.msk [vmem:[%s970 + $0x8] sm:$0xff] %vm1032, %v4011
      %4016 = vst.msk [vmem:[%s970 + $0x10] sm:$0xff] %vm1032, %v4012
      %4017 = vst.msk [vmem:[%s970 + $0x18] sm:$0xff] %vm1032, %v4013
      %p4018 = scmp.lt.s32.totalorder %s72, 1
      %s4019 = scalar_select %p4018, %s72, 1
      %s4020 = smul.addr %s4019, 4
      %s4021 = smul.addr %s4020, 8
      %s4022 = scalar_lea.vmem %s61, %s4021
      // Predicated region
      $region141: #{mham_forward.1} parent=139 // pred_check
        %p4023 = pneg %p735
      $region142: #{mham_forward.1} parent=139 // pred_check_branch
        %4025 = sbr.rel (%p4023) target = $region144
      $region143: #{mham_forward.1} parent=139 // pred_region
        _
      $region144: #{mham_forward.1} parent=139 // pred_fallthru
        _
    $region140: #{mham_forward.1} parent=5 // pred_fallthru
      _
    %p4026 = scmp.le.s32.totalorder 2, %s67
    // Predicated region
    $region145: #{mham_forward.1} parent=5 // pred_check
      %p4027 = pneg %p4026
    $region146: #{mham_forward.1} parent=5 // pred_check_branch
      %4029 = sbr.rel (%p4027) target = $region148
    $region147: #{mham_forward.1} parent=5 // pred_region
      %s4030 = ssub.s32 %s67, 2
      // Predicated region
      $region149: #{mham_forward.1} parent=147 // pred_check
        %p4031 = pneg %p741
      $region150: #{mham_forward.1} parent=147 // pred_check_branch
        %4033 = sbr.rel (%p4031) target = $region152
      $region151: #{mham_forward.1} parent=147 // pred_region
        %p4034 = scmp.lt.s32.totalorder %s73, 1
        %s4035 = scalar_select %p4034, %s73, 1
        %s4036 = smul.addr %s4035, 4
        %s4037 = smul.addr %s4036, 8
        %s4038 = scalar_lea.vmem %s61, %s4037
      $region152: #{mham_forward.1} parent=147 // pred_fallthru
        _
    $region148: #{mham_forward.1} parent=5 // pred_fallthru
      _
  $region6: #{mham_forward.1} parent=0 // loop_footer
    %s71 = sadd.s32 1, %s67
  $region7: #{mham_forward.1} parent=0 // loop_footer_branch
    %66 = sbr.rel target = $region3
  $region8: #{mham_forward.1} parent=0 // loop_exit
    _

</llo_original>
